<compile_context>
chip_gen: v6e
topology: v6e:2x2x1
jax: 0.10.0
libtpu: 0.0.40
codegen_flags: <defaults>
</compile_context>

<pallas_src>
import functools
import math

import numpy as np

import jax
import jax.numpy as jnp
from jax.experimental import pallas as pl
from jax.experimental.pallas import tpu as pltpu


# ---------------------------------------------------------------------------
# Pallas kernel: fused bf16 GEMM (f32 acc) + bias + PReLU
# ---------------------------------------------------------------------------
def _gemm_bias_prelu_kernel(a_ref, w_ref, b_ref, alpha_ref, o_ref):
    acc = jnp.dot(a_ref[...], w_ref[...], preferred_element_type=jnp.float32)
    acc = acc + b_ref[...]                      # (1, Ncp) broadcasts over rows
    alpha = alpha_ref[...]                      # (1, Ncp) per-channel PReLU slope
    o_ref[...] = jnp.where(acc >= 0.0, acc, alpha * acc).astype(o_ref.dtype)


def _round_up(x, m):
    return (x + m - 1) // m * m


def _pick_tm(m):
    if m >= 1024:
        return 512
    if m >= 512:
        return 256
    if m >= 128:
        return 128
    return _round_up(max(m, 1), 8)


def gemm_bias_prelu(a, w, bias, alpha, out_dtype=jnp.bfloat16):
    """a: [M, K], w: [K, Nc], bias/alpha: [Nc]  ->  [M, Nc] in out_dtype.

    PReLU fused; pass alpha = ones for a purely linear layer.  The matmul runs
    in bf16 with f32 accumulation; Nc is padded to a multiple of 128 so that
    the output stores are lane-dense.
    """
    M, K = a.shape
    K2, Nc = w.shape
    assert K == K2

    a = a.astype(jnp.bfloat16)
    w = w.astype(jnp.bfloat16)
    bias = bias.astype(jnp.float32)
    alpha = alpha.astype(jnp.float32)

    Ncp = _round_up(Nc, 128)
    if Ncp != Nc:
        w = jnp.pad(w, ((0, 0), (0, Ncp - Nc)))
        bias = jnp.pad(bias, (0, Ncp - Nc))
        alpha = jnp.pad(alpha, (0, Ncp - Nc), constant_values=1.0)
    b2 = bias.reshape(1, Ncp)
    al2 = alpha.reshape(1, Ncp)

    TM = _pick_tm(M)
    grid_m = pl.cdiv(M, TM)

    out_itemsize = jnp.dtype(out_dtype).itemsize
    vmem_bytes = (2 * TM * K * 2              # double-buffered bf16 A tiles
                  + 2 * K * Ncp * 2           # resident weight block
                  + 2 * TM * Ncp * out_itemsize
                  + 4 * Ncp * 4)              # bias + alpha
    vmem_limit = min(64 * 1024 * 1024,
                     max(32 * 1024 * 1024, int(vmem_bytes * 1.5)))

    out = pl.pallas_call(
        _gemm_bias_prelu_kernel,
        out_shape=jax.ShapeDtypeStruct((M, Ncp), out_dtype),
        grid_spec=pltpu.PrefetchScalarGridSpec(
            num_scalar_prefetch=0,
            grid=(grid_m,),
            in_specs=[
                pl.BlockSpec((TM, K), lambda i: (i, 0)),
                pl.BlockSpec((K, Ncp), lambda i: (0, 0)),
                pl.BlockSpec((1, Ncp), lambda i: (0, 0)),
                pl.BlockSpec((1, Ncp), lambda i: (0, 0)),
            ],
            out_specs=pl.BlockSpec((TM, Ncp), lambda i: (i, 0)),
        ),
        compiler_params=pltpu.CompilerParams(
            dimension_semantics=("parallel",),
            vmem_limit_bytes=vmem_limit,
        ),
    )(a, w, b2, al2)
    if Ncp != Nc:
        out = out[:, :Nc]
    return out


# ---------------------------------------------------------------------------
# Conv3d (NDHWC) via im2col + Pallas GEMM
# ---------------------------------------------------------------------------
def conv3d_ndhwc(x, p, stride, padding, out_dtype=jnp.bfloat16):
    """x: [N, D, H, W, Cin]; p['w']: [Cout, Cin, k, k, k] (PyTorch layout)."""
    weight, bias, alpha = p["w"], p["b"], p["alpha"]
    Cout, Cin, kd, kh, kw = weight.shape
    s, pad = stride, padding

    N, D, H, W, C = x.shape
    assert C == Cin
    x = x.astype(jnp.bfloat16)
    xp = jnp.pad(x, ((0, 0), (pad, pad), (pad, pad), (pad, pad), (0, 0)))
    Do = (D + 2 * pad - kd) // s + 1
    Ho = (H + 2 * pad - kh) // s + 1
    Wo = (W + 2 * pad - kw) // s + 1

    # TODO(synk): im2col still materialized in HBM (bf16); K-grid tap streaming
    # inside the Pallas kernel would remove this round trip.
    patches = []
    for a in range(kd):
        for b in range(kh):
            for c in range(kw):
                patches.append(
                    xp[:, a:a + s * Do:s, b:b + s * Ho:s, c:c + s * Wo:s, :])
    A = jnp.concatenate(patches, axis=-1)                    # (kd,kh,kw,cin) order
    A = A.reshape(N * Do * Ho * Wo, kd * kh * kw * Cin)

    Wmat = jnp.transpose(weight, (2, 3, 4, 1, 0)).reshape(kd * kh * kw * Cin, Cout)
    out = gemm_bias_prelu(A, Wmat, bias, alpha, out_dtype=out_dtype)
    return out.reshape(N, Do, Ho, Wo, Cout)


# ---------------------------------------------------------------------------
# ConvTranspose3d(k=4, s=2, p=1) as sub-pixel conv (k=3, s=1, p=1) + shuffle
# ---------------------------------------------------------------------------
# For output phase r in {0,1} and conv tap a in {0,1,2}: source deconv tap
# index and validity mask (derived from o + pad = s*i + k).
_KIDX = np.array([[3, 1, 0], [0, 2, 0]], dtype=np.int32)
_KMSK = np.array([[1.0, 1.0, 0.0], [0.0, 1.0, 1.0]], dtype=np.float32)


def _deconv_as_conv_weight(w_t):
    """w_t: [Cin, Cout, 4, 4, 4] (ConvTranspose3d) -> [8*Cout, Cin, 3, 3, 3]."""
    Cin, Cout = w_t.shape[:2]
    w = w_t[:, :, _KIDX, :, :] * _KMSK[None, None, :, :, None, None]
    w = w[:, :, :, :, _KIDX, :] * _KMSK[None, None, None, None, :, :, None]
    w = w[..., _KIDX] * _KMSK[None, None, None, None, None, None, :, :]
    # axes: (cin, cout, rd, a, rh, b, rw, c) -> (rd, rh, rw, cout, cin, a, b, c)
    w = jnp.transpose(w, (2, 4, 6, 1, 0, 3, 5, 7))
    return w.reshape(8 * Cout, Cin, 3, 3, 3)


def conv_transpose3d_ndhwc(x, p, out_dtype=jnp.bfloat16):
    """Exact PyTorch ConvTranspose3d(k=4, s=2, p=1) on NDHWC, PReLU fused."""
    w_t, bias, alpha = p["w"], p["b"], p["alpha"]
    Cin, Cout = w_t.shape[:2]
    pc = {"w": _deconv_as_conv_weight(w_t),
          "b": jnp.tile(bias, 8),
          "alpha": jnp.tile(alpha, 8)}
    y = conv3d_ndhwc(x, pc, stride=1, padding=1, out_dtype=out_dtype)
    N, D, H, W, _ = y.shape
    y = y.reshape(N, D, H, W, 2, 2, 2, Cout)
    y = jnp.transpose(y, (0, 1, 4, 2, 5, 3, 6, 7))           # interleave phases
    return y.reshape(N, 2 * D, 2 * H, 2 * W, Cout)


# ---------------------------------------------------------------------------
# Trilinear resize (align_corners=False, recompute_scale_factor=False) glue
# ---------------------------------------------------------------------------
def trilinear_resize_ndhwc(x, scale_factor):
    N, D, H, W, C = x.shape
    out_sizes = (int(math.floor(D * scale_factor)),
                 int(math.floor(H * scale_factor)),
                 int(math.floor(W * scale_factor)))
    if out_sizes == (D, H, W):
        return x

    def resize_axis(t, axis, in_size, out_size):
        coords = (jnp.arange(out_size, dtype=jnp.float32) + 0.5) / scale_factor - 0.5
        coords = jnp.clip(coords, 0.0, in_size - 1.0)
        lo = jnp.floor(coords).astype(jnp.int32)
        hi = jnp.minimum(lo + 1, in_size - 1)
        frac = (coords - lo.astype(jnp.float32)).astype(t.dtype)
        tlo = jnp.take(t, lo, axis=axis)
        thi = jnp.take(t, hi, axis=axis)
        shape = [1] * t.ndim
        shape[axis] = out_size
        frac = frac.reshape(shape)
        return tlo * (1 - frac) + thi * frac

    for axis, ins, outs in zip((1, 2, 3), (D, H, W), out_sizes):
        x = resize_axis(x, axis, ins, outs)
    return x


# ---------------------------------------------------------------------------
# Parameter initialisation (deterministic, synthetic)
# ---------------------------------------------------------------------------
def _init_conv(key, cin, cout, k, prelu=True):
    kw, kb = jax.random.split(key)
    fan_in = cin * k ** 3
    w = jax.random.normal(kw, (cout, cin, k, k, k), jnp.float32) / math.sqrt(fan_in)
    b = jax.random.normal(kb, (cout,), jnp.float32) * 0.01
    alpha = (jnp.full((cout,), 0.25, jnp.float32) if prelu
             else jnp.ones((cout,), jnp.float32))
    return {"w": w, "b": b, "alpha": alpha}


def _init_convT(key, cin, cout, k, prelu):
    kw, kb = jax.random.split(key)
    fan_in = cin * k ** 3
    w = jax.random.normal(kw, (cin, cout, k, k, k), jnp.float32) / math.sqrt(fan_in)
    b = jax.random.normal(kb, (cout,), jnp.float32) * 0.01
    alpha = (jnp.full((cout,), 0.25, jnp.float32) if prelu
             else jnp.ones((cout,), jnp.float32))
    return {"w": w, "b": b, "alpha": alpha}


def if_block_init(key, in_planes, c=64):
    keys = jax.random.split(key, 14)
    params = {
        "conv0_0": _init_conv(keys[0], in_planes, c // 2, 4),
        "conv0_1": _init_conv(keys[1], c // 2, c, 4),
    }
    for i in range(4):
        params[f"cb{i}_0"] = _init_conv(keys[2 + 2 * i], c, c, 3)
        params[f"cb{i}_1"] = _init_conv(keys[3 + 2 * i], c, c, 3)
    params["conv1_0"] = _init_convT(keys[10], c, c // 2, 4, prelu=True)
    params["conv1_1"] = _init_convT(keys[11], c // 2, 6, 4, prelu=False)
    params["conv2_0"] = _init_convT(keys[12], c, c // 2, 4, prelu=True)
    params["conv2_1"] = _init_convT(keys[13], c // 2, 1, 4, prelu=False)
    return params


# ---------------------------------------------------------------------------
# IFBlock forward (version == 2), NCDHW public API
# ---------------------------------------------------------------------------
def if_block_forward(params, x, flow=None, scale=1):
    c2 = params["conv1_0"]["w"].shape[1]                       # c // 2
    x = jnp.transpose(x, (0, 2, 3, 4, 1)).astype(jnp.bfloat16)  # NDHWC bf16
    if scale != 1:
        x = trilinear_resize_ndhwc(x, 1.0 / scale)
    if flow is not None:
        flow = jnp.transpose(flow, (0, 2, 3, 4, 1)).astype(jnp.bfloat16)
        flow = trilinear_resize_ndhwc(flow, 1.0 / scale) * (1.0 / scale)
        x = jnp.concatenate([x, flow], axis=-1)

    # conv0: two (k=4, s=2, p=1) conv + PReLU stages -> spatial / 4
    x = conv3d_ndhwc(x, params["conv0_0"], stride=2, padding=1)
    x = conv3d_ndhwc(x, params["conv0_1"], stride=2, padding=1)

    # four residual blocks (each: two k=3, s=1, p=1 conv + PReLU)
    for i in range(4):
        y = conv3d_ndhwc(x, params[f"cb{i}_0"], stride=1, padding=1)
        y = conv3d_ndhwc(y, params[f"cb{i}_1"], stride=1, padding=1)
        x = x + y

    # Heads.  Stage 1 of conv1/conv2 share the input x -> fuse along Cout.
    p10, p20 = params["conv1_0"], params["conv2_0"]
    stage1 = {"w": jnp.concatenate([p10["w"], p20["w"]], axis=1),
              "b": jnp.concatenate([p10["b"], p20["b"]]),
              "alpha": jnp.concatenate([p10["alpha"], p20["alpha"]])}
    y = conv_transpose3d_ndhwc(x, stage1)                      # [..., c], PReLU

    # Stage 2: block-diagonal merge of conv1_1 (c//2 -> 6) and conv2_1 (c//2 -> 1).
    p11, p21 = params["conv1_1"], params["conv2_1"]
    w2 = jnp.zeros((2 * c2, 7, 4, 4, 4), jnp.float32)
    w2 = w2.at[:c2, :6].set(p11["w"]).at[c2:, 6:].set(p21["w"])
    stage2 = {"w": w2,
              "b": jnp.concatenate([p11["b"], p21["b"]]),
              "alpha": jnp.ones((7,), jnp.float32)}            # linear output
    out = conv_transpose3d_ndhwc(y, stage2, out_dtype=jnp.float32)

    f = out[..., :6]
    m = out[..., 6:7]
    f = trilinear_resize_ndhwc(f, float(scale)) * scale
    m = trilinear_resize_ndhwc(m, float(scale))
    f = jnp.transpose(f, (0, 4, 1, 2, 3))                      # back to NCDHW
    m = jnp.transpose(m, (0, 4, 1, 2, 3))
    return f, m


# ---------------------------------------------------------------------------
if __name__ == "__main__":
    key = jax.random.PRNGKey(0)
    k_param, k_x = jax.random.split(key)

    in_planes, c = 4, 16                       # small synthetic config
    N, D, H, W = 1, 16, 16, 16                 # NCDHW input; divisible by 4
    params = if_block_init(k_param, in_planes, c)
    x = jax.random.normal(k_x, (N, in_planes, D, H, W), jnp.float32)

    fwd = jax.jit(functools.partial(if_block_forward, flow=None, scale=1))
    flow_out, mask_out = fwd(params, x)
    flow_out = jax.block_until_ready(flow_out)
    mask_out = jax.block_until_ready(mask_out)

    assert flow_out.shape == (N, 6, D, H, W), flow_out.shape
    assert mask_out.shape == (N, 1, D, H, W), mask_out.shape
    assert bool(jnp.all(jnp.isfinite(flow_out)))
    assert bool(jnp.all(jnp.isfinite(mask_out)))
    print("KERNEL_OK")
</pallas_src>

<mosaic_0001>
module attributes {stable_mosaic.version = 11 : i64} {
  func.func @_gemm_bias_prelu_kernel(%arg0: i32, %arg1: memref<256x256xbf16, #tpu.memory_space<vmem>>, %arg2: memref<256x128xbf16, #tpu.memory_space<vmem>>, %arg3: memref<1x128xf32, #tpu.memory_space<vmem>>, %arg4: memref<1x128xf32, #tpu.memory_space<vmem>>, %arg5: memref<256x128xbf16, #tpu.memory_space<vmem>>) attributes {dimension_semantics = [#tpu.dimension_semantics<parallel>], iteration_bounds = array<i64: 2>, scalar_prefetch = 0 : i64, scratch_operands = 0 : i64, tpu.core_type = #tpu.core_type<tc>, window_params = [{transform_indices = @transform_0, window_bounds = array<i64: 256, 256>}, {pipeline_mode = #tpu.pipeline_mode<synchronous>, transform_indices = @transform_1, window_bounds = array<i64: 256, 128>}, {pipeline_mode = #tpu.pipeline_mode<synchronous>, transform_indices = @transform_2, window_bounds = array<i64: 1, 128>}, {pipeline_mode = #tpu.pipeline_mode<synchronous>, transform_indices = @transform_3, window_bounds = array<i64: 1, 128>}, {transform_indices = @transform_4, window_bounds = array<i64: 256, 128>}]} {
    %c0 = arith.constant 0 : index
    %c0_0 = arith.constant 0 : index
    %0 = vector.load %arg1[%c0, %c0_0] : memref<256x256xbf16, #tpu.memory_space<vmem>>, vector<256x256xbf16>
    %c0_1 = arith.constant 0 : index
    %c0_2 = arith.constant 0 : index
    %1 = vector.load %arg2[%c0_1, %c0_2] : memref<256x128xbf16, #tpu.memory_space<vmem>>, vector<256x128xbf16>
    %cst = arith.constant dense<0.000000e+00> : vector<256x128xf32>
    %2 = tpu.matmul %0, %1, %cst {dimension_numbers = #tpu.dot_dimension_numbers<[1], [0], [0], [1], [0, 0, 1, 1], [], []>} : vector<256x256xbf16>, vector<256x128xbf16>, vector<256x128xf32> -> vector<256x128xf32>
    %c0_3 = arith.constant 0 : index
    %c0_4 = arith.constant 0 : index
    %3 = vector.load %arg3[%c0_3, %c0_4] : memref<1x128xf32, #tpu.memory_space<vmem>>, vector<1x128xf32>
    %4 = vector.broadcast %3 : vector<1x128xf32> to vector<256x128xf32>
    %5 = arith.addf %2, %4 : vector<256x128xf32>
    %c0_5 = arith.constant 0 : index
    %c0_6 = arith.constant 0 : index
    %6 = vector.load %arg4[%c0_5, %c0_6] : memref<1x128xf32, #tpu.memory_space<vmem>>, vector<1x128xf32>
    %cst_7 = arith.constant 0.000000e+00 : f32
    %7 = vector.broadcast %cst_7 : f32 to vector<256x128xf32>
    %8 = arith.cmpf oge, %5, %7 : vector<256x128xf32>
    %9 = vector.broadcast %6 : vector<1x128xf32> to vector<256x128xf32>
    %10 = arith.mulf %9, %5 : vector<256x128xf32>
    %11 = arith.select %8, %5, %10 : vector<256x128xi1>, vector<256x128xf32>
    %12 = arith.truncf %11 : vector<256x128xf32> to vector<256x128xbf16>
    %c0_8 = arith.constant 0 : index
    %c0_9 = arith.constant 0 : index
    %13 = vector.load %arg5[%c0_8, %c0_9] : memref<256x128xbf16, #tpu.memory_space<vmem>>, vector<256x128xbf16>
    tpu.vector_store %arg5[%c0_8, %c0_9], %12 {strides = array<i32>} : memref<256x128xbf16, #tpu.memory_space<vmem>>, vector<256x128xbf16>,
    return
  }
  func.func @transform_0(%arg0: i32) -> (i32, i32) {
    %c0_i32 = arith.constant 0 : i32
    %c0_i32_0 = arith.constant 0 : i32
    return %arg0, %c0_i32 : i32, i32
  }
  func.func @transform_1(%arg0: i32) -> (i32, i32) {
    %c0_i32 = arith.constant 0 : i32
    %c0_i32_0 = arith.constant 0 : i32
    %c0_i32_1 = arith.constant 0 : i32
    return %c0_i32, %c0_i32_0 : i32, i32
  }
  func.func @transform_2(%arg0: i32) -> (i32, i32) {
    %c0_i32 = arith.constant 0 : i32
    %c0_i32_0 = arith.constant 0 : i32
    %c0_i32_1 = arith.constant 0 : i32
    return %c0_i32, %c0_i32_0 : i32, i32
  }
  func.func @transform_3(%arg0: i32) -> (i32, i32) {
    %c0_i32 = arith.constant 0 : i32
    %c0_i32_0 = arith.constant 0 : i32
    %c0_i32_1 = arith.constant 0 : i32
    return %c0_i32, %c0_i32_0 : i32, i32
  }
  func.func @transform_4(%arg0: i32) -> (i32, i32) {
    %c0_i32 = arith.constant 0 : i32
    %c0_i32_0 = arith.constant 0 : i32
    return %arg0, %c0_i32 : i32, i32
  }
}

module attributes {stable_mosaic.version = 11 : i64} {
  func.func @_gemm_bias_prelu_kernel(%arg0: i32, %arg1: memref<64x512xbf16, #tpu.memory_space<vmem>>, %arg2: memref<512x128xbf16, #tpu.memory_space<vmem>>, %arg3: memref<1x128xf32, #tpu.memory_space<vmem>>, %arg4: memref<1x128xf32, #tpu.memory_space<vmem>>, %arg5: memref<64x128xbf16, #tpu.memory_space<vmem>>) attributes {dimension_semantics = [#tpu.dimension_semantics<parallel>], iteration_bounds = array<i64: 1>, scalar_prefetch = 0 : i64, scratch_operands = 0 : i64, tpu.core_type = #tpu.core_type<tc>, window_params = [{transform_indices = @transform_0, window_bounds = array<i64: 64, 512>}, {pipeline_mode = #tpu.pipeline_mode<synchronous>, transform_indices = @transform_1, window_bounds = array<i64: 512, 128>}, {pipeline_mode = #tpu.pipeline_mode<synchronous>, transform_indices = @transform_2, window_bounds = array<i64: 1, 128>}, {pipeline_mode = #tpu.pipeline_mode<synchronous>, transform_indices = @transform_3, window_bounds = array<i64: 1, 128>}, {transform_indices = @transform_4, window_bounds = array<i64: 64, 128>}]} {
    %c0 = arith.constant 0 : index
    %c0_0 = arith.constant 0 : index
    %0 = vector.load %arg1[%c0, %c0_0] : memref<64x512xbf16, #tpu.memory_space<vmem>>, vector<64x512xbf16>
    %c0_1 = arith.constant 0 : index
    %c0_2 = arith.constant 0 : index
    %1 = vector.load %arg2[%c0_1, %c0_2] : memref<512x128xbf16, #tpu.memory_space<vmem>>, vector<512x128xbf16>
    %cst = arith.constant dense<0.000000e+00> : vector<64x128xf32>
    %2 = tpu.matmul %0, %1, %cst {dimension_numbers = #tpu.dot_dimension_numbers<[1], [0], [0], [1], [0, 0, 1, 1], [], []>} : vector<64x512xbf16>, vector<512x128xbf16>, vector<64x128xf32> -> vector<64x128xf32>
    %c0_3 = arith.constant 0 : index
    %c0_4 = arith.constant 0 : index
    %3 = vector.load %arg3[%c0_3, %c0_4] : memref<1x128xf32, #tpu.memory_space<vmem>>, vector<1x128xf32>
    %4 = vector.broadcast %3 : vector<1x128xf32> to vector<64x128xf32>
    %5 = arith.addf %2, %4 : vector<64x128xf32>
    %c0_5 = arith.constant 0 : index
    %c0_6 = arith.constant 0 : index
    %6 = vector.load %arg4[%c0_5, %c0_6] : memref<1x128xf32, #tpu.memory_space<vmem>>, vector<1x128xf32>
    %cst_7 = arith.constant 0.000000e+00 : f32
    %7 = vector.broadcast %cst_7 : f32 to vector<64x128xf32>
    %8 = arith.cmpf oge, %5, %7 : vector<64x128xf32>
    %9 = vector.broadcast %6 : vector<1x128xf32> to vector<64x128xf32>
    %10 = arith.mulf %9, %5 : vector<64x128xf32>
    %11 = arith.select %8, %5, %10 : vector<64x128xi1>, vector<64x128xf32>
    %12 = arith.truncf %11 : vector<64x128xf32> to vector<64x128xbf16>
    %c0_8 = arith.constant 0 : index
    %c0_9 = arith.constant 0 : index
    %13 = vector.load %arg5[%c0_8, %c0_9] : memref<64x128xbf16, #tpu.memory_space<vmem>>, vector<64x128xbf16>
    tpu.vector_store %arg5[%c0_8, %c0_9], %12 {strides = array<i32>} : memref<64x128xbf16, #tpu.memory_space<vmem>>, vector<64x128xbf16>,
    return
  }
  func.func @transform_0(%arg0: i32) -> (i32, i32) {
    %c0_i32 = arith.constant 0 : i32
    %c0_i32_0 = arith.constant 0 : i32
    return %arg0, %c0_i32 : i32, i32
  }
  func.func @transform_1(%arg0: i32) -> (i32, i32) {
    %c0_i32 = arith.constant 0 : i32
    %c0_i32_0 = arith.constant 0 : i32
    %c0_i32_1 = arith.constant 0 : i32
    return %c0_i32, %c0_i32_0 : i32, i32
  }
  func.func @transform_2(%arg0: i32) -> (i32, i32) {
    %c0_i32 = arith.constant 0 : i32
    %c0_i32_0 = arith.constant 0 : i32
    %c0_i32_1 = arith.constant 0 : i32
    return %c0_i32, %c0_i32_0 : i32, i32
  }
  func.func @transform_3(%arg0: i32) -> (i32, i32) {
    %c0_i32 = arith.constant 0 : i32
    %c0_i32_0 = arith.constant 0 : i32
    %c0_i32_1 = arith.constant 0 : i32
    return %c0_i32, %c0_i32_0 : i32, i32
  }
  func.func @transform_4(%arg0: i32) -> (i32, i32) {
    %c0_i32 = arith.constant 0 : i32
    %c0_i32_0 = arith.constant 0 : i32
    return %arg0, %c0_i32 : i32, i32
  }
}

module attributes {stable_mosaic.version = 11 : i64} {
  func.func @_gemm_bias_prelu_kernel(%arg0: i32, %arg1: memref<64x432xbf16, #tpu.memory_space<vmem>>, %arg2: memref<432x128xbf16, #tpu.memory_space<vmem>>, %arg3: memref<1x128xf32, #tpu.memory_space<vmem>>, %arg4: memref<1x128xf32, #tpu.memory_space<vmem>>, %arg5: memref<64x128xbf16, #tpu.memory_space<vmem>>) attributes {dimension_semantics = [#tpu.dimension_semantics<parallel>], iteration_bounds = array<i64: 1>, scalar_prefetch = 0 : i64, scratch_operands = 0 : i64, tpu.core_type = #tpu.core_type<tc>, window_params = [{transform_indices = @transform_0, window_bounds = array<i64: 64, 432>}, {pipeline_mode = #tpu.pipeline_mode<synchronous>, transform_indices = @transform_1, window_bounds = array<i64: 432, 128>}, {pipeline_mode = #tpu.pipeline_mode<synchronous>, transform_indices = @transform_2, window_bounds = array<i64: 1, 128>}, {pipeline_mode = #tpu.pipeline_mode<synchronous>, transform_indices = @transform_3, window_bounds = array<i64: 1, 128>}, {transform_indices = @transform_4, window_bounds = array<i64: 64, 128>}]} {
    %c0 = arith.constant 0 : index
    %c0_0 = arith.constant 0 : index
    %0 = vector.load %arg1[%c0, %c0_0] : memref<64x432xbf16, #tpu.memory_space<vmem>>, vector<64x432xbf16>
    %c0_1 = arith.constant 0 : index
    %c0_2 = arith.constant 0 : index
    %1 = vector.load %arg2[%c0_1, %c0_2] : memref<432x128xbf16, #tpu.memory_space<vmem>>, vector<432x128xbf16>
    %cst = arith.constant dense<0.000000e+00> : vector<64x128xf32>
    %2 = tpu.matmul %0, %1, %cst {dimension_numbers = #tpu.dot_dimension_numbers<[1], [0], [0], [1], [0, 0, 1, 1], [], []>} : vector<64x432xbf16>, vector<432x128xbf16>, vector<64x128xf32> -> vector<64x128xf32>
    %c0_3 = arith.constant 0 : index
    %c0_4 = arith.constant 0 : index
    %3 = vector.load %arg3[%c0_3, %c0_4] : memref<1x128xf32, #tpu.memory_space<vmem>>, vector<1x128xf32>
    %4 = vector.broadcast %3 : vector<1x128xf32> to vector<64x128xf32>
    %5 = arith.addf %2, %4 : vector<64x128xf32>
    %c0_5 = arith.constant 0 : index
    %c0_6 = arith.constant 0 : index
    %6 = vector.load %arg4[%c0_5, %c0_6] : memref<1x128xf32, #tpu.memory_space<vmem>>, vector<1x128xf32>
    %cst_7 = arith.constant 0.000000e+00 : f32
    %7 = vector.broadcast %cst_7 : f32 to vector<64x128xf32>
    %8 = arith.cmpf oge, %5, %7 : vector<64x128xf32>
    %9 = vector.broadcast %6 : vector<1x128xf32> to vector<64x128xf32>
    %10 = arith.mulf %9, %5 : vector<64x128xf32>
    %11 = arith.select %8, %5, %10 : vector<64x128xi1>, vector<64x128xf32>
    %12 = arith.truncf %11 : vector<64x128xf32> to vector<64x128xbf16>
    %c0_8 = arith.constant 0 : index
    %c0_9 = arith.constant 0 : index
    %13 = vector.load %arg5[%c0_8, %c0_9] : memref<64x128xbf16, #tpu.memory_space<vmem>>, vector<64x128xbf16>
    tpu.vector_store %arg5[%c0_8, %c0_9], %12 {strides = array<i32>} : memref<64x128xbf16, #tpu.memory_space<vmem>>, vector<64x128xbf16>,
    return
  }
  func.func @transform_0(%arg0: i32) -> (i32, i32) {
    %c0_i32 = arith.constant 0 : i32
    %c0_i32_0 = arith.constant 0 : i32
    return %arg0, %c0_i32 : i32, i32
  }
  func.func @transform_1(%arg0: i32) -> (i32, i32) {
    %c0_i32 = arith.constant 0 : i32
    %c0_i32_0 = arith.constant 0 : i32
    %c0_i32_1 = arith.constant 0 : i32
    return %c0_i32, %c0_i32_0 : i32, i32
  }
  func.func @transform_2(%arg0: i32) -> (i32, i32) {
    %c0_i32 = arith.constant 0 : i32
    %c0_i32_0 = arith.constant 0 : i32
    %c0_i32_1 = arith.constant 0 : i32
    return %c0_i32, %c0_i32_0 : i32, i32
  }
  func.func @transform_3(%arg0: i32) -> (i32, i32) {
    %c0_i32 = arith.constant 0 : i32
    %c0_i32_0 = arith.constant 0 : i32
    %c0_i32_1 = arith.constant 0 : i32
    return %c0_i32, %c0_i32_0 : i32, i32
  }
  func.func @transform_4(%arg0: i32) -> (i32, i32) {
    %c0_i32 = arith.constant 0 : i32
    %c0_i32_0 = arith.constant 0 : i32
    return %arg0, %c0_i32 : i32, i32
  }
}

module attributes {stable_mosaic.version = 11 : i64} {
  func.func @_gemm_bias_prelu_kernel(%arg0: i32, %arg1: memref<256x432xbf16, #tpu.memory_space<vmem>>, %arg2: memref<432x128xbf16, #tpu.memory_space<vmem>>, %arg3: memref<1x128xf32, #tpu.memory_space<vmem>>, %arg4: memref<1x128xf32, #tpu.memory_space<vmem>>, %arg5: memref<256x128xf32, #tpu.memory_space<vmem>>) attributes {dimension_semantics = [#tpu.dimension_semantics<parallel>], iteration_bounds = array<i64: 2>, scalar_prefetch = 0 : i64, scratch_operands = 0 : i64, tpu.core_type = #tpu.core_type<tc>, window_params = [{transform_indices = @transform_0, window_bounds = array<i64: 256, 432>}, {pipeline_mode = #tpu.pipeline_mode<synchronous>, transform_indices = @transform_1, window_bounds = array<i64: 432, 128>}, {pipeline_mode = #tpu.pipeline_mode<synchronous>, transform_indices = @transform_2, window_bounds = array<i64: 1, 128>}, {pipeline_mode = #tpu.pipeline_mode<synchronous>, transform_indices = @transform_3, window_bounds = array<i64: 1, 128>}, {transform_indices = @transform_4, window_bounds = array<i64: 256, 128>}]} {
    %c0 = arith.constant 0 : index
    %c0_0 = arith.constant 0 : index
    %0 = vector.load %arg1[%c0, %c0_0] : memref<256x432xbf16, #tpu.memory_space<vmem>>, vector<256x432xbf16>
    %c0_1 = arith.constant 0 : index
    %c0_2 = arith.constant 0 : index
    %1 = vector.load %arg2[%c0_1, %c0_2] : memref<432x128xbf16, #tpu.memory_space<vmem>>, vector<432x128xbf16>
    %cst = arith.constant dense<0.000000e+00> : vector<256x128xf32>
    %2 = tpu.matmul %0, %1, %cst {dimension_numbers = #tpu.dot_dimension_numbers<[1], [0], [0], [1], [0, 0, 1, 1], [], []>} : vector<256x432xbf16>, vector<432x128xbf16>, vector<256x128xf32> -> vector<256x128xf32>
    %c0_3 = arith.constant 0 : index
    %c0_4 = arith.constant 0 : index
    %3 = vector.load %arg3[%c0_3, %c0_4] : memref<1x128xf32, #tpu.memory_space<vmem>>, vector<1x128xf32>
    %4 = vector.broadcast %3 : vector<1x128xf32> to vector<256x128xf32>
    %5 = arith.addf %2, %4 : vector<256x128xf32>
    %c0_5 = arith.constant 0 : index
    %c0_6 = arith.constant 0 : index
    %6 = vector.load %arg4[%c0_5, %c0_6] : memref<1x128xf32, #tpu.memory_space<vmem>>, vector<1x128xf32>
    %cst_7 = arith.constant 0.000000e+00 : f32
    %7 = vector.broadcast %cst_7 : f32 to vector<256x128xf32>
    %8 = arith.cmpf oge, %5, %7 : vector<256x128xf32>
    %9 = vector.broadcast %6 : vector<1x128xf32> to vector<256x128xf32>
    %10 = arith.mulf %9, %5 : vector<256x128xf32>
    %11 = arith.select %8, %5, %10 : vector<256x128xi1>, vector<256x128xf32>
    %c0_8 = arith.constant 0 : index
    %c0_9 = arith.constant 0 : index
    %12 = vector.load %arg5[%c0_8, %c0_9] : memref<256x128xf32, #tpu.memory_space<vmem>>, vector<256x128xf32>
    tpu.vector_store %arg5[%c0_8, %c0_9], %11 {strides = array<i32>} : memref<256x128xf32, #tpu.memory_space<vmem>>, vector<256x128xf32>,
    return
  }
  func.func @transform_0(%arg0: i32) -> (i32, i32) {
    %c0_i32 = arith.constant 0 : i32
    %c0_i32_0 = arith.constant 0 : i32
    return %arg0, %c0_i32 : i32, i32
  }
  func.func @transform_1(%arg0: i32) -> (i32, i32) {
    %c0_i32 = arith.constant 0 : i32
    %c0_i32_0 = arith.constant 0 : i32
    %c0_i32_1 = arith.constant 0 : i32
    return %c0_i32, %c0_i32_0 : i32, i32
  }
  func.func @transform_2(%arg0: i32) -> (i32, i32) {
    %c0_i32 = arith.constant 0 : i32
    %c0_i32_0 = arith.constant 0 : i32
    %c0_i32_1 = arith.constant 0 : i32
    return %c0_i32, %c0_i32_0 : i32, i32
  }
  func.func @transform_3(%arg0: i32) -> (i32, i32) {
    %c0_i32 = arith.constant 0 : i32
    %c0_i32_0 = arith.constant 0 : i32
    %c0_i32_1 = arith.constant 0 : i32
    return %c0_i32, %c0_i32_0 : i32, i32
  }
  func.func @transform_4(%arg0: i32) -> (i32, i32) {
    %c0_i32 = arith.constant 0 : i32
    %c0_i32_0 = arith.constant 0 : i32
    return %arg0, %c0_i32 : i32, i32
  }
}

</mosaic_0001>

<llo_original>
// kernel: if_block_forward.12
$region0: #{if_block_forward.12}
  #allocation0 [shape = 'u32[]', space=smem, size = 0x4, offset = 0x4, fixed_abs, tag = 'smem constant byte address 0x4 - core index']
  #allocation1 [shape = 'u32[144,128]{1,0:T(1,128)}', space=vmem, size = 0x12000, scoped, tag = 'internal scratch']
  %s0 = inlined_call_operand.vmem [shape: bf16[512,256], index: 0, kind: input, shape index: {}]
  %s1 = inlined_call_operand.vmem [shape: bf16[256,128], index: 1, kind: input, shape index: {}]
  %s2 = inlined_call_operand.vmem [shape: f32[1,128], index: 2, kind: input, shape index: {}]
  %s3 = inlined_call_operand.vmem [shape: f32[1,128], index: 3, kind: input, shape index: {}]
  %s4 = inlined_call_operand.vmem [shape: bf16[512,128], index: 4, kind: output, shape index: {}]
  %s5 = sld [smem:[#allocation0]]
  $region49: #{if_block_forward.12} parent=0
    _
  %s7 = ssub.s32 1, %s5
  %s8 = scalar_select 0, %s7, %s5
  loop: start=0, step=1, limit=4
  $region2: #{if_block_forward.12} parent=0 // loop_pre_header
    _
  $region3: #{if_block_forward.12} parent=0 // loop_header
    %s10 = sphi 0, %s14
    %p11 = scmp.ge.s32.totalorder %s10, 4
    %s20 = sphi 0, %s22
    %s23 = sphi 0, %s20
    %s24 = sphi 0, %s23
    %s40 = sphi 0, %s24
    %s44 = sphi 0, %s44
    %s46 = sphi 0, %s44
    %s47 = sphi 0, %s46
    %s61 = sphi 0, %s47
    %s65 = sphi 0, %s65
    %s67 = sphi 0, %s65
    %s68 = sphi 0, %s67
    %s82 = sphi 0, %s68
    %s86 = sphi 0, %s86
    %s88 = sphi 0, %s86
    %s89 = sphi 0, %s88
    %s103 = sphi 0, %s89
    %s109 = sphi 0, %s111
    %s112 = sphi 0, %s109
    %s113 = sphi 0, %s112
    %s129 = sphi 0, %s113
  $region4: #{if_block_forward.12} parent=0 // loop_header_branch
    %13 = sbr.rel (%p11) target = $region8
  $region5: #{if_block_forward.12} parent=0 // loop_body
    %s15 = ssub.s32 %s10, 1
    %s16 = ssub.s32 %s10, 2
    %s17 = sadd.s32 %s10, 1
    %s18 = ssub.s32 %s10, %s17
    %p19 = scmp.eq.s32.totalorder %s18, 0
    %s21 = sadd.s32 %s20, 1
    %s22 = scalar_select %p19, %s20, %s21
    %p25 = pneg %p19
    %p26 = scmp.eq.s32.totalorder %s10, 1
    %p27 = por %p25, %p26
    %p28 = scmp.ne.s32.totalorder %s20, %s23
    %p29 = scmp.eq.s32.totalorder %s10, 0
    %p30 = por %p28, %p29
    %p31 = scmp.ne.s32.totalorder %s20, %s23
    %p32 = scmp.eq.s32.totalorder %s15, 1
    %p33 = por %p31, %p32
    %p34 = scmp.ne.s32.totalorder %s23, %s24
    %p35 = scmp.eq.s32.totalorder %s15, 0
    %p36 = por %p34, %p35
    %p37 = scmp.ne.s32.totalorder %s23, %s24
    %p38 = scmp.eq.s32.totalorder %s16, 1
    %p39 = por %p37, %p38
    %p41 = scmp.ne.s32.totalorder %s24, %s40
    %p42 = scmp.eq.s32.totalorder %s16, 0
    %p43 = por %p41, %p42
    %s45 = sadd.s32 %s44, 1
    %p48 = scmp.eq.s32.totalorder %s10, 1
    %p49 = scmp.ne.s32.totalorder %s44, %s46
    %p50 = scmp.eq.s32.totalorder %s10, 0
    %p51 = por %p49, %p50
    %p52 = scmp.ne.s32.totalorder %s44, %s46
    %p53 = scmp.eq.s32.totalorder %s15, 1
    %p54 = por %p52, %p53
    %p55 = scmp.ne.s32.totalorder %s46, %s47
    %p56 = scmp.eq.s32.totalorder %s15, 0
    %p57 = por %p55, %p56
    %p58 = scmp.ne.s32.totalorder %s46, %s47
    %p59 = scmp.eq.s32.totalorder %s16, 1
    %p60 = por %p58, %p59
    %p62 = scmp.ne.s32.totalorder %s47, %s61
    %p63 = scmp.eq.s32.totalorder %s16, 0
    %p64 = por %p62, %p63
    %s66 = sadd.s32 %s65, 1
    %p69 = scmp.eq.s32.totalorder %s10, 1
    %p70 = scmp.ne.s32.totalorder %s65, %s67
    %p71 = scmp.eq.s32.totalorder %s10, 0
    %p72 = por %p70, %p71
    %p73 = scmp.ne.s32.totalorder %s65, %s67
    %p74 = scmp.eq.s32.totalorder %s15, 1
    %p75 = por %p73, %p74
    %p76 = scmp.ne.s32.totalorder %s67, %s68
    %p77 = scmp.eq.s32.totalorder %s15, 0
    %p78 = por %p76, %p77
    %p79 = scmp.ne.s32.totalorder %s67, %s68
    %p80 = scmp.eq.s32.totalorder %s16, 1
    %p81 = por %p79, %p80
    %p83 = scmp.ne.s32.totalorder %s68, %s82
    %p84 = scmp.eq.s32.totalorder %s16, 0
    %p85 = por %p83, %p84
    %s87 = sadd.s32 %s86, 1
    %p90 = scmp.eq.s32.totalorder %s10, 1
    %p91 = scmp.ne.s32.totalorder %s86, %s88
    %p92 = scmp.eq.s32.totalorder %s10, 0
    %p93 = por %p91, %p92
    %p94 = scmp.ne.s32.totalorder %s86, %s88
    %p95 = scmp.eq.s32.totalorder %s15, 1
    %p96 = por %p94, %p95
    %p97 = scmp.ne.s32.totalorder %s88, %s89
    %p98 = scmp.eq.s32.totalorder %s15, 0
    %p99 = por %p97, %p98
    %p100 = scmp.ne.s32.totalorder %s88, %s89
    %p101 = scmp.eq.s32.totalorder %s16, 1
    %p102 = por %p100, %p101
    %p104 = scmp.ne.s32.totalorder %s89, %s103
    %p105 = scmp.eq.s32.totalorder %s16, 0
    %p106 = por %p104, %p105
    %s107 = ssub.s32 %s10, %s17
    %p108 = scmp.eq.s32.totalorder %s107, 0
    %s110 = sadd.s32 %s109, 1
    %s111 = scalar_select %p108, %s109, %s110
    %p114 = pneg %p108
    %p115 = scmp.eq.s32.totalorder %s10, 1
    %p116 = por %p114, %p115
    %p117 = scmp.ne.s32.totalorder %s109, %s112
    %p118 = scmp.eq.s32.totalorder %s10, 0
    %p119 = por %p117, %p118
    %p120 = scmp.ne.s32.totalorder %s109, %s112
    %p121 = scmp.eq.s32.totalorder %s15, 1
    %p122 = por %p120, %p121
    %p123 = scmp.ne.s32.totalorder %s112, %s113
    %p124 = scmp.eq.s32.totalorder %s15, 0
    %p125 = por %p123, %p124
    %p126 = scmp.ne.s32.totalorder %s112, %s113
    %p127 = scmp.eq.s32.totalorder %s16, 1
    %p128 = por %p126, %p127
    %p130 = scmp.ne.s32.totalorder %s113, %s129
    %p131 = scmp.eq.s32.totalorder %s16, 0
    %p132 = por %p130, %p131
    %p133 = scmp.le.s32.totalorder 1, %s10
    %p134 = scmp.lt.s32.totalorder %s10, 3
    %p135 = pnand %p133, %p134
    %p136 = pneg %p135
    // Predicated region
    $region9: #{if_block_forward.12} parent=5 // pred_check
      _
    $region10: #{if_block_forward.12} parent=5 // pred_check_branch
      %138 = sbr.rel (%p135) target = $region12
    $region11: #{if_block_forward.12} parent=5 // pred_region
      %s139 = ssub.s32 %s10, 1
      // Predicated region
      $region13: #{if_block_forward.12} parent=11 // pred_check
        %p140 = pneg %p57
      $region14: #{if_block_forward.12} parent=11 // pred_check_branch
        %142 = sbr.rel (%p140) target = $region16
      $region15: #{if_block_forward.12} parent=11 // pred_region
        _
      $region16: #{if_block_forward.12} parent=11 // pred_fallthru
        _
      // Predicated region
      $region17: #{if_block_forward.12} parent=11 // pred_check
        %p143 = pneg %p78
      $region18: #{if_block_forward.12} parent=11 // pred_check_branch
        %145 = sbr.rel (%p143) target = $region20
      $region19: #{if_block_forward.12} parent=11 // pred_region
        _
      $region20: #{if_block_forward.12} parent=11 // pred_fallthru
        _
      // Predicated region
      $region21: #{if_block_forward.12} parent=11 // pred_check
        %p146 = pneg %p99
      $region22: #{if_block_forward.12} parent=11 // pred_check_branch
        %148 = sbr.rel (%p146) target = $region24
      $region23: #{if_block_forward.12} parent=11 // pred_region
        _
      $region24: #{if_block_forward.12} parent=11 // pred_fallthru
        _
    $region12: #{if_block_forward.12} parent=5 // pred_fallthru
      _
    %p149 = scmp.lt.s32.totalorder %s10, 2
    // Predicated region
    $region25: #{if_block_forward.12} parent=5 // pred_check
      %p150 = pneg %p149
    $region26: #{if_block_forward.12} parent=5 // pred_check_branch
      %152 = sbr.rel (%p150) target = $region28
    $region27: #{if_block_forward.12} parent=5 // pred_region
      // Predicated region
      $region29: #{if_block_forward.12} parent=27 // pred_check
        %p153 = pneg %p30
      $region30: #{if_block_forward.12} parent=27 // pred_check_branch
        %155 = sbr.rel (%p153) target = $region32
      $region31: #{if_block_forward.12} parent=27 // pred_region
        %s156 = smul.u32 32, %s10
        %p157 = scmp.lt.s32.totalorder %s156, 63
        %s158 = scalar_select %p157, %s156, 63
        %s159 = smul.addr %s158, 2
        %s160 = smul.addr %s159, 4
        %s161 = scalar_lea.vmem %s0, %s160
        %s162 = smul.u32 32, %s10
      $region32: #{if_block_forward.12} parent=27 // pred_fallthru
        _
    $region28: #{if_block_forward.12} parent=5 // pred_fallthru
      _
    %p163 = scmp.le.s32.totalorder 1, %s10
    %p164 = scmp.lt.s32.totalorder %s10, 3
    %p165 = pnand %p163, %p164
    %p166 = pneg %p165
    // Predicated region
    $region33: #{if_block_forward.12} parent=5 // pred_check
      _
    $region34: #{if_block_forward.12} parent=5 // pred_check_branch
      %168 = sbr.rel (%p165) target = $region36
    $region35: #{if_block_forward.12} parent=5 // pred_region
      %s169 = ssub.s32 %s10, 1
      %s170 = smul.u32 32, %s15
      %p171 = scmp.lt.s32.totalorder %s170, 63
      %s172 = scalar_select %p171, %s170, 63
      %s173 = smul.addr %s172, 2
      %s174 = smul.addr %s173, 4
      %s175 = scalar_lea.vmem %s0, %s174
      %p176 = pneg %p36
      %p177 = pneg %p33
      %p178 = pneg %p57
      %p179 = pneg %p54
      %p180 = pneg %p78
      %p181 = pneg %p75
      %p182 = pneg %p99
      %p183 = pneg %p96
      %p184 = pneg %p125
      %p185 = pneg %p122
      %s186 = smul.u32 32, %s15
      %p187 = scmp.lt.s32.totalorder %s186, 63
      %s188 = scalar_select %p187, %s186, 63
      %s189 = smul.addr %s188, 4
      %s190 = scalar_lea.vmem %s4, %s189
      %s191 = smul.u32 32, %s15
      %p192 = scmp.lt.s32.totalorder %s191, 63
      %s193 = scalar_select %p192, %s191, 63
      %s194 = smul.addr %s193, 2
      %s195 = smul.addr %s194, 4
      %s196 = scalar_lea.vmem %s0, %s195
      %s197 = smul.u32 32, %s15
      %s198 = smul.u32 32, %s15
      %p199 = scmp.lt.s32.totalorder %s198, 63
      %s200 = scalar_select %p199, %s198, 63
      %s201 = smul.addr %s200, 4
      %s202 = scalar_lea.vmem %s4, %s201
      %s203 = smul.u32 32, %s15
      %v205 = vld [vmem:[%s196] sm:$0xff]
      %v206 = vld [vmem:[%s196 + $0x8] sm:$0xff]
      %v207 = vld [vmem:[%s196 + $0x10] sm:$0xff]
      %v208 = vld [vmem:[%s196 + $0x18] sm:$0xff]
      %v209 = vld [vmem:[%s196 + $0x20] sm:$0xff]
      %v210 = vld [vmem:[%s196 + $0x28] sm:$0xff]
      %v211 = vld [vmem:[%s196 + $0x30] sm:$0xff]
      %v212 = vld [vmem:[%s196 + $0x38] sm:$0xff]
      %v213 = vld [vmem:[%s196 + $0x40] sm:$0xff]
      %v214 = vld [vmem:[%s196 + $0x48] sm:$0xff]
      %v215 = vld [vmem:[%s196 + $0x50] sm:$0xff]
      %v216 = vld [vmem:[%s196 + $0x58] sm:$0xff]
      %v217 = vld [vmem:[%s196 + $0x60] sm:$0xff]
      %v218 = vld [vmem:[%s196 + $0x68] sm:$0xff]
      %v219 = vld [vmem:[%s196 + $0x70] sm:$0xff]
      %v220 = vld [vmem:[%s196 + $0x78] sm:$0xff]
      %v221 = vld [vmem:[%s196 + $0x80] sm:$0xff]
      %v222 = vld [vmem:[%s196 + $0x88] sm:$0xff]
      %v223 = vld [vmem:[%s196 + $0x90] sm:$0xff]
      %v224 = vld [vmem:[%s196 + $0x98] sm:$0xff]
      %v225 = vld [vmem:[%s196 + $0xa0] sm:$0xff]
      %v226 = vld [vmem:[%s196 + $0xa8] sm:$0xff]
      %v227 = vld [vmem:[%s196 + $0xb0] sm:$0xff]
      %v228 = vld [vmem:[%s196 + $0xb8] sm:$0xff]
      %v229 = vld [vmem:[%s196 + $0xc0] sm:$0xff]
      %v230 = vld [vmem:[%s196 + $0xc8] sm:$0xff]
      %v231 = vld [vmem:[%s196 + $0xd0] sm:$0xff]
      %v232 = vld [vmem:[%s196 + $0xd8] sm:$0xff]
      %v233 = vld [vmem:[%s196 + $0xe0] sm:$0xff]
      %v234 = vld [vmem:[%s196 + $0xe8] sm:$0xff]
      %v235 = vld [vmem:[%s196 + $0xf0] sm:$0xff]
      %v236 = vld [vmem:[%s196 + $0xf8] sm:$0xff]
      %v237 = vld [vmem:[%s1] sm:$0xf]
      %v238 = vld [vmem:[%s1 + $0x4] sm:$0xf]
      %v239 = vld [vmem:[%s1 + $0x8] sm:$0xf]
      %v240 = vld [vmem:[%s1 + $0xc] sm:$0xf]
      %v241 = vld [vmem:[%s1 + $0x10] sm:$0xf]
      %v242 = vld [vmem:[%s1 + $0x14] sm:$0xf]
      %v243 = vld [vmem:[%s1 + $0x18] sm:$0xf]
      %v244 = vld [vmem:[%s1 + $0x1c] sm:$0xf]
      %v245 = vld [vmem:[%s1 + $0x20] sm:$0xf]
      %v246 = vld [vmem:[%s1 + $0x24] sm:$0xf]
      %v247 = vld [vmem:[%s1 + $0x28] sm:$0xf]
      %v248 = vld [vmem:[%s1 + $0x2c] sm:$0xf]
      %v249 = vld [vmem:[%s1 + $0x30] sm:$0xf]
      %v250 = vld [vmem:[%s1 + $0x34] sm:$0xf]
      %v251 = vld [vmem:[%s1 + $0x38] sm:$0xf]
      %v252 = vld [vmem:[%s1 + $0x3c] sm:$0xf]
      %v253 = vld [vmem:[%s1 + $0x40] sm:$0xf]
      %v254 = vld [vmem:[%s1 + $0x44] sm:$0xf]
      %v255 = vld [vmem:[%s1 + $0x48] sm:$0xf]
      %v256 = vld [vmem:[%s1 + $0x4c] sm:$0xf]
      %v257 = vld [vmem:[%s1 + $0x50] sm:$0xf]
      %v258 = vld [vmem:[%s1 + $0x54] sm:$0xf]
      %v259 = vld [vmem:[%s1 + $0x58] sm:$0xf]
      %v260 = vld [vmem:[%s1 + $0x5c] sm:$0xf]
      %v261 = vld [vmem:[%s1 + $0x60] sm:$0xf]
      %v262 = vld [vmem:[%s1 + $0x64] sm:$0xf]
      %v263 = vld [vmem:[%s1 + $0x68] sm:$0xf]
      %v264 = vld [vmem:[%s1 + $0x6c] sm:$0xf]
      %v265 = vld [vmem:[%s1 + $0x70] sm:$0xf]
      %v266 = vld [vmem:[%s1 + $0x74] sm:$0xf]
      %v267 = vld [vmem:[%s1 + $0x78] sm:$0xf]
      %v268 = vld [vmem:[%s1 + $0x7c] sm:$0xf]
      %v269 = vld [vmem:[%s2] sm:$0x1]
      %v271 = vlaneseq
      %v272 = vshrl.u32 %v271, 7
      %v273 = vsub.s32 0, %v272
      %v274 = vrot.slane %v269, %v273
      %v308 = vunpack.c.l.b16 %v205
      %v309 = vunpack.c.h.b16 %v205
      %v310 = vunpack.c.l.b16 %v206
      %v311 = vunpack.c.h.b16 %v206
      %v312 = vunpack.c.l.b16 %v207
      %v313 = vunpack.c.h.b16 %v207
      %v314 = vunpack.c.l.b16 %v208
      %v315 = vunpack.c.h.b16 %v208
      %v316 = vunpack.c.l.b16 %v209
      %v317 = vunpack.c.h.b16 %v209
      %v318 = vunpack.c.l.b16 %v210
      %v319 = vunpack.c.h.b16 %v210
      %v320 = vunpack.c.l.b16 %v211
      %v321 = vunpack.c.h.b16 %v211
      %v322 = vunpack.c.l.b16 %v212
      %v323 = vunpack.c.h.b16 %v212
      %v324 = vunpack.c.l.b16 %v213
      %v325 = vunpack.c.h.b16 %v213
      %v326 = vunpack.c.l.b16 %v214
      %v327 = vunpack.c.h.b16 %v214
      %v328 = vunpack.c.l.b16 %v215
      %v329 = vunpack.c.h.b16 %v215
      %v330 = vunpack.c.l.b16 %v216
      %v331 = vunpack.c.h.b16 %v216
      %v332 = vunpack.c.l.b16 %v217
      %v333 = vunpack.c.h.b16 %v217
      %v334 = vunpack.c.l.b16 %v218
      %v335 = vunpack.c.h.b16 %v218
      %v336 = vunpack.c.l.b16 %v219
      %v337 = vunpack.c.h.b16 %v219
      %v338 = vunpack.c.l.b16 %v220
      %v339 = vunpack.c.h.b16 %v220
      %v340 = vunpack.c.l.b16 %v221
      %v341 = vunpack.c.h.b16 %v221
      %v342 = vunpack.c.l.b16 %v222
      %v343 = vunpack.c.h.b16 %v222
      %v344 = vunpack.c.l.b16 %v223
      %v345 = vunpack.c.h.b16 %v223
      %v346 = vunpack.c.l.b16 %v224
      %v347 = vunpack.c.h.b16 %v224
      %v348 = vunpack.c.l.b16 %v225
      %v349 = vunpack.c.h.b16 %v225
      %v350 = vunpack.c.l.b16 %v226
      %v351 = vunpack.c.h.b16 %v226
      %v352 = vunpack.c.l.b16 %v227
      %v353 = vunpack.c.h.b16 %v227
      %v354 = vunpack.c.l.b16 %v228
      %v355 = vunpack.c.h.b16 %v228
      %v356 = vunpack.c.l.b16 %v229
      %v357 = vunpack.c.h.b16 %v229
      %v358 = vunpack.c.l.b16 %v230
      %v359 = vunpack.c.h.b16 %v230
      %v360 = vunpack.c.l.b16 %v231
      %v361 = vunpack.c.h.b16 %v231
      %v362 = vunpack.c.l.b16 %v232
      %v363 = vunpack.c.h.b16 %v232
      %v364 = vunpack.c.l.b16 %v233
      %v365 = vunpack.c.h.b16 %v233
      %v366 = vunpack.c.l.b16 %v234
      %v367 = vunpack.c.h.b16 %v234
      %v368 = vunpack.c.l.b16 %v235
      %v369 = vunpack.c.h.b16 %v235
      %v370 = vunpack.c.l.b16 %v236
      %v371 = vunpack.c.h.b16 %v236
      %v372 = vpack.c.b16 %v310, %v308
      %v373 = vpack.c.b16 %v311, %v309
      %v374 = vpack.c.b16 %v314, %v312
      %v375 = vpack.c.b16 %v315, %v313
      %v376 = vpack.c.b16 %v318, %v316
      %v377 = vpack.c.b16 %v319, %v317
      %v378 = vpack.c.b16 %v322, %v320
      %v379 = vpack.c.b16 %v323, %v321
      %v380 = vpack.c.b16 %v326, %v324
      %v381 = vpack.c.b16 %v327, %v325
      %v382 = vpack.c.b16 %v330, %v328
      %v383 = vpack.c.b16 %v331, %v329
      %v384 = vpack.c.b16 %v334, %v332
      %v385 = vpack.c.b16 %v335, %v333
      %v386 = vpack.c.b16 %v338, %v336
      %v387 = vpack.c.b16 %v339, %v337
      %v388 = vpack.c.b16 %v342, %v340
      %v389 = vpack.c.b16 %v343, %v341
      %v390 = vpack.c.b16 %v346, %v344
      %v391 = vpack.c.b16 %v347, %v345
      %v392 = vpack.c.b16 %v350, %v348
      %v393 = vpack.c.b16 %v351, %v349
      %v394 = vpack.c.b16 %v354, %v352
      %v395 = vpack.c.b16 %v355, %v353
      %v396 = vpack.c.b16 %v358, %v356
      %v397 = vpack.c.b16 %v359, %v357
      %v398 = vpack.c.b16 %v362, %v360
      %v399 = vpack.c.b16 %v363, %v361
      %v400 = vpack.c.b16 %v366, %v364
      %v401 = vpack.c.b16 %v367, %v365
      %v402 = vpack.c.b16 %v370, %v368
      %v403 = vpack.c.b16 %v371, %v369
      %v468 = vunpack.c.l.b16 %v237
      %v469 = vunpack.c.l.b16 %v238
      %v470 = vunpack.c.l.b16 %v239
      %v471 = vunpack.c.l.b16 %v240
      %v472 = vunpack.c.l.b16 %v241
      %v473 = vunpack.c.l.b16 %v242
      %v474 = vunpack.c.l.b16 %v243
      %v475 = vunpack.c.l.b16 %v244
      %v476 = vunpack.c.l.b16 %v245
      %v477 = vunpack.c.l.b16 %v246
      %v478 = vunpack.c.l.b16 %v247
      %v479 = vunpack.c.l.b16 %v248
      %v480 = vunpack.c.l.b16 %v249
      %v481 = vunpack.c.l.b16 %v250
      %v482 = vunpack.c.l.b16 %v251
      %v483 = vunpack.c.l.b16 %v252
      %v484 = vunpack.c.l.b16 %v253
      %v485 = vunpack.c.l.b16 %v254
      %v486 = vunpack.c.l.b16 %v255
      %v487 = vunpack.c.l.b16 %v256
      %v488 = vunpack.c.l.b16 %v257
      %v489 = vunpack.c.l.b16 %v258
      %v490 = vunpack.c.l.b16 %v259
      %v491 = vunpack.c.l.b16 %v260
      %v492 = vunpack.c.l.b16 %v261
      %v493 = vunpack.c.l.b16 %v262
      %v494 = vunpack.c.l.b16 %v263
      %v495 = vunpack.c.l.b16 %v264
      %v496 = vunpack.c.l.b16 %v265
      %v497 = vunpack.c.l.b16 %v266
      %v498 = vunpack.c.l.b16 %v267
      %v499 = vunpack.c.l.b16 %v268
      %v500 = vpack.c.b16 %v469, %v468
      %v501 = vpack.c.b16 %v471, %v470
      %v502 = vpack.c.b16 %v473, %v472
      %v503 = vpack.c.b16 %v475, %v474
      %v504 = vpack.c.b16 %v477, %v476
      %v505 = vpack.c.b16 %v479, %v478
      %v506 = vpack.c.b16 %v481, %v480
      %v507 = vpack.c.b16 %v483, %v482
      %v508 = vpack.c.b16 %v485, %v484
      %v509 = vpack.c.b16 %v487, %v486
      %v510 = vpack.c.b16 %v489, %v488
      %v511 = vpack.c.b16 %v491, %v490
      %v512 = vpack.c.b16 %v493, %v492
      %v513 = vpack.c.b16 %v495, %v494
      %v514 = vpack.c.b16 %v497, %v496
      %v515 = vpack.c.b16 %v499, %v498
      %532 = vmatprep.subr.bf16.mxu0 0
      %533 = vmatpush1.bf16.msra.mxu0 %v507
      %534 = vmatprep.subr.bf16.mxu0 0
      %535 = vmatpush1.bf16.msra.mxu0 %v506
      %536 = vmatprep.subr.bf16.mxu0 0
      %537 = vmatpush1.bf16.msra.mxu0 %v505
      %538 = vmatprep.subr.bf16.mxu0 0
      %539 = vmatpush1.bf16.msra.mxu0 %v504
      %540 = vmatprep.subr.bf16.mxu0 0
      %541 = vmatpush1.bf16.msra.mxu0 %v503
      %542 = vmatprep.subr.bf16.mxu0 0
      %543 = vmatpush1.bf16.msra.mxu0 %v502
      %544 = vmatprep.subr.bf16.mxu0 0
      %545 = vmatpush1.bf16.msra.mxu0 %v501
      %546 = vmatprep.subr.bf16.mxu0 0
      %547 = vmatpush1.bf16.msra.mxu0 %v500
      %548 = vmatprep.subr.bf16.mxu0 0
      %549 = vmatpush2.bf16.msra.mxu0 %v515
      %550 = vmatprep.subr.bf16.mxu0 0
      %551 = vmatpush2.bf16.msra.mxu0 %v514
      %552 = vmatprep.subr.bf16.mxu0 0
      %553 = vmatpush2.bf16.msra.mxu0 %v513
      %554 = vmatprep.subr.bf16.mxu0 0
      %555 = vmatpush2.bf16.msra.mxu0 %v512
      %556 = vmatprep.subr.bf16.mxu0 0
      %557 = vmatpush2.bf16.msra.mxu0 %v511
      %558 = vmatprep.subr.bf16.mxu0 0
      %559 = vmatpush2.bf16.msra.mxu0 %v510
      %560 = vmatprep.subr.bf16.mxu0 0
      %561 = vmatpush2.bf16.msra.mxu0 %v509
      %562 = vmatprep.subr.bf16.mxu0 0
      %563 = vmatpush2.bf16.msra.mxu0 %v508
      %564 = vmatprep.mubr.bf16.mxu0 %v373
      %565 = vmatmul.mubr.bf16.gmra.mxu0 %v372
      %v566 = vpop.f32.mrf.mxu0
      %v567 = vadd.f32 %v274, %v566
      %v568 = vpop.f32.mrf.mxu0
      %v569 = vpop.f32.mrf.mxu0
      %v570 = vadd.f32 %v274, %v569
      %v571 = vpop.f32.mrf.mxu0
      %572 = vmatprep.mubr.bf16.mxu0 %v375
      %573 = vmatmul.mubr.bf16.gmra.mxu0 %v374
      %v574 = vpop.f32.mrf.mxu0
      %v575 = vadd.f32 %v274, %v574
      %v576 = vpop.f32.mrf.mxu0
      %v577 = vpop.f32.mrf.mxu0
      %v578 = vadd.f32 %v274, %v577
      %v579 = vpop.f32.mrf.mxu0
      %580 = vmatprep.mubr.bf16.mxu0 %v377
      %581 = vmatmul.mubr.bf16.gmra.mxu0 %v376
      %v582 = vpop.f32.mrf.mxu0
      %v583 = vadd.f32 %v274, %v582
      %v584 = vpop.f32.mrf.mxu0
      %v585 = vpop.f32.mrf.mxu0
      %v586 = vadd.f32 %v274, %v585
      %v587 = vpop.f32.mrf.mxu0
      %588 = vmatprep.mubr.bf16.mxu0 %v379
      %589 = vmatmul.mubr.bf16.gmra.mxu0 %v378
      %v590 = vpop.f32.mrf.mxu0
      %v591 = vadd.f32 %v274, %v590
      %v592 = vpop.f32.mrf.mxu0
      %v593 = vpop.f32.mrf.mxu0
      %v594 = vadd.f32 %v274, %v593
      %v595 = vpop.f32.mrf.mxu0
      %596 = vmatprep.mubr.bf16.mxu0 %v381
      %597 = vmatmul.mubr.bf16.gmra.mxu0 %v380
      %v598 = vpop.f32.mrf.mxu0
      %v599 = vadd.f32 %v274, %v598
      %v600 = vpop.f32.mrf.mxu0
      %v601 = vpop.f32.mrf.mxu0
      %v602 = vadd.f32 %v274, %v601
      %v603 = vpop.f32.mrf.mxu0
      %604 = vmatprep.mubr.bf16.mxu0 %v383
      %605 = vmatmul.mubr.bf16.gmra.mxu0 %v382
      %v606 = vpop.f32.mrf.mxu0
      %v607 = vadd.f32 %v274, %v606
      %v608 = vpop.f32.mrf.mxu0
      %v609 = vpop.f32.mrf.mxu0
      %v610 = vadd.f32 %v274, %v609
      %v611 = vpop.f32.mrf.mxu0
      %612 = vmatprep.mubr.bf16.mxu0 %v385
      %613 = vmatmul.mubr.bf16.gmra.mxu0 %v384
      %v614 = vpop.f32.mrf.mxu0
      %v615 = vadd.f32 %v274, %v614
      %v616 = vpop.f32.mrf.mxu0
      %v617 = vpop.f32.mrf.mxu0
      %v618 = vadd.f32 %v274, %v617
      %v619 = vpop.f32.mrf.mxu0
      %620 = vmatprep.mubr.bf16.mxu0 %v387
      %621 = vmatmul.mubr.bf16.gmra.mxu0 %v386
      %v622 = vpop.f32.mrf.mxu0
      %v623 = vadd.f32 %v274, %v622
      %v624 = vpop.f32.mrf.mxu0
      %v625 = vpop.f32.mrf.mxu0
      %v626 = vadd.f32 %v274, %v625
      %v627 = vpop.f32.mrf.mxu0
      %628 = vmatprep.mubr.bf16.mxu0 %v389
      %629 = vmatmul.mubr.bf16.gmra.mxu0 %v388
      %v630 = vpop.f32.mrf.mxu0
      %v631 = vadd.f32 %v274, %v630
      %v632 = vpop.f32.mrf.mxu0
      %v633 = vpop.f32.mrf.mxu0
      %v634 = vadd.f32 %v274, %v633
      %v635 = vpop.f32.mrf.mxu0
      %636 = vmatprep.mubr.bf16.mxu0 %v391
      %637 = vmatmul.mubr.bf16.gmra.mxu0 %v390
      %v638 = vpop.f32.mrf.mxu0
      %v639 = vadd.f32 %v274, %v638
      %v640 = vpop.f32.mrf.mxu0
      %v641 = vpop.f32.mrf.mxu0
      %v642 = vadd.f32 %v274, %v641
      %v643 = vpop.f32.mrf.mxu0
      %644 = vmatprep.mubr.bf16.mxu0 %v393
      %645 = vmatmul.mubr.bf16.gmra.mxu0 %v392
      %v646 = vpop.f32.mrf.mxu0
      %v647 = vadd.f32 %v274, %v646
      %v648 = vpop.f32.mrf.mxu0
      %v649 = vpop.f32.mrf.mxu0
      %v650 = vadd.f32 %v274, %v649
      %v651 = vpop.f32.mrf.mxu0
      %652 = vmatprep.mubr.bf16.mxu0 %v395
      %653 = vmatmul.mubr.bf16.gmra.mxu0 %v394
      %v654 = vpop.f32.mrf.mxu0
      %v655 = vadd.f32 %v274, %v654
      %v656 = vpop.f32.mrf.mxu0
      %v657 = vpop.f32.mrf.mxu0
      %v658 = vadd.f32 %v274, %v657
      %v659 = vpop.f32.mrf.mxu0
      %660 = vmatprep.mubr.bf16.mxu0 %v397
      %661 = vmatmul.mubr.bf16.gmra.mxu0 %v396
      %v662 = vpop.f32.mrf.mxu0
      %v663 = vadd.f32 %v274, %v662
      %v664 = vpop.f32.mrf.mxu0
      %v665 = vpop.f32.mrf.mxu0
      %v666 = vadd.f32 %v274, %v665
      %v667 = vpop.f32.mrf.mxu0
      %668 = vmatprep.mubr.bf16.mxu0 %v399
      %669 = vmatmul.mubr.bf16.gmra.mxu0 %v398
      %v670 = vpop.f32.mrf.mxu0
      %v671 = vadd.f32 %v274, %v670
      %v672 = vpop.f32.mrf.mxu0
      %v673 = vpop.f32.mrf.mxu0
      %v674 = vadd.f32 %v274, %v673
      %v675 = vpop.f32.mrf.mxu0
      %676 = vmatprep.mubr.bf16.mxu0 %v401
      %677 = vmatmul.mubr.bf16.gmra.mxu0 %v400
      %v678 = vpop.f32.mrf.mxu0
      %v679 = vadd.f32 %v274, %v678
      %v680 = vpop.f32.mrf.mxu0
      %v681 = vpop.f32.mrf.mxu0
      %v682 = vadd.f32 %v274, %v681
      %v683 = vpop.f32.mrf.mxu0
      %684 = vmatprep.mubr.bf16.mxu0 %v403
      %685 = vmatmul.mubr.bf16.gmra.mxu0 %v402
      %v686 = vpop.f32.mrf.mxu0
      %v687 = vadd.f32 %v274, %v686
      %v688 = vpop.f32.mrf.mxu0
      %v689 = vpop.f32.mrf.mxu0
      %v690 = vadd.f32 %v274, %v689
      %v691 = vpop.f32.mrf.mxu0
      %692 = vdwg.mxu0
      %v693 = vld [vmem:[%s3] sm:$0x1]
      %vm694 = vcmp.ge.f32.partialorder %v567, 0.0
      %vm695 = vcmp.ge.f32.partialorder %v570, 0.0
      %vm696 = vcmp.ge.f32.partialorder %v575, 0.0
      %vm697 = vcmp.ge.f32.partialorder %v578, 0.0
      %vm698 = vcmp.ge.f32.partialorder %v583, 0.0
      %vm699 = vcmp.ge.f32.partialorder %v586, 0.0
      %vm700 = vcmp.ge.f32.partialorder %v591, 0.0
      %vm701 = vcmp.ge.f32.partialorder %v594, 0.0
      %vm702 = vcmp.ge.f32.partialorder %v599, 0.0
      %vm703 = vcmp.ge.f32.partialorder %v602, 0.0
      %vm704 = vcmp.ge.f32.partialorder %v607, 0.0
      %vm705 = vcmp.ge.f32.partialorder %v610, 0.0
      %vm706 = vcmp.ge.f32.partialorder %v615, 0.0
      %vm707 = vcmp.ge.f32.partialorder %v618, 0.0
      %vm708 = vcmp.ge.f32.partialorder %v623, 0.0
      %vm709 = vcmp.ge.f32.partialorder %v626, 0.0
      %vm710 = vcmp.ge.f32.partialorder %v631, 0.0
      %vm711 = vcmp.ge.f32.partialorder %v634, 0.0
      %vm712 = vcmp.ge.f32.partialorder %v639, 0.0
      %vm713 = vcmp.ge.f32.partialorder %v642, 0.0
      %vm714 = vcmp.ge.f32.partialorder %v647, 0.0
      %vm715 = vcmp.ge.f32.partialorder %v650, 0.0
      %vm716 = vcmp.ge.f32.partialorder %v655, 0.0
      %vm717 = vcmp.ge.f32.partialorder %v658, 0.0
      %vm718 = vcmp.ge.f32.partialorder %v663, 0.0
      %vm719 = vcmp.ge.f32.partialorder %v666, 0.0
      %vm720 = vcmp.ge.f32.partialorder %v671, 0.0
      %vm721 = vcmp.ge.f32.partialorder %v674, 0.0
      %vm722 = vcmp.ge.f32.partialorder %v679, 0.0
      %vm723 = vcmp.ge.f32.partialorder %v682, 0.0
      %vm724 = vcmp.ge.f32.partialorder %v687, 0.0
      %vm725 = vcmp.ge.f32.partialorder %v690, 0.0
      %v727 = vlaneseq
      %v728 = vshrl.u32 %v727, 7
      %v729 = vsub.s32 0, %v728
      %v730 = vrot.slane %v693, %v729
      %v732 = vmul.f32 %v730, %v567
      %v733 = vmul.f32 %v730, %v570
      %v734 = vmul.f32 %v730, %v575
      %v735 = vmul.f32 %v730, %v578
      %v736 = vmul.f32 %v730, %v583
      %v737 = vmul.f32 %v730, %v586
      %v738 = vmul.f32 %v730, %v591
      %v739 = vmul.f32 %v730, %v594
      %v740 = vmul.f32 %v730, %v599
      %v741 = vmul.f32 %v730, %v602
      %v742 = vmul.f32 %v730, %v607
      %v743 = vmul.f32 %v730, %v610
      %v744 = vmul.f32 %v730, %v615
      %v745 = vmul.f32 %v730, %v618
      %v746 = vmul.f32 %v730, %v623
      %v747 = vmul.f32 %v730, %v626
      %v748 = vmul.f32 %v730, %v631
      %v749 = vmul.f32 %v730, %v634
      %v750 = vmul.f32 %v730, %v639
      %v751 = vmul.f32 %v730, %v642
      %v752 = vmul.f32 %v730, %v647
      %v753 = vmul.f32 %v730, %v650
      %v754 = vmul.f32 %v730, %v655
      %v755 = vmul.f32 %v730, %v658
      %v756 = vmul.f32 %v730, %v663
      %v757 = vmul.f32 %v730, %v666
      %v758 = vmul.f32 %v730, %v671
      %v759 = vmul.f32 %v730, %v674
      %v760 = vmul.f32 %v730, %v679
      %v761 = vmul.f32 %v730, %v682
      %v762 = vmul.f32 %v730, %v687
      %v763 = vmul.f32 %v730, %v690
      %v764 = vsel %vm694, %v567, %v732
      %v765 = vsel %vm695, %v570, %v733
      %v766 = vsel %vm696, %v575, %v734
      %v767 = vsel %vm697, %v578, %v735
      %v768 = vsel %vm698, %v583, %v736
      %v769 = vsel %vm699, %v586, %v737
      %v770 = vsel %vm700, %v591, %v738
      %v771 = vsel %vm701, %v594, %v739
      %v772 = vsel %vm702, %v599, %v740
      %v773 = vsel %vm703, %v602, %v741
      %v774 = vsel %vm704, %v607, %v742
      %v775 = vsel %vm705, %v610, %v743
      %v776 = vsel %vm706, %v615, %v744
      %v777 = vsel %vm707, %v618, %v745
      %v778 = vsel %vm708, %v623, %v746
      %v779 = vsel %vm709, %v626, %v747
      %v780 = vsel %vm710, %v631, %v748
      %v781 = vsel %vm711, %v634, %v749
      %v782 = vsel %vm712, %v639, %v750
      %v783 = vsel %vm713, %v642, %v751
      %v784 = vsel %vm714, %v647, %v752
      %v785 = vsel %vm715, %v650, %v753
      %v786 = vsel %vm716, %v655, %v754
      %v787 = vsel %vm717, %v658, %v755
      %v788 = vsel %vm718, %v663, %v756
      %v789 = vsel %vm719, %v666, %v757
      %v790 = vsel %vm720, %v671, %v758
      %v791 = vsel %vm721, %v674, %v759
      %v792 = vsel %vm722, %v679, %v760
      %v793 = vsel %vm723, %v682, %v761
      %v794 = vsel %vm724, %v687, %v762
      %v795 = vsel %vm725, %v690, %v763
      %v796 = vpack.c.bf16 %v765, %v764
      %v797 = vpack.c.bf16 %v767, %v766
      %v798 = vpack.c.bf16 %v769, %v768
      %v799 = vpack.c.bf16 %v771, %v770
      %v800 = vpack.c.bf16 %v773, %v772
      %v801 = vpack.c.bf16 %v775, %v774
      %v802 = vpack.c.bf16 %v777, %v776
      %v803 = vpack.c.bf16 %v779, %v778
      %v804 = vpack.c.bf16 %v781, %v780
      %v805 = vpack.c.bf16 %v783, %v782
      %v806 = vpack.c.bf16 %v785, %v784
      %v807 = vpack.c.bf16 %v787, %v786
      %v808 = vpack.c.bf16 %v789, %v788
      %v809 = vpack.c.bf16 %v791, %v790
      %v810 = vpack.c.bf16 %v793, %v792
      %v811 = vpack.c.bf16 %v795, %v794
      %v828 = vunpack.c.l.b16 %v796
      %v829 = vunpack.c.h.b16 %v796
      %v830 = vunpack.c.l.b16 %v797
      %v831 = vunpack.c.h.b16 %v797
      %v832 = vunpack.c.l.b16 %v798
      %v833 = vunpack.c.h.b16 %v798
      %v834 = vunpack.c.l.b16 %v799
      %v835 = vunpack.c.h.b16 %v799
      %v836 = vunpack.c.l.b16 %v800
      %v837 = vunpack.c.h.b16 %v800
      %v838 = vunpack.c.l.b16 %v801
      %v839 = vunpack.c.h.b16 %v801
      %v840 = vunpack.c.l.b16 %v802
      %v841 = vunpack.c.h.b16 %v802
      %v842 = vunpack.c.l.b16 %v803
      %v843 = vunpack.c.h.b16 %v803
      %v844 = vunpack.c.l.b16 %v804
      %v845 = vunpack.c.h.b16 %v804
      %v846 = vunpack.c.l.b16 %v805
      %v847 = vunpack.c.h.b16 %v805
      %v848 = vunpack.c.l.b16 %v806
      %v849 = vunpack.c.h.b16 %v806
      %v850 = vunpack.c.l.b16 %v807
      %v851 = vunpack.c.h.b16 %v807
      %v852 = vunpack.c.l.b16 %v808
      %v853 = vunpack.c.h.b16 %v808
      %v854 = vunpack.c.l.b16 %v809
      %v855 = vunpack.c.h.b16 %v809
      %v856 = vunpack.c.l.b16 %v810
      %v857 = vunpack.c.h.b16 %v810
      %v858 = vunpack.c.l.b16 %v811
      %v859 = vunpack.c.h.b16 %v811
      %v860 = vpack.c.b16 %v828, %v828
      %v861 = vpack.c.b16 %v829, %v829
      %v862 = vpack.c.b16 %v830, %v830
      %v863 = vpack.c.b16 %v831, %v831
      %v864 = vpack.c.b16 %v832, %v832
      %v865 = vpack.c.b16 %v833, %v833
      %v866 = vpack.c.b16 %v834, %v834
      %v867 = vpack.c.b16 %v835, %v835
      %v868 = vpack.c.b16 %v836, %v836
      %v869 = vpack.c.b16 %v837, %v837
      %v870 = vpack.c.b16 %v838, %v838
      %v871 = vpack.c.b16 %v839, %v839
      %v872 = vpack.c.b16 %v840, %v840
      %v873 = vpack.c.b16 %v841, %v841
      %v874 = vpack.c.b16 %v842, %v842
      %v875 = vpack.c.b16 %v843, %v843
      %v876 = vpack.c.b16 %v844, %v844
      %v877 = vpack.c.b16 %v845, %v845
      %v878 = vpack.c.b16 %v846, %v846
      %v879 = vpack.c.b16 %v847, %v847
      %v880 = vpack.c.b16 %v848, %v848
      %v881 = vpack.c.b16 %v849, %v849
      %v882 = vpack.c.b16 %v850, %v850
      %v883 = vpack.c.b16 %v851, %v851
      %v884 = vpack.c.b16 %v852, %v852
      %v885 = vpack.c.b16 %v853, %v853
      %v886 = vpack.c.b16 %v854, %v854
      %v887 = vpack.c.b16 %v855, %v855
      %v888 = vpack.c.b16 %v856, %v856
      %v889 = vpack.c.b16 %v857, %v857
      %v890 = vpack.c.b16 %v858, %v858
      %v891 = vpack.c.b16 %v859, %v859
      %924 = vst [vmem:[%s202] sm:$0xf] %v860
      %925 = vst [vmem:[%s202 + $0x4] sm:$0xf] %v861
      %926 = vst [vmem:[%s202 + $0x8] sm:$0xf] %v862
      %927 = vst [vmem:[%s202 + $0xc] sm:$0xf] %v863
      %928 = vst [vmem:[%s202 + $0x10] sm:$0xf] %v864
      %929 = vst [vmem:[%s202 + $0x14] sm:$0xf] %v865
      %930 = vst [vmem:[%s202 + $0x18] sm:$0xf] %v866
      %931 = vst [vmem:[%s202 + $0x1c] sm:$0xf] %v867
      %932 = vst [vmem:[%s202 + $0x20] sm:$0xf] %v868
      %933 = vst [vmem:[%s202 + $0x24] sm:$0xf] %v869
      %934 = vst [vmem:[%s202 + $0x28] sm:$0xf] %v870
      %935 = vst [vmem:[%s202 + $0x2c] sm:$0xf] %v871
      %936 = vst [vmem:[%s202 + $0x30] sm:$0xf] %v872
      %937 = vst [vmem:[%s202 + $0x34] sm:$0xf] %v873
      %938 = vst [vmem:[%s202 + $0x38] sm:$0xf] %v874
      %939 = vst [vmem:[%s202 + $0x3c] sm:$0xf] %v875
      %940 = vst [vmem:[%s202 + $0x40] sm:$0xf] %v876
      %941 = vst [vmem:[%s202 + $0x44] sm:$0xf] %v877
      %942 = vst [vmem:[%s202 + $0x48] sm:$0xf] %v878
      %943 = vst [vmem:[%s202 + $0x4c] sm:$0xf] %v879
      %944 = vst [vmem:[%s202 + $0x50] sm:$0xf] %v880
      %945 = vst [vmem:[%s202 + $0x54] sm:$0xf] %v881
      %946 = vst [vmem:[%s202 + $0x58] sm:$0xf] %v882
      %947 = vst [vmem:[%s202 + $0x5c] sm:$0xf] %v883
      %948 = vst [vmem:[%s202 + $0x60] sm:$0xf] %v884
      %949 = vst [vmem:[%s202 + $0x64] sm:$0xf] %v885
      %950 = vst [vmem:[%s202 + $0x68] sm:$0xf] %v886
      %951 = vst [vmem:[%s202 + $0x6c] sm:$0xf] %v887
      %952 = vst [vmem:[%s202 + $0x70] sm:$0xf] %v888
      %953 = vst [vmem:[%s202 + $0x74] sm:$0xf] %v889
      %954 = vst [vmem:[%s202 + $0x78] sm:$0xf] %v890
      %955 = vst [vmem:[%s202 + $0x7c] sm:$0xf] %v891
      %s956 = smul.u32 32, %s15
      %p957 = scmp.lt.s32.totalorder %s956, 63
      %s958 = scalar_select %p957, %s956, 63
      %s959 = smul.addr %s958, 4
      %s960 = scalar_lea.vmem %s4, %s959
      // Predicated region
      $region37: #{if_block_forward.12} parent=35 // pred_check
        %p961 = pneg %p122
      $region38: #{if_block_forward.12} parent=35 // pred_check_branch
        %963 = sbr.rel (%p961) target = $region40
      $region39: #{if_block_forward.12} parent=35 // pred_region
        %s964 = smul.u32 32, %s15
      $region40: #{if_block_forward.12} parent=35 // pred_fallthru
        _
    $region36: #{if_block_forward.12} parent=5 // pred_fallthru
      _
    %p965 = scmp.le.s32.totalorder 2, %s10
    // Predicated region
    $region41: #{if_block_forward.12} parent=5 // pred_check
      %p966 = pneg %p965
    $region42: #{if_block_forward.12} parent=5 // pred_check_branch
      %968 = sbr.rel (%p966) target = $region44
    $region43: #{if_block_forward.12} parent=5 // pred_region
      %s969 = ssub.s32 %s10, 2
      // Predicated region
      $region45: #{if_block_forward.12} parent=43 // pred_check
        %p970 = pneg %p128
      $region46: #{if_block_forward.12} parent=43 // pred_check_branch
        %972 = sbr.rel (%p970) target = $region48
      $region47: #{if_block_forward.12} parent=43 // pred_region
        %s973 = smul.u32 32, %s16
        %p974 = scmp.lt.s32.totalorder %s973, 63
        %s975 = scalar_select %p974, %s973, 63
        %s976 = smul.addr %s975, 4
        %s977 = scalar_lea.vmem %s4, %s976
      $region48: #{if_block_forward.12} parent=43 // pred_fallthru
        _
    $region44: #{if_block_forward.12} parent=5 // pred_fallthru
      _
  $region6: #{if_block_forward.12} parent=0 // loop_footer
    %s14 = sadd.s32 1, %s10
  $region7: #{if_block_forward.12} parent=0 // loop_footer_branch
    %9 = sbr.rel target = $region3
  $region8: #{if_block_forward.12} parent=0 // loop_exit
    _

// kernel: if_block_forward.13
$region0: #{if_block_forward.13}
  #allocation0 [shape = 'u32[]', space=smem, size = 0x4, offset = 0x4, fixed_abs, tag = 'smem constant byte address 0x4 - core index']
  #allocation1 [shape = 'u32[144,128]{1,0:T(1,128)}', space=vmem, size = 0x12000, scoped, tag = 'internal scratch']
  %s0 = inlined_call_operand.vmem [shape: bf16[64,512], index: 0, kind: input, shape index: {}]
  %s1 = inlined_call_operand.vmem [shape: bf16[512,128], index: 1, kind: input, shape index: {}]
  %s2 = inlined_call_operand.vmem [shape: f32[1,128], index: 2, kind: input, shape index: {}]
  %s3 = inlined_call_operand.vmem [shape: f32[1,128], index: 3, kind: input, shape index: {}]
  %s4 = inlined_call_operand.vmem [shape: bf16[64,128], index: 4, kind: output, shape index: {}]
  %s5 = sld [smem:[#allocation0]]
  $region26: #{if_block_forward.13} parent=0
    _
  %s7 = ssub.s32 1, %s5
  %s8 = scalar_select 0, %s7, %s5
  // Predicated region
  $region2: #{if_block_forward.13} parent=0 // pred_check
    _
  $region3: #{if_block_forward.13} parent=0 // pred_check_branch
    %10 = sbr.rel (0) target = $region5
  $region4: #{if_block_forward.13} parent=0 // pred_region
    _
  $region5: #{if_block_forward.13} parent=0 // pred_fallthru
    _
  // Predicated region
  $region6: #{if_block_forward.13} parent=0 // pred_check
    _
  $region7: #{if_block_forward.13} parent=0 // pred_check_branch
    %12 = sbr.rel (0) target = $region9
  $region8: #{if_block_forward.13} parent=0 // pred_region
    _
  $region9: #{if_block_forward.13} parent=0 // pred_fallthru
    _
  // Predicated region
  $region10: #{if_block_forward.13} parent=0 // pred_check
    _
  $region11: #{if_block_forward.13} parent=0 // pred_check_branch
    %14 = sbr.rel (0) target = $region13
  $region12: #{if_block_forward.13} parent=0 // pred_region
    _
  $region13: #{if_block_forward.13} parent=0 // pred_fallthru
    _
  // Predicated region
  $region14: #{if_block_forward.13} parent=0 // pred_check
    _
  $region15: #{if_block_forward.13} parent=0 // pred_check_branch
    %16 = sbr.rel (0) target = $region17
  $region16: #{if_block_forward.13} parent=0 // pred_region
    _
  $region17: #{if_block_forward.13} parent=0 // pred_fallthru
    _
  %v18 = vld [vmem:[%s0] sm:$0xff]
  %v19 = vld [vmem:[%s0 + $0x8] sm:$0xff]
  %v20 = vld [vmem:[%s0 + $0x10] sm:$0xff]
  %v21 = vld [vmem:[%s0 + $0x18] sm:$0xff]
  %v22 = vld [vmem:[%s0 + $0x20] sm:$0xff]
  %v23 = vld [vmem:[%s0 + $0x28] sm:$0xff]
  %v24 = vld [vmem:[%s0 + $0x30] sm:$0xff]
  %v25 = vld [vmem:[%s0 + $0x38] sm:$0xff]
  %v26 = vld [vmem:[%s0 + $0x40] sm:$0xff]
  %v27 = vld [vmem:[%s0 + $0x48] sm:$0xff]
  %v28 = vld [vmem:[%s0 + $0x50] sm:$0xff]
  %v29 = vld [vmem:[%s0 + $0x58] sm:$0xff]
  %v30 = vld [vmem:[%s0 + $0x60] sm:$0xff]
  %v31 = vld [vmem:[%s0 + $0x68] sm:$0xff]
  %v32 = vld [vmem:[%s0 + $0x70] sm:$0xff]
  %v33 = vld [vmem:[%s0 + $0x78] sm:$0xff]
  %v34 = vld [vmem:[%s1] sm:$0xf]
  %v35 = vld [vmem:[%s1 + $0x4] sm:$0xf]
  %v36 = vld [vmem:[%s1 + $0x8] sm:$0xf]
  %v37 = vld [vmem:[%s1 + $0xc] sm:$0xf]
  %v38 = vld [vmem:[%s1 + $0x10] sm:$0xf]
  %v39 = vld [vmem:[%s1 + $0x14] sm:$0xf]
  %v40 = vld [vmem:[%s1 + $0x18] sm:$0xf]
  %v41 = vld [vmem:[%s1 + $0x1c] sm:$0xf]
  %v42 = vld [vmem:[%s1 + $0x20] sm:$0xf]
  %v43 = vld [vmem:[%s1 + $0x24] sm:$0xf]
  %v44 = vld [vmem:[%s1 + $0x28] sm:$0xf]
  %v45 = vld [vmem:[%s1 + $0x2c] sm:$0xf]
  %v46 = vld [vmem:[%s1 + $0x30] sm:$0xf]
  %v47 = vld [vmem:[%s1 + $0x34] sm:$0xf]
  %v48 = vld [vmem:[%s1 + $0x38] sm:$0xf]
  %v49 = vld [vmem:[%s1 + $0x3c] sm:$0xf]
  %v50 = vld [vmem:[%s1 + $0x40] sm:$0xf]
  %v51 = vld [vmem:[%s1 + $0x44] sm:$0xf]
  %v52 = vld [vmem:[%s1 + $0x48] sm:$0xf]
  %v53 = vld [vmem:[%s1 + $0x4c] sm:$0xf]
  %v54 = vld [vmem:[%s1 + $0x50] sm:$0xf]
  %v55 = vld [vmem:[%s1 + $0x54] sm:$0xf]
  %v56 = vld [vmem:[%s1 + $0x58] sm:$0xf]
  %v57 = vld [vmem:[%s1 + $0x5c] sm:$0xf]
  %v58 = vld [vmem:[%s1 + $0x60] sm:$0xf]
  %v59 = vld [vmem:[%s1 + $0x64] sm:$0xf]
  %v60 = vld [vmem:[%s1 + $0x68] sm:$0xf]
  %v61 = vld [vmem:[%s1 + $0x6c] sm:$0xf]
  %v62 = vld [vmem:[%s1 + $0x70] sm:$0xf]
  %v63 = vld [vmem:[%s1 + $0x74] sm:$0xf]
  %v64 = vld [vmem:[%s1 + $0x78] sm:$0xf]
  %v65 = vld [vmem:[%s1 + $0x7c] sm:$0xf]
  %v66 = vld [vmem:[%s1 + $0x80] sm:$0xf]
  %v67 = vld [vmem:[%s1 + $0x84] sm:$0xf]
  %v68 = vld [vmem:[%s1 + $0x88] sm:$0xf]
  %v69 = vld [vmem:[%s1 + $0x8c] sm:$0xf]
  %v70 = vld [vmem:[%s1 + $0x90] sm:$0xf]
  %v71 = vld [vmem:[%s1 + $0x94] sm:$0xf]
  %v72 = vld [vmem:[%s1 + $0x98] sm:$0xf]
  %v73 = vld [vmem:[%s1 + $0x9c] sm:$0xf]
  %v74 = vld [vmem:[%s1 + $0xa0] sm:$0xf]
  %v75 = vld [vmem:[%s1 + $0xa4] sm:$0xf]
  %v76 = vld [vmem:[%s1 + $0xa8] sm:$0xf]
  %v77 = vld [vmem:[%s1 + $0xac] sm:$0xf]
  %v78 = vld [vmem:[%s1 + $0xb0] sm:$0xf]
  %v79 = vld [vmem:[%s1 + $0xb4] sm:$0xf]
  %v80 = vld [vmem:[%s1 + $0xb8] sm:$0xf]
  %v81 = vld [vmem:[%s1 + $0xbc] sm:$0xf]
  %v82 = vld [vmem:[%s1 + $0xc0] sm:$0xf]
  %v83 = vld [vmem:[%s1 + $0xc4] sm:$0xf]
  %v84 = vld [vmem:[%s1 + $0xc8] sm:$0xf]
  %v85 = vld [vmem:[%s1 + $0xcc] sm:$0xf]
  %v86 = vld [vmem:[%s1 + $0xd0] sm:$0xf]
  %v87 = vld [vmem:[%s1 + $0xd4] sm:$0xf]
  %v88 = vld [vmem:[%s1 + $0xd8] sm:$0xf]
  %v89 = vld [vmem:[%s1 + $0xdc] sm:$0xf]
  %v90 = vld [vmem:[%s1 + $0xe0] sm:$0xf]
  %v91 = vld [vmem:[%s1 + $0xe4] sm:$0xf]
  %v92 = vld [vmem:[%s1 + $0xe8] sm:$0xf]
  %v93 = vld [vmem:[%s1 + $0xec] sm:$0xf]
  %v94 = vld [vmem:[%s1 + $0xf0] sm:$0xf]
  %v95 = vld [vmem:[%s1 + $0xf4] sm:$0xf]
  %v96 = vld [vmem:[%s1 + $0xf8] sm:$0xf]
  %v97 = vld [vmem:[%s1 + $0xfc] sm:$0xf]
  %v98 = vld [vmem:[%s2] sm:$0x1]
  %v100 = vlaneseq
  %v101 = vshrl.u32 %v100, 7
  %v102 = vsub.s32 0, %v101
  %v103 = vrot.slane %v98, %v102
  %v121 = vunpack.c.l.b16 %v18
  %v122 = vunpack.c.h.b16 %v18
  %v123 = vunpack.c.l.b16 %v19
  %v124 = vunpack.c.h.b16 %v19
  %v125 = vunpack.c.l.b16 %v20
  %v126 = vunpack.c.h.b16 %v20
  %v127 = vunpack.c.l.b16 %v21
  %v128 = vunpack.c.h.b16 %v21
  %v129 = vunpack.c.l.b16 %v22
  %v130 = vunpack.c.h.b16 %v22
  %v131 = vunpack.c.l.b16 %v23
  %v132 = vunpack.c.h.b16 %v23
  %v133 = vunpack.c.l.b16 %v24
  %v134 = vunpack.c.h.b16 %v24
  %v135 = vunpack.c.l.b16 %v25
  %v136 = vunpack.c.h.b16 %v25
  %v137 = vunpack.c.l.b16 %v26
  %v138 = vunpack.c.h.b16 %v26
  %v139 = vunpack.c.l.b16 %v27
  %v140 = vunpack.c.h.b16 %v27
  %v141 = vunpack.c.l.b16 %v28
  %v142 = vunpack.c.h.b16 %v28
  %v143 = vunpack.c.l.b16 %v29
  %v144 = vunpack.c.h.b16 %v29
  %v145 = vunpack.c.l.b16 %v30
  %v146 = vunpack.c.h.b16 %v30
  %v147 = vunpack.c.l.b16 %v31
  %v148 = vunpack.c.h.b16 %v31
  %v149 = vunpack.c.l.b16 %v32
  %v150 = vunpack.c.h.b16 %v32
  %v151 = vunpack.c.l.b16 %v33
  %v152 = vunpack.c.h.b16 %v33
  %v153 = vpack.c.b16 %v125, %v121
  %v154 = vpack.c.b16 %v126, %v122
  %v155 = vpack.c.b16 %v127, %v123
  %v156 = vpack.c.b16 %v128, %v124
  %v157 = vpack.c.b16 %v133, %v129
  %v158 = vpack.c.b16 %v134, %v130
  %v159 = vpack.c.b16 %v135, %v131
  %v160 = vpack.c.b16 %v136, %v132
  %v161 = vpack.c.b16 %v141, %v137
  %v162 = vpack.c.b16 %v142, %v138
  %v163 = vpack.c.b16 %v143, %v139
  %v164 = vpack.c.b16 %v144, %v140
  %v165 = vpack.c.b16 %v149, %v145
  %v166 = vpack.c.b16 %v150, %v146
  %v167 = vpack.c.b16 %v151, %v147
  %v168 = vpack.c.b16 %v152, %v148
  %v249 = vunpack.c.l.b16 %v34
  %v250 = vunpack.c.l.b16 %v35
  %v251 = vunpack.c.l.b16 %v36
  %v252 = vunpack.c.l.b16 %v37
  %v253 = vunpack.c.l.b16 %v38
  %v254 = vunpack.c.l.b16 %v39
  %v255 = vunpack.c.l.b16 %v40
  %v256 = vunpack.c.l.b16 %v41
  %v257 = vunpack.c.l.b16 %v42
  %v258 = vunpack.c.l.b16 %v43
  %v259 = vunpack.c.l.b16 %v44
  %v260 = vunpack.c.l.b16 %v45
  %v261 = vunpack.c.l.b16 %v46
  %v262 = vunpack.c.l.b16 %v47
  %v263 = vunpack.c.l.b16 %v48
  %v264 = vunpack.c.l.b16 %v49
  %v265 = vunpack.c.l.b16 %v50
  %v266 = vunpack.c.l.b16 %v51
  %v267 = vunpack.c.l.b16 %v52
  %v268 = vunpack.c.l.b16 %v53
  %v269 = vunpack.c.l.b16 %v54
  %v270 = vunpack.c.l.b16 %v55
  %v271 = vunpack.c.l.b16 %v56
  %v272 = vunpack.c.l.b16 %v57
  %v273 = vunpack.c.l.b16 %v58
  %v274 = vunpack.c.l.b16 %v59
  %v275 = vunpack.c.l.b16 %v60
  %v276 = vunpack.c.l.b16 %v61
  %v277 = vunpack.c.l.b16 %v62
  %v278 = vunpack.c.l.b16 %v63
  %v279 = vunpack.c.l.b16 %v64
  %v280 = vunpack.c.l.b16 %v65
  %v281 = vunpack.c.l.b16 %v66
  %v282 = vunpack.c.l.b16 %v67
  %v283 = vunpack.c.l.b16 %v68
  %v284 = vunpack.c.l.b16 %v69
  %v285 = vunpack.c.l.b16 %v70
  %v286 = vunpack.c.l.b16 %v71
  %v287 = vunpack.c.l.b16 %v72
  %v288 = vunpack.c.l.b16 %v73
  %v289 = vunpack.c.l.b16 %v74
  %v290 = vunpack.c.l.b16 %v75
  %v291 = vunpack.c.l.b16 %v76
  %v292 = vunpack.c.l.b16 %v77
  %v293 = vunpack.c.l.b16 %v78
  %v294 = vunpack.c.l.b16 %v79
  %v295 = vunpack.c.l.b16 %v80
  %v296 = vunpack.c.l.b16 %v81
  %v297 = vunpack.c.l.b16 %v82
  %v298 = vunpack.c.l.b16 %v83
  %v299 = vunpack.c.l.b16 %v84
  %v300 = vunpack.c.l.b16 %v85
  %v301 = vunpack.c.l.b16 %v86
  %v302 = vunpack.c.l.b16 %v87
  %v303 = vunpack.c.l.b16 %v88
  %v304 = vunpack.c.l.b16 %v89
  %v305 = vunpack.c.l.b16 %v90
  %v306 = vunpack.c.l.b16 %v91
  %v307 = vunpack.c.l.b16 %v92
  %v308 = vunpack.c.l.b16 %v93
  %v309 = vunpack.c.l.b16 %v94
  %v310 = vunpack.c.l.b16 %v95
  %v311 = vunpack.c.l.b16 %v96
  %v312 = vunpack.c.l.b16 %v97
  %v313 = vpack.c.b16 %v250, %v249
  %v314 = vpack.c.b16 %v252, %v251
  %v315 = vpack.c.b16 %v254, %v253
  %v316 = vpack.c.b16 %v256, %v255
  %v317 = vpack.c.b16 %v258, %v257
  %v318 = vpack.c.b16 %v260, %v259
  %v319 = vpack.c.b16 %v262, %v261
  %v320 = vpack.c.b16 %v264, %v263
  %v321 = vpack.c.b16 %v266, %v265
  %v322 = vpack.c.b16 %v268, %v267
  %v323 = vpack.c.b16 %v270, %v269
  %v324 = vpack.c.b16 %v272, %v271
  %v325 = vpack.c.b16 %v274, %v273
  %v326 = vpack.c.b16 %v276, %v275
  %v327 = vpack.c.b16 %v278, %v277
  %v328 = vpack.c.b16 %v280, %v279
  %v329 = vpack.c.b16 %v282, %v281
  %v330 = vpack.c.b16 %v284, %v283
  %v331 = vpack.c.b16 %v286, %v285
  %v332 = vpack.c.b16 %v288, %v287
  %v333 = vpack.c.b16 %v290, %v289
  %v334 = vpack.c.b16 %v292, %v291
  %v335 = vpack.c.b16 %v294, %v293
  %v336 = vpack.c.b16 %v296, %v295
  %v337 = vpack.c.b16 %v298, %v297
  %v338 = vpack.c.b16 %v300, %v299
  %v339 = vpack.c.b16 %v302, %v301
  %v340 = vpack.c.b16 %v304, %v303
  %v341 = vpack.c.b16 %v306, %v305
  %v342 = vpack.c.b16 %v308, %v307
  %v343 = vpack.c.b16 %v310, %v309
  %v344 = vpack.c.b16 %v312, %v311
  %377 = vmatprep.subr.bf16.mxu0 0
  %378 = vmatpush1.bf16.msra.mxu0 %v320
  %379 = vmatprep.subr.bf16.mxu0 0
  %380 = vmatpush1.bf16.msra.mxu0 %v319
  %381 = vmatprep.subr.bf16.mxu0 0
  %382 = vmatpush1.bf16.msra.mxu0 %v318
  %383 = vmatprep.subr.bf16.mxu0 0
  %384 = vmatpush1.bf16.msra.mxu0 %v317
  %385 = vmatprep.subr.bf16.mxu0 0
  %386 = vmatpush1.bf16.msra.mxu0 %v316
  %387 = vmatprep.subr.bf16.mxu0 0
  %388 = vmatpush1.bf16.msra.mxu0 %v315
  %389 = vmatprep.subr.bf16.mxu0 0
  %390 = vmatpush1.bf16.msra.mxu0 %v314
  %391 = vmatprep.subr.bf16.mxu0 0
  %392 = vmatpush1.bf16.msra.mxu0 %v313
  %393 = vmatprep.subr.bf16.mxu0 0
  %394 = vmatpush2.bf16.msra.mxu0 %v328
  %395 = vmatprep.subr.bf16.mxu0 0
  %396 = vmatpush2.bf16.msra.mxu0 %v327
  %397 = vmatprep.subr.bf16.mxu0 0
  %398 = vmatpush2.bf16.msra.mxu0 %v326
  %399 = vmatprep.subr.bf16.mxu0 0
  %400 = vmatpush2.bf16.msra.mxu0 %v325
  %401 = vmatprep.subr.bf16.mxu0 0
  %402 = vmatpush2.bf16.msra.mxu0 %v324
  %403 = vmatprep.subr.bf16.mxu0 0
  %404 = vmatpush2.bf16.msra.mxu0 %v323
  %405 = vmatprep.subr.bf16.mxu0 0
  %406 = vmatpush2.bf16.msra.mxu0 %v322
  %407 = vmatprep.subr.bf16.mxu0 0
  %408 = vmatpush2.bf16.msra.mxu0 %v321
  %409 = vmatprep.mubr.bf16.mxu0 %v154
  %410 = vmatmul.mubr.bf16.gmra.mxu0 %v153
  %v411 = vpop.f32.mrf.mxu0
  %v412 = vadd.f32 %v103, %v411
  %v413 = vpop.f32.mrf.mxu0
  %v414 = vpop.f32.mrf.mxu0
  %v415 = vadd.f32 %v103, %v414
  %v416 = vpop.f32.mrf.mxu0
  %417 = vmatprep.mubr.bf16.mxu0 %v158
  %418 = vmatmul.mubr.bf16.gmra.mxu0 %v157
  %v419 = vpop.f32.mrf.mxu0
  %v420 = vadd.f32 %v103, %v419
  %v421 = vpop.f32.mrf.mxu0
  %v422 = vpop.f32.mrf.mxu0
  %v423 = vadd.f32 %v103, %v422
  %v424 = vpop.f32.mrf.mxu0
  %425 = vmatprep.mubr.bf16.mxu0 %v162
  %426 = vmatmul.mubr.bf16.gmra.mxu0 %v161
  %v427 = vpop.f32.mrf.mxu0
  %v428 = vadd.f32 %v103, %v427
  %v429 = vpop.f32.mrf.mxu0
  %v430 = vpop.f32.mrf.mxu0
  %v431 = vadd.f32 %v103, %v430
  %v432 = vpop.f32.mrf.mxu0
  %433 = vmatprep.mubr.bf16.mxu0 %v166
  %434 = vmatmul.mubr.bf16.gmra.mxu0 %v165
  %v435 = vpop.f32.mrf.mxu0
  %v436 = vadd.f32 %v103, %v435
  %v437 = vpop.f32.mrf.mxu0
  %v438 = vpop.f32.mrf.mxu0
  %v439 = vadd.f32 %v103, %v438
  %v440 = vpop.f32.mrf.mxu0
  %441 = vdwg.mxu0
  %442 = vmatprep.subr.bf16.mxu0 0
  %443 = vmatpush1.bf16.msra.mxu0 %v336
  %444 = vmatprep.subr.bf16.mxu0 0
  %445 = vmatpush1.bf16.msra.mxu0 %v335
  %446 = vmatprep.subr.bf16.mxu0 0
  %447 = vmatpush1.bf16.msra.mxu0 %v334
  %448 = vmatprep.subr.bf16.mxu0 0
  %449 = vmatpush1.bf16.msra.mxu0 %v333
  %450 = vmatprep.subr.bf16.mxu0 0
  %451 = vmatpush1.bf16.msra.mxu0 %v332
  %452 = vmatprep.subr.bf16.mxu0 0
  %453 = vmatpush1.bf16.msra.mxu0 %v331
  %454 = vmatprep.subr.bf16.mxu0 0
  %455 = vmatpush1.bf16.msra.mxu0 %v330
  %456 = vmatprep.subr.bf16.mxu0 0
  %457 = vmatpush1.bf16.msra.mxu0 %v329
  %458 = vmatprep.subr.bf16.mxu0 0
  %459 = vmatpush2.bf16.msra.mxu0 %v344
  %460 = vmatprep.subr.bf16.mxu0 0
  %461 = vmatpush2.bf16.msra.mxu0 %v343
  %462 = vmatprep.subr.bf16.mxu0 0
  %463 = vmatpush2.bf16.msra.mxu0 %v342
  %464 = vmatprep.subr.bf16.mxu0 0
  %465 = vmatpush2.bf16.msra.mxu0 %v341
  %466 = vmatprep.subr.bf16.mxu0 0
  %467 = vmatpush2.bf16.msra.mxu0 %v340
  %468 = vmatprep.subr.bf16.mxu0 0
  %469 = vmatpush2.bf16.msra.mxu0 %v339
  %470 = vmatprep.subr.bf16.mxu0 0
  %471 = vmatpush2.bf16.msra.mxu0 %v338
  %472 = vmatprep.subr.bf16.mxu0 0
  %473 = vmatpush2.bf16.msra.mxu0 %v337
  %474 = vmatprep.mubr.bf16.mxu0 %v156
  %475 = vmatmul.mubr.bf16.gmra.mxu0 %v155
  %v476 = vpop.f32.mrf.mxu0
  %v477 = vadd.f32 %v412, %v476
  %v478 = vpop.f32.mrf.mxu0
  %v479 = vpop.f32.mrf.mxu0
  %v480 = vadd.f32 %v415, %v479
  %v481 = vpop.f32.mrf.mxu0
  %482 = vmatprep.mubr.bf16.mxu0 %v160
  %483 = vmatmul.mubr.bf16.gmra.mxu0 %v159
  %v484 = vpop.f32.mrf.mxu0
  %v485 = vadd.f32 %v420, %v484
  %v486 = vpop.f32.mrf.mxu0
  %v487 = vpop.f32.mrf.mxu0
  %v488 = vadd.f32 %v423, %v487
  %v489 = vpop.f32.mrf.mxu0
  %490 = vmatprep.mubr.bf16.mxu0 %v164
  %491 = vmatmul.mubr.bf16.gmra.mxu0 %v163
  %v492 = vpop.f32.mrf.mxu0
  %v493 = vadd.f32 %v428, %v492
  %v494 = vpop.f32.mrf.mxu0
  %v495 = vpop.f32.mrf.mxu0
  %v496 = vadd.f32 %v431, %v495
  %v497 = vpop.f32.mrf.mxu0
  %498 = vmatprep.mubr.bf16.mxu0 %v168
  %499 = vmatmul.mubr.bf16.gmra.mxu0 %v167
  %v500 = vpop.f32.mrf.mxu0
  %v501 = vadd.f32 %v436, %v500
  %v502 = vpop.f32.mrf.mxu0
  %v503 = vpop.f32.mrf.mxu0
  %v504 = vadd.f32 %v439, %v503
  %v505 = vpop.f32.mrf.mxu0
  %506 = vdwg.mxu0
  %v507 = vld [vmem:[%s3] sm:$0x1]
  %vm508 = vcmp.ge.f32.partialorder %v477, 0.0
  %vm509 = vcmp.ge.f32.partialorder %v480, 0.0
  %vm510 = vcmp.ge.f32.partialorder %v485, 0.0
  %vm511 = vcmp.ge.f32.partialorder %v488, 0.0
  %vm512 = vcmp.ge.f32.partialorder %v493, 0.0
  %vm513 = vcmp.ge.f32.partialorder %v496, 0.0
  %vm514 = vcmp.ge.f32.partialorder %v501, 0.0
  %vm515 = vcmp.ge.f32.partialorder %v504, 0.0
  %v517 = vlaneseq
  %v518 = vshrl.u32 %v517, 7
  %v519 = vsub.s32 0, %v518
  %v520 = vrot.slane %v507, %v519
  %v522 = vmul.f32 %v520, %v477
  %v523 = vmul.f32 %v520, %v480
  %v524 = vmul.f32 %v520, %v485
  %v525 = vmul.f32 %v520, %v488
  %v526 = vmul.f32 %v520, %v493
  %v527 = vmul.f32 %v520, %v496
  %v528 = vmul.f32 %v520, %v501
  %v529 = vmul.f32 %v520, %v504
  %v530 = vsel %vm508, %v477, %v522
  %v531 = vsel %vm509, %v480, %v523
  %v532 = vsel %vm510, %v485, %v524
  %v533 = vsel %vm511, %v488, %v525
  %v534 = vsel %vm512, %v493, %v526
  %v535 = vsel %vm513, %v496, %v527
  %v536 = vsel %vm514, %v501, %v528
  %v537 = vsel %vm515, %v504, %v529
  %v538 = vpack.c.bf16 %v531, %v530
  %v539 = vpack.c.bf16 %v533, %v532
  %v540 = vpack.c.bf16 %v535, %v534
  %v541 = vpack.c.bf16 %v537, %v536
  %v546 = vunpack.c.l.b16 %v538
  %v547 = vunpack.c.h.b16 %v538
  %v548 = vunpack.c.l.b16 %v539
  %v549 = vunpack.c.h.b16 %v539
  %v550 = vunpack.c.l.b16 %v540
  %v551 = vunpack.c.h.b16 %v540
  %v552 = vunpack.c.l.b16 %v541
  %v553 = vunpack.c.h.b16 %v541
  %v554 = vpack.c.b16 %v546, %v546
  %v555 = vpack.c.b16 %v547, %v547
  %v556 = vpack.c.b16 %v548, %v548
  %v557 = vpack.c.b16 %v549, %v549
  %v558 = vpack.c.b16 %v550, %v550
  %v559 = vpack.c.b16 %v551, %v551
  %v560 = vpack.c.b16 %v552, %v552
  %v561 = vpack.c.b16 %v553, %v553
  %570 = vst [vmem:[%s4] sm:$0xf] %v554
  %571 = vst [vmem:[%s4 + $0x4] sm:$0xf] %v555
  %572 = vst [vmem:[%s4 + $0x8] sm:$0xf] %v556
  %573 = vst [vmem:[%s4 + $0xc] sm:$0xf] %v557
  %574 = vst [vmem:[%s4 + $0x10] sm:$0xf] %v558
  %575 = vst [vmem:[%s4 + $0x14] sm:$0xf] %v559
  %576 = vst [vmem:[%s4 + $0x18] sm:$0xf] %v560
  %577 = vst [vmem:[%s4 + $0x1c] sm:$0xf] %v561
  // Predicated region
  $region18: #{if_block_forward.13} parent=0 // pred_check
    _
  $region19: #{if_block_forward.13} parent=0 // pred_check_branch
    %579 = sbr.rel (0) target = $region21
  $region20: #{if_block_forward.13} parent=0 // pred_region
    _
  $region21: #{if_block_forward.13} parent=0 // pred_fallthru
    _
  // Predicated region
  $region22: #{if_block_forward.13} parent=0 // pred_check
    _
  $region23: #{if_block_forward.13} parent=0 // pred_check_branch
    %581 = sbr.rel (0) target = $region25
  $region24: #{if_block_forward.13} parent=0 // pred_region
    _
  $region25: #{if_block_forward.13} parent=0 // pred_fallthru
    _

// kernel: if_block_forward.14
$region0: #{if_block_forward.14}
  #allocation0 [shape = 'u32[]', space=smem, size = 0x4, offset = 0x4, fixed_abs, tag = 'smem constant byte address 0x4 - core index']
  #allocation1 [shape = 'u32[144,128]{1,0:T(1,128)}', space=vmem, size = 0x12000, scoped, tag = 'internal scratch']
  %s0 = inlined_call_operand.vmem [shape: bf16[64,432], index: 0, kind: input, shape index: {}]
  %s1 = inlined_call_operand.vmem [shape: bf16[432,128], index: 1, kind: input, shape index: {}]
  %s2 = inlined_call_operand.vmem [shape: f32[1,128], index: 2, kind: input, shape index: {}]
  %s3 = inlined_call_operand.vmem [shape: f32[1,128], index: 3, kind: input, shape index: {}]
  %s4 = inlined_call_operand.vmem [shape: bf16[64,128], index: 4, kind: output, shape index: {}]
  %s5 = sld [smem:[#allocation0]]
  $region26: #{if_block_forward.14} parent=0
    _
  %s7 = ssub.s32 1, %s5
  %s8 = scalar_select 0, %s7, %s5
  // Predicated region
  $region2: #{if_block_forward.14} parent=0 // pred_check
    _
  $region3: #{if_block_forward.14} parent=0 // pred_check_branch
    %10 = sbr.rel (0) target = $region5
  $region4: #{if_block_forward.14} parent=0 // pred_region
    _
  $region5: #{if_block_forward.14} parent=0 // pred_fallthru
    _
  // Predicated region
  $region6: #{if_block_forward.14} parent=0 // pred_check
    _
  $region7: #{if_block_forward.14} parent=0 // pred_check_branch
    %12 = sbr.rel (0) target = $region9
  $region8: #{if_block_forward.14} parent=0 // pred_region
    _
  $region9: #{if_block_forward.14} parent=0 // pred_fallthru
    _
  // Predicated region
  $region10: #{if_block_forward.14} parent=0 // pred_check
    _
  $region11: #{if_block_forward.14} parent=0 // pred_check_branch
    %14 = sbr.rel (0) target = $region13
  $region12: #{if_block_forward.14} parent=0 // pred_region
    _
  $region13: #{if_block_forward.14} parent=0 // pred_fallthru
    _
  // Predicated region
  $region14: #{if_block_forward.14} parent=0 // pred_check
    _
  $region15: #{if_block_forward.14} parent=0 // pred_check_branch
    %16 = sbr.rel (0) target = $region17
  $region16: #{if_block_forward.14} parent=0 // pred_region
    _
  $region17: #{if_block_forward.14} parent=0 // pred_fallthru
    _
  %v18 = vld [vmem:[%s0] sm:$0xff]
  %v19 = vld [vmem:[%s0 + $0x8] sm:$0xff]
  %v20 = vld [vmem:[%s0 + $0x10] sm:$0xff]
  %v21 = vld [vmem:[%s0 + $0x18] sm:$0xff]
  %v22 = vld [vmem:[%s0 + $0x20] sm:$0xff]
  %v23 = vld [vmem:[%s0 + $0x28] sm:$0xff]
  %v24 = vld [vmem:[%s0 + $0x30] sm:$0xff]
  %v25 = vld [vmem:[%s0 + $0x38] sm:$0xff]
  %v26 = vld [vmem:[%s0 + $0x40] sm:$0xff]
  %v27 = vld [vmem:[%s0 + $0x48] sm:$0xff]
  %v28 = vld [vmem:[%s0 + $0x50] sm:$0xff]
  %v29 = vld [vmem:[%s0 + $0x58] sm:$0xff]
  %v30 = vld [vmem:[%s0 + $0x60] sm:$0xff]
  %v31 = vld [vmem:[%s0 + $0x68] sm:$0xff]
  %v32 = vld [vmem:[%s0 + $0x70] sm:$0xff]
  %v33 = vld [vmem:[%s0 + $0x78] sm:$0xff]
  %v34 = vld [vmem:[%s1] sm:$0xf]
  %v35 = vld [vmem:[%s1 + $0x4] sm:$0xf]
  %v36 = vld [vmem:[%s1 + $0x8] sm:$0xf]
  %v37 = vld [vmem:[%s1 + $0xc] sm:$0xf]
  %v38 = vld [vmem:[%s1 + $0x10] sm:$0xf]
  %v39 = vld [vmem:[%s1 + $0x14] sm:$0xf]
  %v40 = vld [vmem:[%s1 + $0x18] sm:$0xf]
  %v41 = vld [vmem:[%s1 + $0x1c] sm:$0xf]
  %v42 = vld [vmem:[%s1 + $0x20] sm:$0xf]
  %v43 = vld [vmem:[%s1 + $0x24] sm:$0xf]
  %v44 = vld [vmem:[%s1 + $0x28] sm:$0xf]
  %v45 = vld [vmem:[%s1 + $0x2c] sm:$0xf]
  %v46 = vld [vmem:[%s1 + $0x30] sm:$0xf]
  %v47 = vld [vmem:[%s1 + $0x34] sm:$0xf]
  %v48 = vld [vmem:[%s1 + $0x38] sm:$0xf]
  %v49 = vld [vmem:[%s1 + $0x3c] sm:$0xf]
  %v50 = vld [vmem:[%s1 + $0x40] sm:$0xf]
  %v51 = vld [vmem:[%s1 + $0x44] sm:$0xf]
  %v52 = vld [vmem:[%s1 + $0x48] sm:$0xf]
  %v53 = vld [vmem:[%s1 + $0x4c] sm:$0xf]
  %v54 = vld [vmem:[%s1 + $0x50] sm:$0xf]
  %v55 = vld [vmem:[%s1 + $0x54] sm:$0xf]
  %v56 = vld [vmem:[%s1 + $0x58] sm:$0xf]
  %v57 = vld [vmem:[%s1 + $0x5c] sm:$0xf]
  %v58 = vld [vmem:[%s1 + $0x60] sm:$0xf]
  %v59 = vld [vmem:[%s1 + $0x64] sm:$0xf]
  %v60 = vld [vmem:[%s1 + $0x68] sm:$0xf]
  %v61 = vld [vmem:[%s1 + $0x6c] sm:$0xf]
  %v62 = vld [vmem:[%s1 + $0x70] sm:$0xf]
  %v63 = vld [vmem:[%s1 + $0x74] sm:$0xf]
  %v64 = vld [vmem:[%s1 + $0x78] sm:$0xf]
  %v65 = vld [vmem:[%s1 + $0x7c] sm:$0xf]
  %v66 = vld [vmem:[%s1 + $0x80] sm:$0xf]
  %v67 = vld [vmem:[%s1 + $0x84] sm:$0xf]
  %v68 = vld [vmem:[%s1 + $0x88] sm:$0xf]
  %v69 = vld [vmem:[%s1 + $0x8c] sm:$0xf]
  %v70 = vld [vmem:[%s1 + $0x90] sm:$0xf]
  %v71 = vld [vmem:[%s1 + $0x94] sm:$0xf]
  %v72 = vld [vmem:[%s1 + $0x98] sm:$0xf]
  %v73 = vld [vmem:[%s1 + $0x9c] sm:$0xf]
  %v74 = vld [vmem:[%s1 + $0xa0] sm:$0xf]
  %v75 = vld [vmem:[%s1 + $0xa4] sm:$0xf]
  %v76 = vld [vmem:[%s1 + $0xa8] sm:$0xf]
  %v77 = vld [vmem:[%s1 + $0xac] sm:$0xf]
  %v78 = vld [vmem:[%s1 + $0xb0] sm:$0xf]
  %v79 = vld [vmem:[%s1 + $0xb4] sm:$0xf]
  %v80 = vld [vmem:[%s1 + $0xb8] sm:$0xf]
  %v81 = vld [vmem:[%s1 + $0xbc] sm:$0xf]
  %v82 = vld [vmem:[%s1 + $0xc0] sm:$0xf]
  %v83 = vld [vmem:[%s1 + $0xc4] sm:$0xf]
  %v84 = vld [vmem:[%s1 + $0xc8] sm:$0xf]
  %v85 = vld [vmem:[%s1 + $0xcc] sm:$0xf]
  %v86 = vld [vmem:[%s1 + $0xd0] sm:$0xf]
  %v87 = vld [vmem:[%s1 + $0xd4] sm:$0xf]
  %v88 = vld [vmem:[%s2] sm:$0x1]
  %v90 = vlaneseq
  %v91 = vshrl.u32 %v90, 7
  %v92 = vsub.s32 0, %v91
  %v93 = vrot.slane %v88, %v92
  %v111 = vunpack.c.l.b16 %v18
  %v112 = vunpack.c.h.b16 %v18
  %v113 = vunpack.c.l.b16 %v19
  %v114 = vunpack.c.h.b16 %v19
  %v115 = vunpack.c.l.b16 %v20
  %v116 = vunpack.c.h.b16 %v20
  %v117 = vunpack.c.l.b16 %v21
  %v118 = vunpack.c.h.b16 %v21
  %v119 = vunpack.c.l.b16 %v22
  %v120 = vunpack.c.h.b16 %v22
  %v121 = vunpack.c.l.b16 %v23
  %v122 = vunpack.c.h.b16 %v23
  %v123 = vunpack.c.l.b16 %v24
  %v124 = vunpack.c.h.b16 %v24
  %v125 = vunpack.c.l.b16 %v25
  %v126 = vunpack.c.h.b16 %v25
  %v127 = vunpack.c.l.b16 %v26
  %v128 = vunpack.c.h.b16 %v26
  %v129 = vunpack.c.l.b16 %v27
  %v130 = vunpack.c.h.b16 %v27
  %v131 = vunpack.c.l.b16 %v28
  %v132 = vunpack.c.h.b16 %v28
  %v133 = vunpack.c.l.b16 %v29
  %v134 = vunpack.c.h.b16 %v29
  %v135 = vunpack.c.l.b16 %v30
  %v136 = vunpack.c.h.b16 %v30
  %v137 = vunpack.c.l.b16 %v31
  %v138 = vunpack.c.h.b16 %v31
  %v139 = vunpack.c.l.b16 %v32
  %v140 = vunpack.c.h.b16 %v32
  %v141 = vunpack.c.l.b16 %v33
  %v142 = vunpack.c.h.b16 %v33
  %v143 = vpack.c.b16 %v115, %v111
  %v144 = vpack.c.b16 %v116, %v112
  %v145 = vpack.c.b16 %v117, %v113
  %v146 = vpack.c.b16 %v118, %v114
  %v147 = vpack.c.b16 %v123, %v119
  %v148 = vpack.c.b16 %v124, %v120
  %v149 = vpack.c.b16 %v125, %v121
  %v150 = vpack.c.b16 %v126, %v122
  %v151 = vpack.c.b16 %v131, %v127
  %v152 = vpack.c.b16 %v132, %v128
  %v153 = vpack.c.b16 %v133, %v129
  %v154 = vpack.c.b16 %v134, %v130
  %v155 = vpack.c.b16 %v139, %v135
  %v156 = vpack.c.b16 %v140, %v136
  %v157 = vpack.c.b16 %v141, %v137
  %v158 = vpack.c.b16 %v142, %v138
  %v225 = vunpack.c.l.b16 %v34
  %v226 = vunpack.c.l.b16 %v35
  %v227 = vunpack.c.l.b16 %v36
  %v228 = vunpack.c.l.b16 %v37
  %v229 = vunpack.c.l.b16 %v38
  %v230 = vunpack.c.l.b16 %v39
  %v231 = vunpack.c.l.b16 %v40
  %v232 = vunpack.c.l.b16 %v41
  %v233 = vunpack.c.l.b16 %v42
  %v234 = vunpack.c.l.b16 %v43
  %v235 = vunpack.c.l.b16 %v44
  %v236 = vunpack.c.l.b16 %v45
  %v237 = vunpack.c.l.b16 %v46
  %v238 = vunpack.c.l.b16 %v47
  %v239 = vunpack.c.l.b16 %v48
  %v240 = vunpack.c.l.b16 %v49
  %v241 = vunpack.c.l.b16 %v50
  %v242 = vunpack.c.l.b16 %v51
  %v243 = vunpack.c.l.b16 %v52
  %v244 = vunpack.c.l.b16 %v53
  %v245 = vunpack.c.l.b16 %v54
  %v246 = vunpack.c.l.b16 %v55
  %v247 = vunpack.c.l.b16 %v56
  %v248 = vunpack.c.l.b16 %v57
  %v249 = vunpack.c.l.b16 %v58
  %v250 = vunpack.c.l.b16 %v59
  %v251 = vunpack.c.l.b16 %v60
  %v252 = vunpack.c.l.b16 %v61
  %v253 = vunpack.c.l.b16 %v62
  %v254 = vunpack.c.l.b16 %v63
  %v255 = vunpack.c.l.b16 %v64
  %v256 = vunpack.c.l.b16 %v65
  %v257 = vunpack.c.l.b16 %v66
  %v258 = vunpack.c.l.b16 %v67
  %v259 = vunpack.c.l.b16 %v68
  %v260 = vunpack.c.l.b16 %v69
  %v261 = vunpack.c.l.b16 %v70
  %v262 = vunpack.c.l.b16 %v71
  %v263 = vunpack.c.l.b16 %v72
  %v264 = vunpack.c.l.b16 %v73
  %v265 = vunpack.c.l.b16 %v74
  %v266 = vunpack.c.l.b16 %v75
  %v267 = vunpack.c.l.b16 %v76
  %v268 = vunpack.c.l.b16 %v77
  %v269 = vunpack.c.l.b16 %v78
  %v270 = vunpack.c.l.b16 %v79
  %v271 = vunpack.c.l.b16 %v80
  %v272 = vunpack.c.l.b16 %v81
  %v273 = vunpack.c.l.b16 %v82
  %v274 = vunpack.c.l.b16 %v83
  %v275 = vunpack.c.l.b16 %v84
  %v276 = vunpack.c.l.b16 %v85
  %v277 = vunpack.c.l.b16 %v86
  %v278 = vunpack.c.l.b16 %v87
  %v279 = vpack.c.b16 %v226, %v225
  %v280 = vpack.c.b16 %v228, %v227
  %v281 = vpack.c.b16 %v230, %v229
  %v282 = vpack.c.b16 %v232, %v231
  %v283 = vpack.c.b16 %v234, %v233
  %v284 = vpack.c.b16 %v236, %v235
  %v285 = vpack.c.b16 %v238, %v237
  %v286 = vpack.c.b16 %v240, %v239
  %v287 = vpack.c.b16 %v242, %v241
  %v288 = vpack.c.b16 %v244, %v243
  %v289 = vpack.c.b16 %v246, %v245
  %v290 = vpack.c.b16 %v248, %v247
  %v291 = vpack.c.b16 %v250, %v249
  %v292 = vpack.c.b16 %v252, %v251
  %v293 = vpack.c.b16 %v254, %v253
  %v294 = vpack.c.b16 %v256, %v255
  %v295 = vpack.c.b16 %v258, %v257
  %v296 = vpack.c.b16 %v260, %v259
  %v297 = vpack.c.b16 %v262, %v261
  %v298 = vpack.c.b16 %v264, %v263
  %v299 = vpack.c.b16 %v266, %v265
  %v300 = vpack.c.b16 %v268, %v267
  %v301 = vpack.c.b16 %v270, %v269
  %v302 = vpack.c.b16 %v272, %v271
  %v303 = vpack.c.b16 %v274, %v273
  %v304 = vpack.c.b16 %v276, %v275
  %v305 = vpack.c.b16 %v278, %v277
  %vm333 = vcmask 392192
  %v335 = vsel %vm333, %v146, 0
  %v338 = vsel %vm333, %v150, 0
  %v341 = vsel %vm333, %v154, 0
  %v344 = vsel %vm333, %v158, 0
  %346 = vmatprep.subr.bf16.mxu0 0
  %347 = vmatpush1.bf16.msra.mxu0 %v286
  %348 = vmatprep.subr.bf16.mxu0 0
  %349 = vmatpush1.bf16.msra.mxu0 %v285
  %350 = vmatprep.subr.bf16.mxu0 0
  %351 = vmatpush1.bf16.msra.mxu0 %v284
  %352 = vmatprep.subr.bf16.mxu0 0
  %353 = vmatpush1.bf16.msra.mxu0 %v283
  %354 = vmatprep.subr.bf16.mxu0 0
  %355 = vmatpush1.bf16.msra.mxu0 %v282
  %356 = vmatprep.subr.bf16.mxu0 0
  %357 = vmatpush1.bf16.msra.mxu0 %v281
  %358 = vmatprep.subr.bf16.mxu0 0
  %359 = vmatpush1.bf16.msra.mxu0 %v280
  %360 = vmatprep.subr.bf16.mxu0 0
  %361 = vmatpush1.bf16.msra.mxu0 %v279
  %362 = vmatprep.subr.bf16.mxu0 0
  %363 = vmatpush2.bf16.msra.mxu0 %v294
  %364 = vmatprep.subr.bf16.mxu0 0
  %365 = vmatpush2.bf16.msra.mxu0 %v293
  %366 = vmatprep.subr.bf16.mxu0 0
  %367 = vmatpush2.bf16.msra.mxu0 %v292
  %368 = vmatprep.subr.bf16.mxu0 0
  %369 = vmatpush2.bf16.msra.mxu0 %v291
  %370 = vmatprep.subr.bf16.mxu0 0
  %371 = vmatpush2.bf16.msra.mxu0 %v290
  %372 = vmatprep.subr.bf16.mxu0 0
  %373 = vmatpush2.bf16.msra.mxu0 %v289
  %374 = vmatprep.subr.bf16.mxu0 0
  %375 = vmatpush2.bf16.msra.mxu0 %v288
  %376 = vmatprep.subr.bf16.mxu0 0
  %377 = vmatpush2.bf16.msra.mxu0 %v287
  %378 = vmatprep.mubr.bf16.mxu0 %v144
  %379 = vmatmul.mubr.bf16.gmra.mxu0 %v143
  %v380 = vpop.f32.mrf.mxu0
  %v381 = vadd.f32 %v93, %v380
  %v382 = vpop.f32.mrf.mxu0
  %v383 = vpop.f32.mrf.mxu0
  %v384 = vadd.f32 %v93, %v383
  %v385 = vpop.f32.mrf.mxu0
  %386 = vmatprep.mubr.bf16.mxu0 %v148
  %387 = vmatmul.mubr.bf16.gmra.mxu0 %v147
  %v388 = vpop.f32.mrf.mxu0
  %v389 = vadd.f32 %v93, %v388
  %v390 = vpop.f32.mrf.mxu0
  %v391 = vpop.f32.mrf.mxu0
  %v392 = vadd.f32 %v93, %v391
  %v393 = vpop.f32.mrf.mxu0
  %394 = vmatprep.mubr.bf16.mxu0 %v152
  %395 = vmatmul.mubr.bf16.gmra.mxu0 %v151
  %v396 = vpop.f32.mrf.mxu0
  %v397 = vadd.f32 %v93, %v396
  %v398 = vpop.f32.mrf.mxu0
  %v399 = vpop.f32.mrf.mxu0
  %v400 = vadd.f32 %v93, %v399
  %v401 = vpop.f32.mrf.mxu0
  %402 = vmatprep.mubr.bf16.mxu0 %v156
  %403 = vmatmul.mubr.bf16.gmra.mxu0 %v155
  %v404 = vpop.f32.mrf.mxu0
  %v405 = vadd.f32 %v93, %v404
  %v406 = vpop.f32.mrf.mxu0
  %v407 = vpop.f32.mrf.mxu0
  %v408 = vadd.f32 %v93, %v407
  %v409 = vpop.f32.mrf.mxu0
  %410 = vdwg.mxu0
  %411 = vmatprep.subr.bf16.mxu0 0
  %412 = vmatpush1.bf16.msra.mxu0 %v302
  %413 = vmatprep.subr.bf16.mxu0 0
  %414 = vmatpush1.bf16.msra.mxu0 %v301
  %415 = vmatprep.subr.bf16.mxu0 0
  %416 = vmatpush1.bf16.msra.mxu0 %v300
  %417 = vmatprep.subr.bf16.mxu0 0
  %418 = vmatpush1.bf16.msra.mxu0 %v299
  %419 = vmatprep.subr.bf16.mxu0 0
  %420 = vmatpush1.bf16.msra.mxu0 %v298
  %421 = vmatprep.subr.bf16.mxu0 0
  %422 = vmatpush1.bf16.msra.mxu0 %v297
  %423 = vmatprep.subr.bf16.mxu0 0
  %424 = vmatpush1.bf16.msra.mxu0 %v296
  %425 = vmatprep.subr.bf16.mxu0 0
  %426 = vmatpush1.bf16.msra.mxu0 %v295
  %427 = vmatprep.subr.bf16.mxu0 0
  %428 = vmatpush2.bf16.msra.mxu0 0
  %429 = vmatprep.subr.bf16.mxu0 0
  %430 = vmatpush2.bf16.msra.mxu0 0
  %431 = vmatprep.subr.bf16.mxu0 0
  %432 = vmatpush2.bf16.msra.mxu0 0
  %433 = vmatprep.subr.bf16.mxu0 0
  %434 = vmatpush2.bf16.msra.mxu0 0
  %435 = vmatprep.subr.bf16.mxu0 0
  %436 = vmatpush2.bf16.msra.mxu0 0
  %437 = vmatprep.subr.bf16.mxu0 0
  %438 = vmatpush2.bf16.msra.mxu0 %v305
  %439 = vmatprep.subr.bf16.mxu0 0
  %440 = vmatpush2.bf16.msra.mxu0 %v304
  %441 = vmatprep.subr.bf16.mxu0 0
  %442 = vmatpush2.bf16.msra.mxu0 %v303
  %443 = vmatprep.mubr.bf16.mxu0 %v335
  %444 = vmatmul.mubr.bf16.gmra.mxu0 %v145
  %v445 = vpop.f32.mrf.mxu0
  %v446 = vadd.f32 %v381, %v445
  %v447 = vpop.f32.mrf.mxu0
  %v448 = vpop.f32.mrf.mxu0
  %v449 = vadd.f32 %v384, %v448
  %v450 = vpop.f32.mrf.mxu0
  %451 = vmatprep.mubr.bf16.mxu0 %v338
  %452 = vmatmul.mubr.bf16.gmra.mxu0 %v149
  %v453 = vpop.f32.mrf.mxu0
  %v454 = vadd.f32 %v389, %v453
  %v455 = vpop.f32.mrf.mxu0
  %v456 = vpop.f32.mrf.mxu0
  %v457 = vadd.f32 %v392, %v456
  %v458 = vpop.f32.mrf.mxu0
  %459 = vmatprep.mubr.bf16.mxu0 %v341
  %460 = vmatmul.mubr.bf16.gmra.mxu0 %v153
  %v461 = vpop.f32.mrf.mxu0
  %v462 = vadd.f32 %v397, %v461
  %v463 = vpop.f32.mrf.mxu0
  %v464 = vpop.f32.mrf.mxu0
  %v465 = vadd.f32 %v400, %v464
  %v466 = vpop.f32.mrf.mxu0
  %467 = vmatprep.mubr.bf16.mxu0 %v344
  %468 = vmatmul.mubr.bf16.gmra.mxu0 %v157
  %v469 = vpop.f32.mrf.mxu0
  %v470 = vadd.f32 %v405, %v469
  %v471 = vpop.f32.mrf.mxu0
  %v472 = vpop.f32.mrf.mxu0
  %v473 = vadd.f32 %v408, %v472
  %v474 = vpop.f32.mrf.mxu0
  %475 = vdwg.mxu0
  %v476 = vld [vmem:[%s3] sm:$0x1]
  %vm477 = vcmp.ge.f32.partialorder %v446, 0.0
  %vm478 = vcmp.ge.f32.partialorder %v449, 0.0
  %vm479 = vcmp.ge.f32.partialorder %v454, 0.0
  %vm480 = vcmp.ge.f32.partialorder %v457, 0.0
  %vm481 = vcmp.ge.f32.partialorder %v462, 0.0
  %vm482 = vcmp.ge.f32.partialorder %v465, 0.0
  %vm483 = vcmp.ge.f32.partialorder %v470, 0.0
  %vm484 = vcmp.ge.f32.partialorder %v473, 0.0
  %v486 = vlaneseq
  %v487 = vshrl.u32 %v486, 7
  %v488 = vsub.s32 0, %v487
  %v489 = vrot.slane %v476, %v488
  %v491 = vmul.f32 %v489, %v446
  %v492 = vmul.f32 %v489, %v449
  %v493 = vmul.f32 %v489, %v454
  %v494 = vmul.f32 %v489, %v457
  %v495 = vmul.f32 %v489, %v462
  %v496 = vmul.f32 %v489, %v465
  %v497 = vmul.f32 %v489, %v470
  %v498 = vmul.f32 %v489, %v473
  %v499 = vsel %vm477, %v446, %v491
  %v500 = vsel %vm478, %v449, %v492
  %v501 = vsel %vm479, %v454, %v493
  %v502 = vsel %vm480, %v457, %v494
  %v503 = vsel %vm481, %v462, %v495
  %v504 = vsel %vm482, %v465, %v496
  %v505 = vsel %vm483, %v470, %v497
  %v506 = vsel %vm484, %v473, %v498
  %v507 = vpack.c.bf16 %v500, %v499
  %v508 = vpack.c.bf16 %v502, %v501
  %v509 = vpack.c.bf16 %v504, %v503
  %v510 = vpack.c.bf16 %v506, %v505
  %v515 = vunpack.c.l.b16 %v507
  %v516 = vunpack.c.h.b16 %v507
  %v517 = vunpack.c.l.b16 %v508
  %v518 = vunpack.c.h.b16 %v508
  %v519 = vunpack.c.l.b16 %v509
  %v520 = vunpack.c.h.b16 %v509
  %v521 = vunpack.c.l.b16 %v510
  %v522 = vunpack.c.h.b16 %v510
  %v523 = vpack.c.b16 %v515, %v515
  %v524 = vpack.c.b16 %v516, %v516
  %v525 = vpack.c.b16 %v517, %v517
  %v526 = vpack.c.b16 %v518, %v518
  %v527 = vpack.c.b16 %v519, %v519
  %v528 = vpack.c.b16 %v520, %v520
  %v529 = vpack.c.b16 %v521, %v521
  %v530 = vpack.c.b16 %v522, %v522
  %539 = vst [vmem:[%s4] sm:$0xf] %v523
  %540 = vst [vmem:[%s4 + $0x4] sm:$0xf] %v524
  %541 = vst [vmem:[%s4 + $0x8] sm:$0xf] %v525
  %542 = vst [vmem:[%s4 + $0xc] sm:$0xf] %v526
  %543 = vst [vmem:[%s4 + $0x10] sm:$0xf] %v527
  %544 = vst [vmem:[%s4 + $0x14] sm:$0xf] %v528
  %545 = vst [vmem:[%s4 + $0x18] sm:$0xf] %v529
  %546 = vst [vmem:[%s4 + $0x1c] sm:$0xf] %v530
  // Predicated region
  $region18: #{if_block_forward.14} parent=0 // pred_check
    _
  $region19: #{if_block_forward.14} parent=0 // pred_check_branch
    %548 = sbr.rel (0) target = $region21
  $region20: #{if_block_forward.14} parent=0 // pred_region
    _
  $region21: #{if_block_forward.14} parent=0 // pred_fallthru
    _
  // Predicated region
  $region22: #{if_block_forward.14} parent=0 // pred_check
    _
  $region23: #{if_block_forward.14} parent=0 // pred_check_branch
    %550 = sbr.rel (0) target = $region25
  $region24: #{if_block_forward.14} parent=0 // pred_region
    _
  $region25: #{if_block_forward.14} parent=0 // pred_fallthru
    _

// kernel: tile.20
$region0: #{tile.20}
  #allocation0 [shape = 's32[1]{0}', space=sflag, size = 0x4, scoped, tag = 'scoped memory for tile.20']
  %s0 = inlined_call_operand.vmem [shape: f32[16], index: 0, kind: input, shape index: {}]
  %s1 = inlined_call_operand.vmem [shape: f32[8,16], index: 1, kind: output, shape index: {}]
  // Predicated region
  $region2: #{tile.20} parent=0 // pred_check
    _
  $region3: #{tile.20} parent=0 // pred_check_branch
    %3 = sbr.rel (0) target = $region5
  $region4: #{tile.20} parent=0 // pred_region
    _
  $region5: #{tile.20} parent=0 // pred_fallthru
    _
  %v4 = vld [vmem:[%s0] ss:$0 sm:$0xff]
  %5 = vst [vmem:[%s1] sm:$0xff] %v4

// kernel: tile.25
$region0: #{tile.25}
  %s0 = inlined_call_operand.vmem [shape: f32[8,16], index: 0, kind: input, shape index: {}]
  %s1 = inlined_call_operand.vmem [shape: f32[1,128], index: 1, kind: output, shape index: {}]
  $region1: #{tile.25} parent=0
    #allocation0 [shape = 'u8[4096]{0}', space=vmem, size = 0x1000, scoped, tag = 'scoped mem for output reshape']
    %v2 = vld [vmem:[%s0] sm:$0x1]
    %vm3 = vcmask 130048
    %4 = vst.msk [vmem:[#allocation0] sm:$0x1] %vm3, %v2
    %s5 = scalar_lea.vmem %s0, 7
    %v6 = vld [vmem:[%s5] sm:$0x1]
    %7 = vrot.lane.b32.xlu0 %v6, 112
    %v8 = vpop.permute.xlu0 %7
    %vm9 = vcmask 1048448
    %10 = vst.msk [vmem:[#allocation0] sm:$0x1] %vm9, %v8
    %s11 = scalar_lea.vmem %s0, 6
    %v12 = vld [vmem:[%s11] sm:$0x1]
    %13 = vrot.lane.b32.xlu0 %v12, 96
    %v14 = vpop.permute.xlu0 %13
    %vm15 = vcmask 917248
    %16 = vst.msk [vmem:[#allocation0] sm:$0x1] %vm15, %v14
    %s17 = scalar_lea.vmem %s0, 5
    %v18 = vld [vmem:[%s17] sm:$0x1]
    %19 = vrot.lane.b32.xlu0 %v18, 80
    %v20 = vpop.permute.xlu0 %19
    %vm21 = vcmask 786048
    %22 = vst.msk [vmem:[#allocation0] sm:$0x1] %vm21, %v20
    %s23 = scalar_lea.vmem %s0, 4
    %v24 = vld [vmem:[%s23] sm:$0x1]
    %25 = vrot.lane.b32.xlu0 %v24, 64
    %v26 = vpop.permute.xlu0 %25
    %vm27 = vcmask 654848
    %28 = vst.msk [vmem:[#allocation0] sm:$0x1] %vm27, %v26
    %s29 = scalar_lea.vmem %s0, 3
    %v30 = vld [vmem:[%s29] sm:$0x1]
    %31 = vrot.lane.b32.xlu0 %v30, 48
    %v32 = vpop.permute.xlu0 %31
    %vm33 = vcmask 523648
    %34 = vst.msk [vmem:[#allocation0] sm:$0x1] %vm33, %v32
    %s35 = scalar_lea.vmem %s0, 2
    %v36 = vld [vmem:[%s35] sm:$0x1]
    %37 = vrot.lane.b32.xlu0 %v36, 32
    %v38 = vpop.permute.xlu0 %37
    %vm39 = vcmask 392448
    %40 = vst.msk [vmem:[#allocation0] sm:$0x1] %vm39, %v38
    %s41 = scalar_lea.vmem %s0, 1
    %v42 = vld [vmem:[%s41] sm:$0x1]
    %43 = vrot.lane.b32.xlu0 %v42, 16
    %v44 = vpop.permute.xlu0 %43
    %vm45 = vcmask 261248
    %46 = vst.msk [vmem:[#allocation0] sm:$0x1] %vm45, %v44
    %s48 = sshll.u32 1, 1
    %s49 = ssub.s32 %s48, 1
    %v51 = vld [vmem:[#allocation0] sm:%s49]
    %s52 = sshll.u32 1, 1
    %s53 = ssub.s32 %s52, 1
    %54 = vst [vmem:[%s1] sm:%s53] %v51

// kernel: tile.30
$region0: #{tile.30}
  #allocation0 [shape = 's32[1]{0}', space=sflag, size = 0x4, scoped, tag = 'scoped memory for tile.30']
  %s0 = inlined_call_operand.vmem [shape: f32[7], index: 0, kind: input, shape index: {}]
  %s1 = inlined_call_operand.vmem [shape: f32[8,7], index: 1, kind: output, shape index: {}]
  // Predicated region
  $region2: #{tile.30} parent=0 // pred_check
    _
  $region3: #{tile.30} parent=0 // pred_check_branch
    %3 = sbr.rel (0) target = $region5
  $region4: #{tile.30} parent=0 // pred_region
    _
  $region5: #{tile.30} parent=0 // pred_fallthru
    _
  %v4 = vld [vmem:[%s0] ss:$0 sm:$0xff]
  %5 = vst [vmem:[%s1] sm:$0xff] %v4

// kernel: tile.31
$region0: #{tile.31}
  %s0 = inlined_call_operand.vmem [shape: f32[8,7], index: 0, kind: input, shape index: {}]
  %s1 = inlined_call_operand.vmem [shape: f32[56], index: 1, kind: output, shape index: {}]
  $region1: #{tile.31} parent=0
    #allocation0 [shape = 'u8[4096]{0}', space=vmem, size = 0x1000, scoped, tag = 'scoped mem for output reshape']
    %v2 = vld [vmem:[%s0] sm:$0x1]
    %vm3 = vcmask 56320
    %4 = vst.msk [vmem:[#allocation0] sm:$0x1] %vm3, %v2
    %s5 = scalar_lea.vmem %s0, 7
    %v6 = vld [vmem:[%s5] sm:$0x1]
    %7 = vrot.lane.b32.xlu0 %v6, 49
    %v8 = vpop.permute.xlu0 %7
    %vm9 = vcmask 458120
    %10 = vst.msk [vmem:[#allocation0] sm:$0x1] %vm9, %v8
    %s11 = scalar_lea.vmem %s0, 6
    %v12 = vld [vmem:[%s11] sm:$0x1]
    %13 = vrot.lane.b32.xlu0 %v12, 42
    %v14 = vpop.permute.xlu0 %13
    %vm15 = vcmask 400720
    %16 = vst.msk [vmem:[#allocation0] sm:$0x1] %vm15, %v14
    %s17 = scalar_lea.vmem %s0, 5
    %v18 = vld [vmem:[%s17] sm:$0x1]
    %19 = vrot.lane.b32.xlu0 %v18, 35
    %v20 = vpop.permute.xlu0 %19
    %vm21 = vcmask 343320
    %22 = vst.msk [vmem:[#allocation0] sm:$0x1] %vm21, %v20
    %s23 = scalar_lea.vmem %s0, 4
    %v24 = vld [vmem:[%s23] sm:$0x1]
    %25 = vrot.lane.b32.xlu0 %v24, 28
    %v26 = vpop.permute.xlu0 %25
    %vm27 = vcmask 285920
    %28 = vst.msk [vmem:[#allocation0] sm:$0x1] %vm27, %v26
    %s29 = scalar_lea.vmem %s0, 3
    %v30 = vld [vmem:[%s29] sm:$0x1]
    %31 = vrot.lane.b32.xlu0 %v30, 21
    %v32 = vpop.permute.xlu0 %31
    %vm33 = vcmask 228520
    %34 = vst.msk [vmem:[#allocation0] sm:$0x1] %vm33, %v32
    %s35 = scalar_lea.vmem %s0, 2
    %v36 = vld [vmem:[%s35] sm:$0x1]
    %37 = vrot.lane.b32.xlu0 %v36, 14
    %v38 = vpop.permute.xlu0 %37
    %vm39 = vcmask 171120
    %40 = vst.msk [vmem:[#allocation0] sm:$0x1] %vm39, %v38
    %s41 = scalar_lea.vmem %s0, 1
    %v42 = vld [vmem:[%s41] sm:$0x1]
    %43 = vrot.lane.b32.xlu0 %v42, 7
    %v44 = vpop.permute.xlu0 %43
    %vm45 = vcmask 113720
    %46 = vst.msk [vmem:[#allocation0] sm:$0x1] %vm45, %v44
    %s48 = sshll.u32 1, 1
    %s49 = ssub.s32 %s48, 1
    %v51 = vld [vmem:[#allocation0] sm:%s49]
    %s52 = sshll.u32 1, 1
    %s53 = ssub.s32 %s52, 1
    %54 = vst [vmem:[%s1] sm:%s53] %v51

// kernel: tile.16
$region0: #{tile.16}
  #allocation0 [shape = 's32[1]{0}', space=sflag, size = 0x4, scoped, tag = 'scoped memory for tile.16']
  %s0 = inlined_call_operand.<no memory space> [shape: f32[], index: 0, kind: input, shape index: {}]
  %s1 = inlined_call_operand.vmem [shape: f32[56], index: 1, kind: output, shape index: {}]
  %v2 = vstv %s0
  %3 = vst [vmem:[%s1] sm:$0x1] %v2

// kernel: if_block_forward.23
$region0: #{if_block_forward.23}
  #allocation0 [shape = 'u32[]', space=smem, size = 0x4, offset = 0x4, fixed_abs, tag = 'smem constant byte address 0x4 - core index']
  #allocation1 [shape = 'u32[144,128]{1,0:T(1,128)}', space=vmem, size = 0x12000, scoped, tag = 'internal scratch']
  %s0 = inlined_call_operand.vmem [shape: bf16[512,432], index: 0, kind: input, shape index: {}]
  %s1 = inlined_call_operand.vmem [shape: bf16[432,128], index: 1, kind: input, shape index: {}]
  %s2 = inlined_call_operand.vmem [shape: f32[1,128], index: 2, kind: input, shape index: {}]
  %s3 = inlined_call_operand.vmem [shape: f32[1,128], index: 3, kind: input, shape index: {}]
  %s4 = inlined_call_operand.vmem [shape: f32[512,128], index: 4, kind: output, shape index: {}]
  %s5 = sld [smem:[#allocation0]]
  $region49: #{if_block_forward.23} parent=0
    _
  %s7 = ssub.s32 1, %s5
  %s8 = scalar_select 0, %s7, %s5
  loop: start=0, step=1, limit=4
  $region2: #{if_block_forward.23} parent=0 // loop_pre_header
    _
  $region3: #{if_block_forward.23} parent=0 // loop_header
    %s10 = sphi 0, %s14
    %p11 = scmp.ge.s32.totalorder %s10, 4
    %s20 = sphi 0, %s22
    %s23 = sphi 0, %s20
    %s24 = sphi 0, %s23
    %s40 = sphi 0, %s24
    %s44 = sphi 0, %s44
    %s46 = sphi 0, %s44
    %s47 = sphi 0, %s46
    %s61 = sphi 0, %s47
    %s65 = sphi 0, %s65
    %s67 = sphi 0, %s65
    %s68 = sphi 0, %s67
    %s82 = sphi 0, %s68
    %s86 = sphi 0, %s86
    %s88 = sphi 0, %s86
    %s89 = sphi 0, %s88
    %s103 = sphi 0, %s89
    %s109 = sphi 0, %s111
    %s112 = sphi 0, %s109
    %s113 = sphi 0, %s112
    %s129 = sphi 0, %s113
  $region4: #{if_block_forward.23} parent=0 // loop_header_branch
    %13 = sbr.rel (%p11) target = $region8
  $region5: #{if_block_forward.23} parent=0 // loop_body
    %s15 = ssub.s32 %s10, 1
    %s16 = ssub.s32 %s10, 2
    %s17 = sadd.s32 %s10, 1
    %s18 = ssub.s32 %s10, %s17
    %p19 = scmp.eq.s32.totalorder %s18, 0
    %s21 = sadd.s32 %s20, 1
    %s22 = scalar_select %p19, %s20, %s21
    %p25 = pneg %p19
    %p26 = scmp.eq.s32.totalorder %s10, 1
    %p27 = por %p25, %p26
    %p28 = scmp.ne.s32.totalorder %s20, %s23
    %p29 = scmp.eq.s32.totalorder %s10, 0
    %p30 = por %p28, %p29
    %p31 = scmp.ne.s32.totalorder %s20, %s23
    %p32 = scmp.eq.s32.totalorder %s15, 1
    %p33 = por %p31, %p32
    %p34 = scmp.ne.s32.totalorder %s23, %s24
    %p35 = scmp.eq.s32.totalorder %s15, 0
    %p36 = por %p34, %p35
    %p37 = scmp.ne.s32.totalorder %s23, %s24
    %p38 = scmp.eq.s32.totalorder %s16, 1
    %p39 = por %p37, %p38
    %p41 = scmp.ne.s32.totalorder %s24, %s40
    %p42 = scmp.eq.s32.totalorder %s16, 0
    %p43 = por %p41, %p42
    %s45 = sadd.s32 %s44, 1
    %p48 = scmp.eq.s32.totalorder %s10, 1
    %p49 = scmp.ne.s32.totalorder %s44, %s46
    %p50 = scmp.eq.s32.totalorder %s10, 0
    %p51 = por %p49, %p50
    %p52 = scmp.ne.s32.totalorder %s44, %s46
    %p53 = scmp.eq.s32.totalorder %s15, 1
    %p54 = por %p52, %p53
    %p55 = scmp.ne.s32.totalorder %s46, %s47
    %p56 = scmp.eq.s32.totalorder %s15, 0
    %p57 = por %p55, %p56
    %p58 = scmp.ne.s32.totalorder %s46, %s47
    %p59 = scmp.eq.s32.totalorder %s16, 1
    %p60 = por %p58, %p59
    %p62 = scmp.ne.s32.totalorder %s47, %s61
    %p63 = scmp.eq.s32.totalorder %s16, 0
    %p64 = por %p62, %p63
    %s66 = sadd.s32 %s65, 1
    %p69 = scmp.eq.s32.totalorder %s10, 1
    %p70 = scmp.ne.s32.totalorder %s65, %s67
    %p71 = scmp.eq.s32.totalorder %s10, 0
    %p72 = por %p70, %p71
    %p73 = scmp.ne.s32.totalorder %s65, %s67
    %p74 = scmp.eq.s32.totalorder %s15, 1
    %p75 = por %p73, %p74
    %p76 = scmp.ne.s32.totalorder %s67, %s68
    %p77 = scmp.eq.s32.totalorder %s15, 0
    %p78 = por %p76, %p77
    %p79 = scmp.ne.s32.totalorder %s67, %s68
    %p80 = scmp.eq.s32.totalorder %s16, 1
    %p81 = por %p79, %p80
    %p83 = scmp.ne.s32.totalorder %s68, %s82
    %p84 = scmp.eq.s32.totalorder %s16, 0
    %p85 = por %p83, %p84
    %s87 = sadd.s32 %s86, 1
    %p90 = scmp.eq.s32.totalorder %s10, 1
    %p91 = scmp.ne.s32.totalorder %s86, %s88
    %p92 = scmp.eq.s32.totalorder %s10, 0
    %p93 = por %p91, %p92
    %p94 = scmp.ne.s32.totalorder %s86, %s88
    %p95 = scmp.eq.s32.totalorder %s15, 1
    %p96 = por %p94, %p95
    %p97 = scmp.ne.s32.totalorder %s88, %s89
    %p98 = scmp.eq.s32.totalorder %s15, 0
    %p99 = por %p97, %p98
    %p100 = scmp.ne.s32.totalorder %s88, %s89
    %p101 = scmp.eq.s32.totalorder %s16, 1
    %p102 = por %p100, %p101
    %p104 = scmp.ne.s32.totalorder %s89, %s103
    %p105 = scmp.eq.s32.totalorder %s16, 0
    %p106 = por %p104, %p105
    %s107 = ssub.s32 %s10, %s17
    %p108 = scmp.eq.s32.totalorder %s107, 0
    %s110 = sadd.s32 %s109, 1
    %s111 = scalar_select %p108, %s109, %s110
    %p114 = pneg %p108
    %p115 = scmp.eq.s32.totalorder %s10, 1
    %p116 = por %p114, %p115
    %p117 = scmp.ne.s32.totalorder %s109, %s112
    %p118 = scmp.eq.s32.totalorder %s10, 0
    %p119 = por %p117, %p118
    %p120 = scmp.ne.s32.totalorder %s109, %s112
    %p121 = scmp.eq.s32.totalorder %s15, 1
    %p122 = por %p120, %p121
    %p123 = scmp.ne.s32.totalorder %s112, %s113
    %p124 = scmp.eq.s32.totalorder %s15, 0
    %p125 = por %p123, %p124
    %p126 = scmp.ne.s32.totalorder %s112, %s113
    %p127 = scmp.eq.s32.totalorder %s16, 1
    %p128 = por %p126, %p127
    %p130 = scmp.ne.s32.totalorder %s113, %s129
    %p131 = scmp.eq.s32.totalorder %s16, 0
    %p132 = por %p130, %p131
    %p133 = scmp.le.s32.totalorder 1, %s10
    %p134 = scmp.lt.s32.totalorder %s10, 3
    %p135 = pnand %p133, %p134
    %p136 = pneg %p135
    // Predicated region
    $region9: #{if_block_forward.23} parent=5 // pred_check
      _
    $region10: #{if_block_forward.23} parent=5 // pred_check_branch
      %138 = sbr.rel (%p135) target = $region12
    $region11: #{if_block_forward.23} parent=5 // pred_region
      %s139 = ssub.s32 %s10, 1
      // Predicated region
      $region13: #{if_block_forward.23} parent=11 // pred_check
        %p140 = pneg %p57
      $region14: #{if_block_forward.23} parent=11 // pred_check_branch
        %142 = sbr.rel (%p140) target = $region16
      $region15: #{if_block_forward.23} parent=11 // pred_region
        _
      $region16: #{if_block_forward.23} parent=11 // pred_fallthru
        _
      // Predicated region
      $region17: #{if_block_forward.23} parent=11 // pred_check
        %p143 = pneg %p78
      $region18: #{if_block_forward.23} parent=11 // pred_check_branch
        %145 = sbr.rel (%p143) target = $region20
      $region19: #{if_block_forward.23} parent=11 // pred_region
        _
      $region20: #{if_block_forward.23} parent=11 // pred_fallthru
        _
      // Predicated region
      $region21: #{if_block_forward.23} parent=11 // pred_check
        %p146 = pneg %p99
      $region22: #{if_block_forward.23} parent=11 // pred_check_branch
        %148 = sbr.rel (%p146) target = $region24
      $region23: #{if_block_forward.23} parent=11 // pred_region
        _
      $region24: #{if_block_forward.23} parent=11 // pred_fallthru
        _
    $region12: #{if_block_forward.23} parent=5 // pred_fallthru
      _
    %p149 = scmp.lt.s32.totalorder %s10, 2
    // Predicated region
    $region25: #{if_block_forward.23} parent=5 // pred_check
      %p150 = pneg %p149
    $region26: #{if_block_forward.23} parent=5 // pred_check_branch
      %152 = sbr.rel (%p150) target = $region28
    $region27: #{if_block_forward.23} parent=5 // pred_region
      // Predicated region
      $region29: #{if_block_forward.23} parent=27 // pred_check
        %p153 = pneg %p30
      $region30: #{if_block_forward.23} parent=27 // pred_check_branch
        %155 = sbr.rel (%p153) target = $region32
      $region31: #{if_block_forward.23} parent=27 // pred_region
        %s156 = smul.u32 32, %s10
        %p157 = scmp.lt.s32.totalorder %s156, 63
        %s158 = scalar_select %p157, %s156, 63
        %s159 = smul.addr %s158, 4
        %s160 = smul.addr %s159, 4
        %s161 = scalar_lea.vmem %s0, %s160
        %s162 = smul.u32 32, %s10
      $region32: #{if_block_forward.23} parent=27 // pred_fallthru
        _
    $region28: #{if_block_forward.23} parent=5 // pred_fallthru
      _
    %p163 = scmp.le.s32.totalorder 1, %s10
    %p164 = scmp.lt.s32.totalorder %s10, 3
    %p165 = pnand %p163, %p164
    %p166 = pneg %p165
    // Predicated region
    $region33: #{if_block_forward.23} parent=5 // pred_check
      _
    $region34: #{if_block_forward.23} parent=5 // pred_check_branch
      %168 = sbr.rel (%p165) target = $region36
    $region35: #{if_block_forward.23} parent=5 // pred_region
      %s169 = ssub.s32 %s10, 1
      %s170 = smul.u32 32, %s15
      %p171 = scmp.lt.s32.totalorder %s170, 63
      %s172 = scalar_select %p171, %s170, 63
      %s173 = smul.addr %s172, 4
      %s174 = smul.addr %s173, 4
      %s175 = scalar_lea.vmem %s0, %s174
      %p176 = pneg %p36
      %p177 = pneg %p33
      %p178 = pneg %p57
      %p179 = pneg %p54
      %p180 = pneg %p78
      %p181 = pneg %p75
      %p182 = pneg %p99
      %p183 = pneg %p96
      %p184 = pneg %p125
      %p185 = pneg %p122
      %s186 = smul.u32 32, %s15
      %p187 = scmp.lt.s32.totalorder %s186, 63
      %s188 = scalar_select %p187, %s186, 63
      %s189 = smul.addr %s188, 8
      %s190 = scalar_lea.vmem %s4, %s189
      %s191 = smul.u32 32, %s15
      %p192 = scmp.lt.s32.totalorder %s191, 63
      %s193 = scalar_select %p192, %s191, 63
      %s194 = smul.addr %s193, 4
      %s195 = smul.addr %s194, 4
      %s196 = scalar_lea.vmem %s0, %s195
      %s197 = smul.u32 32, %s15
      %s198 = smul.u32 32, %s15
      %p199 = scmp.lt.s32.totalorder %s198, 63
      %s200 = scalar_select %p199, %s198, 63
      %s201 = smul.addr %s200, 8
      %s202 = scalar_lea.vmem %s4, %s201
      %s203 = smul.u32 32, %s15
      %v205 = vld [vmem:[%s196] sm:$0xff]
      %v206 = vld [vmem:[%s196 + $0x8] sm:$0xff]
      %v207 = vld [vmem:[%s196 + $0x10] sm:$0xff]
      %v208 = vld [vmem:[%s196 + $0x18] sm:$0xff]
      %v209 = vld [vmem:[%s196 + $0x20] sm:$0xff]
      %v210 = vld [vmem:[%s196 + $0x28] sm:$0xff]
      %v211 = vld [vmem:[%s196 + $0x30] sm:$0xff]
      %v212 = vld [vmem:[%s196 + $0x38] sm:$0xff]
      %v213 = vld [vmem:[%s196 + $0x40] sm:$0xff]
      %v214 = vld [vmem:[%s196 + $0x48] sm:$0xff]
      %v215 = vld [vmem:[%s196 + $0x50] sm:$0xff]
      %v216 = vld [vmem:[%s196 + $0x58] sm:$0xff]
      %v217 = vld [vmem:[%s196 + $0x60] sm:$0xff]
      %v218 = vld [vmem:[%s196 + $0x68] sm:$0xff]
      %v219 = vld [vmem:[%s196 + $0x70] sm:$0xff]
      %v220 = vld [vmem:[%s196 + $0x78] sm:$0xff]
      %v221 = vld [vmem:[%s196 + $0x80] sm:$0xff]
      %v222 = vld [vmem:[%s196 + $0x88] sm:$0xff]
      %v223 = vld [vmem:[%s196 + $0x90] sm:$0xff]
      %v224 = vld [vmem:[%s196 + $0x98] sm:$0xff]
      %v225 = vld [vmem:[%s196 + $0xa0] sm:$0xff]
      %v226 = vld [vmem:[%s196 + $0xa8] sm:$0xff]
      %v227 = vld [vmem:[%s196 + $0xb0] sm:$0xff]
      %v228 = vld [vmem:[%s196 + $0xb8] sm:$0xff]
      %v229 = vld [vmem:[%s196 + $0xc0] sm:$0xff]
      %v230 = vld [vmem:[%s196 + $0xc8] sm:$0xff]
      %v231 = vld [vmem:[%s196 + $0xd0] sm:$0xff]
      %v232 = vld [vmem:[%s196 + $0xd8] sm:$0xff]
      %v233 = vld [vmem:[%s196 + $0xe0] sm:$0xff]
      %v234 = vld [vmem:[%s196 + $0xe8] sm:$0xff]
      %v235 = vld [vmem:[%s196 + $0xf0] sm:$0xff]
      %v236 = vld [vmem:[%s196 + $0xf8] sm:$0xff]
      %v237 = vld [vmem:[%s196 + $0x100] sm:$0xff]
      %v238 = vld [vmem:[%s196 + $0x108] sm:$0xff]
      %v239 = vld [vmem:[%s196 + $0x110] sm:$0xff]
      %v240 = vld [vmem:[%s196 + $0x118] sm:$0xff]
      %v241 = vld [vmem:[%s196 + $0x120] sm:$0xff]
      %v242 = vld [vmem:[%s196 + $0x128] sm:$0xff]
      %v243 = vld [vmem:[%s196 + $0x130] sm:$0xff]
      %v244 = vld [vmem:[%s196 + $0x138] sm:$0xff]
      %v245 = vld [vmem:[%s196 + $0x140] sm:$0xff]
      %v246 = vld [vmem:[%s196 + $0x148] sm:$0xff]
      %v247 = vld [vmem:[%s196 + $0x150] sm:$0xff]
      %v248 = vld [vmem:[%s196 + $0x158] sm:$0xff]
      %v249 = vld [vmem:[%s196 + $0x160] sm:$0xff]
      %v250 = vld [vmem:[%s196 + $0x168] sm:$0xff]
      %v251 = vld [vmem:[%s196 + $0x170] sm:$0xff]
      %v252 = vld [vmem:[%s196 + $0x178] sm:$0xff]
      %v253 = vld [vmem:[%s196 + $0x180] sm:$0xff]
      %v254 = vld [vmem:[%s196 + $0x188] sm:$0xff]
      %v255 = vld [vmem:[%s196 + $0x190] sm:$0xff]
      %v256 = vld [vmem:[%s196 + $0x198] sm:$0xff]
      %v257 = vld [vmem:[%s196 + $0x1a0] sm:$0xff]
      %v258 = vld [vmem:[%s196 + $0x1a8] sm:$0xff]
      %v259 = vld [vmem:[%s196 + $0x1b0] sm:$0xff]
      %v260 = vld [vmem:[%s196 + $0x1b8] sm:$0xff]
      %v261 = vld [vmem:[%s196 + $0x1c0] sm:$0xff]
      %v262 = vld [vmem:[%s196 + $0x1c8] sm:$0xff]
      %v263 = vld [vmem:[%s196 + $0x1d0] sm:$0xff]
      %v264 = vld [vmem:[%s196 + $0x1d8] sm:$0xff]
      %v265 = vld [vmem:[%s196 + $0x1e0] sm:$0xff]
      %v266 = vld [vmem:[%s196 + $0x1e8] sm:$0xff]
      %v267 = vld [vmem:[%s196 + $0x1f0] sm:$0xff]
      %v268 = vld [vmem:[%s196 + $0x1f8] sm:$0xff]
      %v269 = vld [vmem:[%s1] sm:$0xf]
      %v270 = vld [vmem:[%s1 + $0x4] sm:$0xf]
      %v271 = vld [vmem:[%s1 + $0x8] sm:$0xf]
      %v272 = vld [vmem:[%s1 + $0xc] sm:$0xf]
      %v273 = vld [vmem:[%s1 + $0x10] sm:$0xf]
      %v274 = vld [vmem:[%s1 + $0x14] sm:$0xf]
      %v275 = vld [vmem:[%s1 + $0x18] sm:$0xf]
      %v276 = vld [vmem:[%s1 + $0x1c] sm:$0xf]
      %v277 = vld [vmem:[%s1 + $0x20] sm:$0xf]
      %v278 = vld [vmem:[%s1 + $0x24] sm:$0xf]
      %v279 = vld [vmem:[%s1 + $0x28] sm:$0xf]
      %v280 = vld [vmem:[%s1 + $0x2c] sm:$0xf]
      %v281 = vld [vmem:[%s1 + $0x30] sm:$0xf]
      %v282 = vld [vmem:[%s1 + $0x34] sm:$0xf]
      %v283 = vld [vmem:[%s1 + $0x38] sm:$0xf]
      %v284 = vld [vmem:[%s1 + $0x3c] sm:$0xf]
      %v285 = vld [vmem:[%s1 + $0x40] sm:$0xf]
      %v286 = vld [vmem:[%s1 + $0x44] sm:$0xf]
      %v287 = vld [vmem:[%s1 + $0x48] sm:$0xf]
      %v288 = vld [vmem:[%s1 + $0x4c] sm:$0xf]
      %v289 = vld [vmem:[%s1 + $0x50] sm:$0xf]
      %v290 = vld [vmem:[%s1 + $0x54] sm:$0xf]
      %v291 = vld [vmem:[%s1 + $0x58] sm:$0xf]
      %v292 = vld [vmem:[%s1 + $0x5c] sm:$0xf]
      %v293 = vld [vmem:[%s1 + $0x60] sm:$0xf]
      %v294 = vld [vmem:[%s1 + $0x64] sm:$0xf]
      %v295 = vld [vmem:[%s1 + $0x68] sm:$0xf]
      %v296 = vld [vmem:[%s1 + $0x6c] sm:$0xf]
      %v297 = vld [vmem:[%s1 + $0x70] sm:$0xf]
      %v298 = vld [vmem:[%s1 + $0x74] sm:$0xf]
      %v299 = vld [vmem:[%s1 + $0x78] sm:$0xf]
      %v300 = vld [vmem:[%s1 + $0x7c] sm:$0xf]
      %v301 = vld [vmem:[%s1 + $0x80] sm:$0xf]
      %v302 = vld [vmem:[%s1 + $0x84] sm:$0xf]
      %v303 = vld [vmem:[%s1 + $0x88] sm:$0xf]
      %v304 = vld [vmem:[%s1 + $0x8c] sm:$0xf]
      %v305 = vld [vmem:[%s1 + $0x90] sm:$0xf]
      %v306 = vld [vmem:[%s1 + $0x94] sm:$0xf]
      %v307 = vld [vmem:[%s1 + $0x98] sm:$0xf]
      %v308 = vld [vmem:[%s1 + $0x9c] sm:$0xf]
      %v309 = vld [vmem:[%s1 + $0xa0] sm:$0xf]
      %v310 = vld [vmem:[%s1 + $0xa4] sm:$0xf]
      %v311 = vld [vmem:[%s1 + $0xa8] sm:$0xf]
      %v312 = vld [vmem:[%s1 + $0xac] sm:$0xf]
      %v313 = vld [vmem:[%s1 + $0xb0] sm:$0xf]
      %v314 = vld [vmem:[%s1 + $0xb4] sm:$0xf]
      %v315 = vld [vmem:[%s1 + $0xb8] sm:$0xf]
      %v316 = vld [vmem:[%s1 + $0xbc] sm:$0xf]
      %v317 = vld [vmem:[%s1 + $0xc0] sm:$0xf]
      %v318 = vld [vmem:[%s1 + $0xc4] sm:$0xf]
      %v319 = vld [vmem:[%s1 + $0xc8] sm:$0xf]
      %v320 = vld [vmem:[%s1 + $0xcc] sm:$0xf]
      %v321 = vld [vmem:[%s1 + $0xd0] sm:$0xf]
      %v322 = vld [vmem:[%s1 + $0xd4] sm:$0xf]
      %v323 = vld [vmem:[%s2] sm:$0x1]
      %v325 = vlaneseq
      %v326 = vshrl.u32 %v325, 7
      %v327 = vsub.s32 0, %v326
      %v328 = vrot.slane %v323, %v327
      %v394 = vunpack.c.l.b16 %v205
      %v395 = vunpack.c.h.b16 %v205
      %v396 = vunpack.c.l.b16 %v206
      %v397 = vunpack.c.h.b16 %v206
      %v398 = vunpack.c.l.b16 %v207
      %v399 = vunpack.c.h.b16 %v207
      %v400 = vunpack.c.l.b16 %v208
      %v401 = vunpack.c.h.b16 %v208
      %v402 = vunpack.c.l.b16 %v209
      %v403 = vunpack.c.h.b16 %v209
      %v404 = vunpack.c.l.b16 %v210
      %v405 = vunpack.c.h.b16 %v210
      %v406 = vunpack.c.l.b16 %v211
      %v407 = vunpack.c.h.b16 %v211
      %v408 = vunpack.c.l.b16 %v212
      %v409 = vunpack.c.h.b16 %v212
      %v410 = vunpack.c.l.b16 %v213
      %v411 = vunpack.c.h.b16 %v213
      %v412 = vunpack.c.l.b16 %v214
      %v413 = vunpack.c.h.b16 %v214
      %v414 = vunpack.c.l.b16 %v215
      %v415 = vunpack.c.h.b16 %v215
      %v416 = vunpack.c.l.b16 %v216
      %v417 = vunpack.c.h.b16 %v216
      %v418 = vunpack.c.l.b16 %v217
      %v419 = vunpack.c.h.b16 %v217
      %v420 = vunpack.c.l.b16 %v218
      %v421 = vunpack.c.h.b16 %v218
      %v422 = vunpack.c.l.b16 %v219
      %v423 = vunpack.c.h.b16 %v219
      %v424 = vunpack.c.l.b16 %v220
      %v425 = vunpack.c.h.b16 %v220
      %v426 = vunpack.c.l.b16 %v221
      %v427 = vunpack.c.h.b16 %v221
      %v428 = vunpack.c.l.b16 %v222
      %v429 = vunpack.c.h.b16 %v222
      %v430 = vunpack.c.l.b16 %v223
      %v431 = vunpack.c.h.b16 %v223
      %v432 = vunpack.c.l.b16 %v224
      %v433 = vunpack.c.h.b16 %v224
      %v434 = vunpack.c.l.b16 %v225
      %v435 = vunpack.c.h.b16 %v225
      %v436 = vunpack.c.l.b16 %v226
      %v437 = vunpack.c.h.b16 %v226
      %v438 = vunpack.c.l.b16 %v227
      %v439 = vunpack.c.h.b16 %v227
      %v440 = vunpack.c.l.b16 %v228
      %v441 = vunpack.c.h.b16 %v228
      %v442 = vunpack.c.l.b16 %v229
      %v443 = vunpack.c.h.b16 %v229
      %v444 = vunpack.c.l.b16 %v230
      %v445 = vunpack.c.h.b16 %v230
      %v446 = vunpack.c.l.b16 %v231
      %v447 = vunpack.c.h.b16 %v231
      %v448 = vunpack.c.l.b16 %v232
      %v449 = vunpack.c.h.b16 %v232
      %v450 = vunpack.c.l.b16 %v233
      %v451 = vunpack.c.h.b16 %v233
      %v452 = vunpack.c.l.b16 %v234
      %v453 = vunpack.c.h.b16 %v234
      %v454 = vunpack.c.l.b16 %v235
      %v455 = vunpack.c.h.b16 %v235
      %v456 = vunpack.c.l.b16 %v236
      %v457 = vunpack.c.h.b16 %v236
      %v458 = vunpack.c.l.b16 %v237
      %v459 = vunpack.c.h.b16 %v237
      %v460 = vunpack.c.l.b16 %v238
      %v461 = vunpack.c.h.b16 %v238
      %v462 = vunpack.c.l.b16 %v239
      %v463 = vunpack.c.h.b16 %v239
      %v464 = vunpack.c.l.b16 %v240
      %v465 = vunpack.c.h.b16 %v240
      %v466 = vunpack.c.l.b16 %v241
      %v467 = vunpack.c.h.b16 %v241
      %v468 = vunpack.c.l.b16 %v242
      %v469 = vunpack.c.h.b16 %v242
      %v470 = vunpack.c.l.b16 %v243
      %v471 = vunpack.c.h.b16 %v243
      %v472 = vunpack.c.l.b16 %v244
      %v473 = vunpack.c.h.b16 %v244
      %v474 = vunpack.c.l.b16 %v245
      %v475 = vunpack.c.h.b16 %v245
      %v476 = vunpack.c.l.b16 %v246
      %v477 = vunpack.c.h.b16 %v246
      %v478 = vunpack.c.l.b16 %v247
      %v479 = vunpack.c.h.b16 %v247
      %v480 = vunpack.c.l.b16 %v248
      %v481 = vunpack.c.h.b16 %v248
      %v482 = vunpack.c.l.b16 %v249
      %v483 = vunpack.c.h.b16 %v249
      %v484 = vunpack.c.l.b16 %v250
      %v485 = vunpack.c.h.b16 %v250
      %v486 = vunpack.c.l.b16 %v251
      %v487 = vunpack.c.h.b16 %v251
      %v488 = vunpack.c.l.b16 %v252
      %v489 = vunpack.c.h.b16 %v252
      %v490 = vunpack.c.l.b16 %v253
      %v491 = vunpack.c.h.b16 %v253
      %v492 = vunpack.c.l.b16 %v254
      %v493 = vunpack.c.h.b16 %v254
      %v494 = vunpack.c.l.b16 %v255
      %v495 = vunpack.c.h.b16 %v255
      %v496 = vunpack.c.l.b16 %v256
      %v497 = vunpack.c.h.b16 %v256
      %v498 = vunpack.c.l.b16 %v257
      %v499 = vunpack.c.h.b16 %v257
      %v500 = vunpack.c.l.b16 %v258
      %v501 = vunpack.c.h.b16 %v258
      %v502 = vunpack.c.l.b16 %v259
      %v503 = vunpack.c.h.b16 %v259
      %v504 = vunpack.c.l.b16 %v260
      %v505 = vunpack.c.h.b16 %v260
      %v506 = vunpack.c.l.b16 %v261
      %v507 = vunpack.c.h.b16 %v261
      %v508 = vunpack.c.l.b16 %v262
      %v509 = vunpack.c.h.b16 %v262
      %v510 = vunpack.c.l.b16 %v263
      %v511 = vunpack.c.h.b16 %v263
      %v512 = vunpack.c.l.b16 %v264
      %v513 = vunpack.c.h.b16 %v264
      %v514 = vunpack.c.l.b16 %v265
      %v515 = vunpack.c.h.b16 %v265
      %v516 = vunpack.c.l.b16 %v266
      %v517 = vunpack.c.h.b16 %v266
      %v518 = vunpack.c.l.b16 %v267
      %v519 = vunpack.c.h.b16 %v267
      %v520 = vunpack.c.l.b16 %v268
      %v521 = vunpack.c.h.b16 %v268
      %v522 = vpack.c.b16 %v398, %v394
      %v523 = vpack.c.b16 %v399, %v395
      %v524 = vpack.c.b16 %v400, %v396
      %v525 = vpack.c.b16 %v401, %v397
      %v526 = vpack.c.b16 %v406, %v402
      %v527 = vpack.c.b16 %v407, %v403
      %v528 = vpack.c.b16 %v408, %v404
      %v529 = vpack.c.b16 %v409, %v405
      %v530 = vpack.c.b16 %v414, %v410
      %v531 = vpack.c.b16 %v415, %v411
      %v532 = vpack.c.b16 %v416, %v412
      %v533 = vpack.c.b16 %v417, %v413
      %v534 = vpack.c.b16 %v422, %v418
      %v535 = vpack.c.b16 %v423, %v419
      %v536 = vpack.c.b16 %v424, %v420
      %v537 = vpack.c.b16 %v425, %v421
      %v538 = vpack.c.b16 %v430, %v426
      %v539 = vpack.c.b16 %v431, %v427
      %v540 = vpack.c.b16 %v432, %v428
      %v541 = vpack.c.b16 %v433, %v429
      %v542 = vpack.c.b16 %v438, %v434
      %v543 = vpack.c.b16 %v439, %v435
      %v544 = vpack.c.b16 %v440, %v436
      %v545 = vpack.c.b16 %v441, %v437
      %v546 = vpack.c.b16 %v446, %v442
      %v547 = vpack.c.b16 %v447, %v443
      %v548 = vpack.c.b16 %v448, %v444
      %v549 = vpack.c.b16 %v449, %v445
      %v550 = vpack.c.b16 %v454, %v450
      %v551 = vpack.c.b16 %v455, %v451
      %v552 = vpack.c.b16 %v456, %v452
      %v553 = vpack.c.b16 %v457, %v453
      %v554 = vpack.c.b16 %v462, %v458
      %v555 = vpack.c.b16 %v463, %v459
      %v556 = vpack.c.b16 %v464, %v460
      %v557 = vpack.c.b16 %v465, %v461
      %v558 = vpack.c.b16 %v470, %v466
      %v559 = vpack.c.b16 %v471, %v467
      %v560 = vpack.c.b16 %v472, %v468
      %v561 = vpack.c.b16 %v473, %v469
      %v562 = vpack.c.b16 %v478, %v474
      %v563 = vpack.c.b16 %v479, %v475
      %v564 = vpack.c.b16 %v480, %v476
      %v565 = vpack.c.b16 %v481, %v477
      %v566 = vpack.c.b16 %v486, %v482
      %v567 = vpack.c.b16 %v487, %v483
      %v568 = vpack.c.b16 %v488, %v484
      %v569 = vpack.c.b16 %v489, %v485
      %v570 = vpack.c.b16 %v494, %v490
      %v571 = vpack.c.b16 %v495, %v491
      %v572 = vpack.c.b16 %v496, %v492
      %v573 = vpack.c.b16 %v497, %v493
      %v574 = vpack.c.b16 %v502, %v498
      %v575 = vpack.c.b16 %v503, %v499
      %v576 = vpack.c.b16 %v504, %v500
      %v577 = vpack.c.b16 %v505, %v501
      %v578 = vpack.c.b16 %v510, %v506
      %v579 = vpack.c.b16 %v511, %v507
      %v580 = vpack.c.b16 %v512, %v508
      %v581 = vpack.c.b16 %v513, %v509
      %v582 = vpack.c.b16 %v518, %v514
      %v583 = vpack.c.b16 %v519, %v515
      %v584 = vpack.c.b16 %v520, %v516
      %v585 = vpack.c.b16 %v521, %v517
      %v688 = vunpack.c.l.b16 %v269
      %v689 = vunpack.c.l.b16 %v270
      %v690 = vunpack.c.l.b16 %v271
      %v691 = vunpack.c.l.b16 %v272
      %v692 = vunpack.c.l.b16 %v273
      %v693 = vunpack.c.l.b16 %v274
      %v694 = vunpack.c.l.b16 %v275
      %v695 = vunpack.c.l.b16 %v276
      %v696 = vunpack.c.l.b16 %v277
      %v697 = vunpack.c.l.b16 %v278
      %v698 = vunpack.c.l.b16 %v279
      %v699 = vunpack.c.l.b16 %v280
      %v700 = vunpack.c.l.b16 %v281
      %v701 = vunpack.c.l.b16 %v282
      %v702 = vunpack.c.l.b16 %v283
      %v703 = vunpack.c.l.b16 %v284
      %v704 = vunpack.c.l.b16 %v285
      %v705 = vunpack.c.l.b16 %v286
      %v706 = vunpack.c.l.b16 %v287
      %v707 = vunpack.c.l.b16 %v288
      %v708 = vunpack.c.l.b16 %v289
      %v709 = vunpack.c.l.b16 %v290
      %v710 = vunpack.c.l.b16 %v291
      %v711 = vunpack.c.l.b16 %v292
      %v712 = vunpack.c.l.b16 %v293
      %v713 = vunpack.c.l.b16 %v294
      %v714 = vunpack.c.l.b16 %v295
      %v715 = vunpack.c.l.b16 %v296
      %v716 = vunpack.c.l.b16 %v297
      %v717 = vunpack.c.l.b16 %v298
      %v718 = vunpack.c.l.b16 %v299
      %v719 = vunpack.c.l.b16 %v300
      %v720 = vunpack.c.l.b16 %v301
      %v721 = vunpack.c.l.b16 %v302
      %v722 = vunpack.c.l.b16 %v303
      %v723 = vunpack.c.l.b16 %v304
      %v724 = vunpack.c.l.b16 %v305
      %v725 = vunpack.c.l.b16 %v306
      %v726 = vunpack.c.l.b16 %v307
      %v727 = vunpack.c.l.b16 %v308
      %v728 = vunpack.c.l.b16 %v309
      %v729 = vunpack.c.l.b16 %v310
      %v730 = vunpack.c.l.b16 %v311
      %v731 = vunpack.c.l.b16 %v312
      %v732 = vunpack.c.l.b16 %v313
      %v733 = vunpack.c.l.b16 %v314
      %v734 = vunpack.c.l.b16 %v315
      %v735 = vunpack.c.l.b16 %v316
      %v736 = vunpack.c.l.b16 %v317
      %v737 = vunpack.c.l.b16 %v318
      %v738 = vunpack.c.l.b16 %v319
      %v739 = vunpack.c.l.b16 %v320
      %v740 = vunpack.c.l.b16 %v321
      %v741 = vunpack.c.l.b16 %v322
      %v742 = vpack.c.b16 %v689, %v688
      %v743 = vpack.c.b16 %v691, %v690
      %v744 = vpack.c.b16 %v693, %v692
      %v745 = vpack.c.b16 %v695, %v694
      %v746 = vpack.c.b16 %v697, %v696
      %v747 = vpack.c.b16 %v699, %v698
      %v748 = vpack.c.b16 %v701, %v700
      %v749 = vpack.c.b16 %v703, %v702
      %v750 = vpack.c.b16 %v705, %v704
      %v751 = vpack.c.b16 %v707, %v706
      %v752 = vpack.c.b16 %v709, %v708
      %v753 = vpack.c.b16 %v711, %v710
      %v754 = vpack.c.b16 %v713, %v712
      %v755 = vpack.c.b16 %v715, %v714
      %v756 = vpack.c.b16 %v717, %v716
      %v757 = vpack.c.b16 %v719, %v718
      %v758 = vpack.c.b16 %v721, %v720
      %v759 = vpack.c.b16 %v723, %v722
      %v760 = vpack.c.b16 %v725, %v724
      %v761 = vpack.c.b16 %v727, %v726
      %v762 = vpack.c.b16 %v729, %v728
      %v763 = vpack.c.b16 %v731, %v730
      %v764 = vpack.c.b16 %v733, %v732
      %v765 = vpack.c.b16 %v735, %v734
      %v766 = vpack.c.b16 %v737, %v736
      %v767 = vpack.c.b16 %v739, %v738
      %v768 = vpack.c.b16 %v741, %v740
      %vm796 = vcmask 392192
      %v798 = vsel %vm796, %v525, 0
      %v801 = vsel %vm796, %v529, 0
      %v804 = vsel %vm796, %v533, 0
      %v807 = vsel %vm796, %v537, 0
      %v810 = vsel %vm796, %v541, 0
      %v813 = vsel %vm796, %v545, 0
      %v816 = vsel %vm796, %v549, 0
      %v819 = vsel %vm796, %v553, 0
      %v822 = vsel %vm796, %v557, 0
      %v825 = vsel %vm796, %v561, 0
      %v828 = vsel %vm796, %v565, 0
      %v831 = vsel %vm796, %v569, 0
      %v834 = vsel %vm796, %v573, 0
      %v837 = vsel %vm796, %v577, 0
      %v840 = vsel %vm796, %v581, 0
      %v843 = vsel %vm796, %v585, 0
      %845 = vmatprep.subr.bf16.mxu0 0
      %846 = vmatpush1.bf16.msra.mxu0 %v749
      %847 = vmatprep.subr.bf16.mxu0 0
      %848 = vmatpush1.bf16.msra.mxu0 %v748
      %849 = vmatprep.subr.bf16.mxu0 0
      %850 = vmatpush1.bf16.msra.mxu0 %v747
      %851 = vmatprep.subr.bf16.mxu0 0
      %852 = vmatpush1.bf16.msra.mxu0 %v746
      %853 = vmatprep.subr.bf16.mxu0 0
      %854 = vmatpush1.bf16.msra.mxu0 %v745
      %855 = vmatprep.subr.bf16.mxu0 0
      %856 = vmatpush1.bf16.msra.mxu0 %v744
      %857 = vmatprep.subr.bf16.mxu0 0
      %858 = vmatpush1.bf16.msra.mxu0 %v743
      %859 = vmatprep.subr.bf16.mxu0 0
      %860 = vmatpush1.bf16.msra.mxu0 %v742
      %861 = vmatprep.subr.bf16.mxu0 0
      %862 = vmatpush2.bf16.msra.mxu0 %v757
      %863 = vmatprep.subr.bf16.mxu0 0
      %864 = vmatpush2.bf16.msra.mxu0 %v756
      %865 = vmatprep.subr.bf16.mxu0 0
      %866 = vmatpush2.bf16.msra.mxu0 %v755
      %867 = vmatprep.subr.bf16.mxu0 0
      %868 = vmatpush2.bf16.msra.mxu0 %v754
      %869 = vmatprep.subr.bf16.mxu0 0
      %870 = vmatpush2.bf16.msra.mxu0 %v753
      %871 = vmatprep.subr.bf16.mxu0 0
      %872 = vmatpush2.bf16.msra.mxu0 %v752
      %873 = vmatprep.subr.bf16.mxu0 0
      %874 = vmatpush2.bf16.msra.mxu0 %v751
      %875 = vmatprep.subr.bf16.mxu0 0
      %876 = vmatpush2.bf16.msra.mxu0 %v750
      %877 = vmatprep.mubr.bf16.mxu0 %v523
      %878 = vmatmul.mubr.bf16.gmra.mxu0 %v522
      %v879 = vpop.f32.mrf.mxu0
      %v880 = vadd.f32 %v328, %v879
      %v881 = vpop.f32.mrf.mxu0
      %v882 = vpop.f32.mrf.mxu0
      %v883 = vadd.f32 %v328, %v882
      %v884 = vpop.f32.mrf.mxu0
      %885 = vmatprep.mubr.bf16.mxu0 %v527
      %886 = vmatmul.mubr.bf16.gmra.mxu0 %v526
      %v887 = vpop.f32.mrf.mxu0
      %v888 = vadd.f32 %v328, %v887
      %v889 = vpop.f32.mrf.mxu0
      %v890 = vpop.f32.mrf.mxu0
      %v891 = vadd.f32 %v328, %v890
      %v892 = vpop.f32.mrf.mxu0
      %893 = vmatprep.mubr.bf16.mxu0 %v531
      %894 = vmatmul.mubr.bf16.gmra.mxu0 %v530
      %v895 = vpop.f32.mrf.mxu0
      %v896 = vadd.f32 %v328, %v895
      %v897 = vpop.f32.mrf.mxu0
      %v898 = vpop.f32.mrf.mxu0
      %v899 = vadd.f32 %v328, %v898
      %v900 = vpop.f32.mrf.mxu0
      %901 = vmatprep.mubr.bf16.mxu0 %v535
      %902 = vmatmul.mubr.bf16.gmra.mxu0 %v534
      %v903 = vpop.f32.mrf.mxu0
      %v904 = vadd.f32 %v328, %v903
      %v905 = vpop.f32.mrf.mxu0
      %v906 = vpop.f32.mrf.mxu0
      %v907 = vadd.f32 %v328, %v906
      %v908 = vpop.f32.mrf.mxu0
      %909 = vmatprep.mubr.bf16.mxu0 %v539
      %910 = vmatmul.mubr.bf16.gmra.mxu0 %v538
      %v911 = vpop.f32.mrf.mxu0
      %v912 = vadd.f32 %v328, %v911
      %v913 = vpop.f32.mrf.mxu0
      %v914 = vpop.f32.mrf.mxu0
      %v915 = vadd.f32 %v328, %v914
      %v916 = vpop.f32.mrf.mxu0
      %917 = vmatprep.mubr.bf16.mxu0 %v543
      %918 = vmatmul.mubr.bf16.gmra.mxu0 %v542
      %v919 = vpop.f32.mrf.mxu0
      %v920 = vadd.f32 %v328, %v919
      %v921 = vpop.f32.mrf.mxu0
      %v922 = vpop.f32.mrf.mxu0
      %v923 = vadd.f32 %v328, %v922
      %v924 = vpop.f32.mrf.mxu0
      %925 = vmatprep.mubr.bf16.mxu0 %v547
      %926 = vmatmul.mubr.bf16.gmra.mxu0 %v546
      %v927 = vpop.f32.mrf.mxu0
      %v928 = vadd.f32 %v328, %v927
      %v929 = vpop.f32.mrf.mxu0
      %v930 = vpop.f32.mrf.mxu0
      %v931 = vadd.f32 %v328, %v930
      %v932 = vpop.f32.mrf.mxu0
      %933 = vmatprep.mubr.bf16.mxu0 %v551
      %934 = vmatmul.mubr.bf16.gmra.mxu0 %v550
      %v935 = vpop.f32.mrf.mxu0
      %v936 = vadd.f32 %v328, %v935
      %v937 = vpop.f32.mrf.mxu0
      %v938 = vpop.f32.mrf.mxu0
      %v939 = vadd.f32 %v328, %v938
      %v940 = vpop.f32.mrf.mxu0
      %941 = vmatprep.mubr.bf16.mxu0 %v555
      %942 = vmatmul.mubr.bf16.gmra.mxu0 %v554
      %v943 = vpop.f32.mrf.mxu0
      %v944 = vadd.f32 %v328, %v943
      %v945 = vpop.f32.mrf.mxu0
      %v946 = vpop.f32.mrf.mxu0
      %v947 = vadd.f32 %v328, %v946
      %v948 = vpop.f32.mrf.mxu0
      %949 = vmatprep.mubr.bf16.mxu0 %v559
      %950 = vmatmul.mubr.bf16.gmra.mxu0 %v558
      %v951 = vpop.f32.mrf.mxu0
      %v952 = vadd.f32 %v328, %v951
      %v953 = vpop.f32.mrf.mxu0
      %v954 = vpop.f32.mrf.mxu0
      %v955 = vadd.f32 %v328, %v954
      %v956 = vpop.f32.mrf.mxu0
      %957 = vmatprep.mubr.bf16.mxu0 %v563
      %958 = vmatmul.mubr.bf16.gmra.mxu0 %v562
      %v959 = vpop.f32.mrf.mxu0
      %v960 = vadd.f32 %v328, %v959
      %v961 = vpop.f32.mrf.mxu0
      %v962 = vpop.f32.mrf.mxu0
      %v963 = vadd.f32 %v328, %v962
      %v964 = vpop.f32.mrf.mxu0
      %965 = vmatprep.mubr.bf16.mxu0 %v567
      %966 = vmatmul.mubr.bf16.gmra.mxu0 %v566
      %v967 = vpop.f32.mrf.mxu0
      %v968 = vadd.f32 %v328, %v967
      %v969 = vpop.f32.mrf.mxu0
      %v970 = vpop.f32.mrf.mxu0
      %v971 = vadd.f32 %v328, %v970
      %v972 = vpop.f32.mrf.mxu0
      %973 = vmatprep.mubr.bf16.mxu0 %v571
      %974 = vmatmul.mubr.bf16.gmra.mxu0 %v570
      %v975 = vpop.f32.mrf.mxu0
      %v976 = vadd.f32 %v328, %v975
      %v977 = vpop.f32.mrf.mxu0
      %v978 = vpop.f32.mrf.mxu0
      %v979 = vadd.f32 %v328, %v978
      %v980 = vpop.f32.mrf.mxu0
      %981 = vmatprep.mubr.bf16.mxu0 %v575
      %982 = vmatmul.mubr.bf16.gmra.mxu0 %v574
      %v983 = vpop.f32.mrf.mxu0
      %v984 = vadd.f32 %v328, %v983
      %v985 = vpop.f32.mrf.mxu0
      %v986 = vpop.f32.mrf.mxu0
      %v987 = vadd.f32 %v328, %v986
      %v988 = vpop.f32.mrf.mxu0
      %989 = vmatprep.mubr.bf16.mxu0 %v579
      %990 = vmatmul.mubr.bf16.gmra.mxu0 %v578
      %v991 = vpop.f32.mrf.mxu0
      %v992 = vadd.f32 %v328, %v991
      %v993 = vpop.f32.mrf.mxu0
      %v994 = vpop.f32.mrf.mxu0
      %v995 = vadd.f32 %v328, %v994
      %v996 = vpop.f32.mrf.mxu0
      %997 = vmatprep.mubr.bf16.mxu0 %v583
      %998 = vmatmul.mubr.bf16.gmra.mxu0 %v582
      %v999 = vpop.f32.mrf.mxu0
      %v1000 = vadd.f32 %v328, %v999
      %v1001 = vpop.f32.mrf.mxu0
      %v1002 = vpop.f32.mrf.mxu0
      %v1003 = vadd.f32 %v328, %v1002
      %v1004 = vpop.f32.mrf.mxu0
      %1005 = vdwg.mxu0
      %1006 = vmatprep.subr.bf16.mxu0 0
      %1007 = vmatpush1.bf16.msra.mxu0 %v765
      %1008 = vmatprep.subr.bf16.mxu0 0
      %1009 = vmatpush1.bf16.msra.mxu0 %v764
      %1010 = vmatprep.subr.bf16.mxu0 0
      %1011 = vmatpush1.bf16.msra.mxu0 %v763
      %1012 = vmatprep.subr.bf16.mxu0 0
      %1013 = vmatpush1.bf16.msra.mxu0 %v762
      %1014 = vmatprep.subr.bf16.mxu0 0
      %1015 = vmatpush1.bf16.msra.mxu0 %v761
      %1016 = vmatprep.subr.bf16.mxu0 0
      %1017 = vmatpush1.bf16.msra.mxu0 %v760
      %1018 = vmatprep.subr.bf16.mxu0 0
      %1019 = vmatpush1.bf16.msra.mxu0 %v759
      %1020 = vmatprep.subr.bf16.mxu0 0
      %1021 = vmatpush1.bf16.msra.mxu0 %v758
      %1022 = vmatprep.subr.bf16.mxu0 0
      %1023 = vmatpush2.bf16.msra.mxu0 0
      %1024 = vmatprep.subr.bf16.mxu0 0
      %1025 = vmatpush2.bf16.msra.mxu0 0
      %1026 = vmatprep.subr.bf16.mxu0 0
      %1027 = vmatpush2.bf16.msra.mxu0 0
      %1028 = vmatprep.subr.bf16.mxu0 0
      %1029 = vmatpush2.bf16.msra.mxu0 0
      %1030 = vmatprep.subr.bf16.mxu0 0
      %1031 = vmatpush2.bf16.msra.mxu0 0
      %1032 = vmatprep.subr.bf16.mxu0 0
      %1033 = vmatpush2.bf16.msra.mxu0 %v768
      %1034 = vmatprep.subr.bf16.mxu0 0
      %1035 = vmatpush2.bf16.msra.mxu0 %v767
      %1036 = vmatprep.subr.bf16.mxu0 0
      %1037 = vmatpush2.bf16.msra.mxu0 %v766
      %1038 = vmatprep.mubr.bf16.mxu0 %v798
      %1039 = vmatmul.mubr.bf16.gmra.mxu0 %v524
      %v1040 = vpop.f32.mrf.mxu0
      %v1041 = vadd.f32 %v880, %v1040
      %v1042 = vpop.f32.mrf.mxu0
      %v1043 = vpop.f32.mrf.mxu0
      %v1044 = vadd.f32 %v883, %v1043
      %v1045 = vpop.f32.mrf.mxu0
      %1046 = vmatprep.mubr.bf16.mxu0 %v801
      %1047 = vmatmul.mubr.bf16.gmra.mxu0 %v528
      %v1048 = vpop.f32.mrf.mxu0
      %v1049 = vadd.f32 %v888, %v1048
      %v1050 = vpop.f32.mrf.mxu0
      %v1051 = vpop.f32.mrf.mxu0
      %v1052 = vadd.f32 %v891, %v1051
      %v1053 = vpop.f32.mrf.mxu0
      %1054 = vmatprep.mubr.bf16.mxu0 %v804
      %1055 = vmatmul.mubr.bf16.gmra.mxu0 %v532
      %v1056 = vpop.f32.mrf.mxu0
      %v1057 = vadd.f32 %v896, %v1056
      %v1058 = vpop.f32.mrf.mxu0
      %v1059 = vpop.f32.mrf.mxu0
      %v1060 = vadd.f32 %v899, %v1059
      %v1061 = vpop.f32.mrf.mxu0
      %1062 = vmatprep.mubr.bf16.mxu0 %v807
      %1063 = vmatmul.mubr.bf16.gmra.mxu0 %v536
      %v1064 = vpop.f32.mrf.mxu0
      %v1065 = vadd.f32 %v904, %v1064
      %v1066 = vpop.f32.mrf.mxu0
      %v1067 = vpop.f32.mrf.mxu0
      %v1068 = vadd.f32 %v907, %v1067
      %v1069 = vpop.f32.mrf.mxu0
      %1070 = vmatprep.mubr.bf16.mxu0 %v810
      %1071 = vmatmul.mubr.bf16.gmra.mxu0 %v540
      %v1072 = vpop.f32.mrf.mxu0
      %v1073 = vadd.f32 %v912, %v1072
      %v1074 = vpop.f32.mrf.mxu0
      %v1075 = vpop.f32.mrf.mxu0
      %v1076 = vadd.f32 %v915, %v1075
      %v1077 = vpop.f32.mrf.mxu0
      %1078 = vmatprep.mubr.bf16.mxu0 %v813
      %1079 = vmatmul.mubr.bf16.gmra.mxu0 %v544
      %v1080 = vpop.f32.mrf.mxu0
      %v1081 = vadd.f32 %v920, %v1080
      %v1082 = vpop.f32.mrf.mxu0
      %v1083 = vpop.f32.mrf.mxu0
      %v1084 = vadd.f32 %v923, %v1083
      %v1085 = vpop.f32.mrf.mxu0
      %1086 = vmatprep.mubr.bf16.mxu0 %v816
      %1087 = vmatmul.mubr.bf16.gmra.mxu0 %v548
      %v1088 = vpop.f32.mrf.mxu0
      %v1089 = vadd.f32 %v928, %v1088
      %v1090 = vpop.f32.mrf.mxu0
      %v1091 = vpop.f32.mrf.mxu0
      %v1092 = vadd.f32 %v931, %v1091
      %v1093 = vpop.f32.mrf.mxu0
      %1094 = vmatprep.mubr.bf16.mxu0 %v819
      %1095 = vmatmul.mubr.bf16.gmra.mxu0 %v552
      %v1096 = vpop.f32.mrf.mxu0
      %v1097 = vadd.f32 %v936, %v1096
      %v1098 = vpop.f32.mrf.mxu0
      %v1099 = vpop.f32.mrf.mxu0
      %v1100 = vadd.f32 %v939, %v1099
      %v1101 = vpop.f32.mrf.mxu0
      %1102 = vmatprep.mubr.bf16.mxu0 %v822
      %1103 = vmatmul.mubr.bf16.gmra.mxu0 %v556
      %v1104 = vpop.f32.mrf.mxu0
      %v1105 = vadd.f32 %v944, %v1104
      %v1106 = vpop.f32.mrf.mxu0
      %v1107 = vpop.f32.mrf.mxu0
      %v1108 = vadd.f32 %v947, %v1107
      %v1109 = vpop.f32.mrf.mxu0
      %1110 = vmatprep.mubr.bf16.mxu0 %v825
      %1111 = vmatmul.mubr.bf16.gmra.mxu0 %v560
      %v1112 = vpop.f32.mrf.mxu0
      %v1113 = vadd.f32 %v952, %v1112
      %v1114 = vpop.f32.mrf.mxu0
      %v1115 = vpop.f32.mrf.mxu0
      %v1116 = vadd.f32 %v955, %v1115
      %v1117 = vpop.f32.mrf.mxu0
      %1118 = vmatprep.mubr.bf16.mxu0 %v828
      %1119 = vmatmul.mubr.bf16.gmra.mxu0 %v564
      %v1120 = vpop.f32.mrf.mxu0
      %v1121 = vadd.f32 %v960, %v1120
      %v1122 = vpop.f32.mrf.mxu0
      %v1123 = vpop.f32.mrf.mxu0
      %v1124 = vadd.f32 %v963, %v1123
      %v1125 = vpop.f32.mrf.mxu0
      %1126 = vmatprep.mubr.bf16.mxu0 %v831
      %1127 = vmatmul.mubr.bf16.gmra.mxu0 %v568
      %v1128 = vpop.f32.mrf.mxu0
      %v1129 = vadd.f32 %v968, %v1128
      %v1130 = vpop.f32.mrf.mxu0
      %v1131 = vpop.f32.mrf.mxu0
      %v1132 = vadd.f32 %v971, %v1131
      %v1133 = vpop.f32.mrf.mxu0
      %1134 = vmatprep.mubr.bf16.mxu0 %v834
      %1135 = vmatmul.mubr.bf16.gmra.mxu0 %v572
      %v1136 = vpop.f32.mrf.mxu0
      %v1137 = vadd.f32 %v976, %v1136
      %v1138 = vpop.f32.mrf.mxu0
      %v1139 = vpop.f32.mrf.mxu0
      %v1140 = vadd.f32 %v979, %v1139
      %v1141 = vpop.f32.mrf.mxu0
      %1142 = vmatprep.mubr.bf16.mxu0 %v837
      %1143 = vmatmul.mubr.bf16.gmra.mxu0 %v576
      %v1144 = vpop.f32.mrf.mxu0
      %v1145 = vadd.f32 %v984, %v1144
      %v1146 = vpop.f32.mrf.mxu0
      %v1147 = vpop.f32.mrf.mxu0
      %v1148 = vadd.f32 %v987, %v1147
      %v1149 = vpop.f32.mrf.mxu0
      %1150 = vmatprep.mubr.bf16.mxu0 %v840
      %1151 = vmatmul.mubr.bf16.gmra.mxu0 %v580
      %v1152 = vpop.f32.mrf.mxu0
      %v1153 = vadd.f32 %v992, %v1152
      %v1154 = vpop.f32.mrf.mxu0
      %v1155 = vpop.f32.mrf.mxu0
      %v1156 = vadd.f32 %v995, %v1155
      %v1157 = vpop.f32.mrf.mxu0
      %1158 = vmatprep.mubr.bf16.mxu0 %v843
      %1159 = vmatmul.mubr.bf16.gmra.mxu0 %v584
      %v1160 = vpop.f32.mrf.mxu0
      %v1161 = vadd.f32 %v1000, %v1160
      %v1162 = vpop.f32.mrf.mxu0
      %v1163 = vpop.f32.mrf.mxu0
      %v1164 = vadd.f32 %v1003, %v1163
      %v1165 = vpop.f32.mrf.mxu0
      %1166 = vdwg.mxu0
      %v1167 = vld [vmem:[%s3] sm:$0x1]
      %vm1168 = vcmp.ge.f32.partialorder %v1041, 0.0
      %vm1169 = vcmp.ge.f32.partialorder %v1044, 0.0
      %vm1170 = vcmp.ge.f32.partialorder %v1049, 0.0
      %vm1171 = vcmp.ge.f32.partialorder %v1052, 0.0
      %vm1172 = vcmp.ge.f32.partialorder %v1057, 0.0
      %vm1173 = vcmp.ge.f32.partialorder %v1060, 0.0
      %vm1174 = vcmp.ge.f32.partialorder %v1065, 0.0
      %vm1175 = vcmp.ge.f32.partialorder %v1068, 0.0
      %vm1176 = vcmp.ge.f32.partialorder %v1073, 0.0
      %vm1177 = vcmp.ge.f32.partialorder %v1076, 0.0
      %vm1178 = vcmp.ge.f32.partialorder %v1081, 0.0
      %vm1179 = vcmp.ge.f32.partialorder %v1084, 0.0
      %vm1180 = vcmp.ge.f32.partialorder %v1089, 0.0
      %vm1181 = vcmp.ge.f32.partialorder %v1092, 0.0
      %vm1182 = vcmp.ge.f32.partialorder %v1097, 0.0
      %vm1183 = vcmp.ge.f32.partialorder %v1100, 0.0
      %vm1184 = vcmp.ge.f32.partialorder %v1105, 0.0
      %vm1185 = vcmp.ge.f32.partialorder %v1108, 0.0
      %vm1186 = vcmp.ge.f32.partialorder %v1113, 0.0
      %vm1187 = vcmp.ge.f32.partialorder %v1116, 0.0
      %vm1188 = vcmp.ge.f32.partialorder %v1121, 0.0
      %vm1189 = vcmp.ge.f32.partialorder %v1124, 0.0
      %vm1190 = vcmp.ge.f32.partialorder %v1129, 0.0
      %vm1191 = vcmp.ge.f32.partialorder %v1132, 0.0
      %vm1192 = vcmp.ge.f32.partialorder %v1137, 0.0
      %vm1193 = vcmp.ge.f32.partialorder %v1140, 0.0
      %vm1194 = vcmp.ge.f32.partialorder %v1145, 0.0
      %vm1195 = vcmp.ge.f32.partialorder %v1148, 0.0
      %vm1196 = vcmp.ge.f32.partialorder %v1153, 0.0
      %vm1197 = vcmp.ge.f32.partialorder %v1156, 0.0
      %vm1198 = vcmp.ge.f32.partialorder %v1161, 0.0
      %vm1199 = vcmp.ge.f32.partialorder %v1164, 0.0
      %v1201 = vlaneseq
      %v1202 = vshrl.u32 %v1201, 7
      %v1203 = vsub.s32 0, %v1202
      %v1204 = vrot.slane %v1167, %v1203
      %v1206 = vmul.f32 %v1204, %v1041
      %v1207 = vmul.f32 %v1204, %v1044
      %v1208 = vmul.f32 %v1204, %v1049
      %v1209 = vmul.f32 %v1204, %v1052
      %v1210 = vmul.f32 %v1204, %v1057
      %v1211 = vmul.f32 %v1204, %v1060
      %v1212 = vmul.f32 %v1204, %v1065
      %v1213 = vmul.f32 %v1204, %v1068
      %v1214 = vmul.f32 %v1204, %v1073
      %v1215 = vmul.f32 %v1204, %v1076
      %v1216 = vmul.f32 %v1204, %v1081
      %v1217 = vmul.f32 %v1204, %v1084
      %v1218 = vmul.f32 %v1204, %v1089
      %v1219 = vmul.f32 %v1204, %v1092
      %v1220 = vmul.f32 %v1204, %v1097
      %v1221 = vmul.f32 %v1204, %v1100
      %v1222 = vmul.f32 %v1204, %v1105
      %v1223 = vmul.f32 %v1204, %v1108
      %v1224 = vmul.f32 %v1204, %v1113
      %v1225 = vmul.f32 %v1204, %v1116
      %v1226 = vmul.f32 %v1204, %v1121
      %v1227 = vmul.f32 %v1204, %v1124
      %v1228 = vmul.f32 %v1204, %v1129
      %v1229 = vmul.f32 %v1204, %v1132
      %v1230 = vmul.f32 %v1204, %v1137
      %v1231 = vmul.f32 %v1204, %v1140
      %v1232 = vmul.f32 %v1204, %v1145
      %v1233 = vmul.f32 %v1204, %v1148
      %v1234 = vmul.f32 %v1204, %v1153
      %v1235 = vmul.f32 %v1204, %v1156
      %v1236 = vmul.f32 %v1204, %v1161
      %v1237 = vmul.f32 %v1204, %v1164
      %v1238 = vsel %vm1168, %v1041, %v1206
      %v1239 = vsel %vm1169, %v1044, %v1207
      %v1240 = vsel %vm1170, %v1049, %v1208
      %v1241 = vsel %vm1171, %v1052, %v1209
      %v1242 = vsel %vm1172, %v1057, %v1210
      %v1243 = vsel %vm1173, %v1060, %v1211
      %v1244 = vsel %vm1174, %v1065, %v1212
      %v1245 = vsel %vm1175, %v1068, %v1213
      %v1246 = vsel %vm1176, %v1073, %v1214
      %v1247 = vsel %vm1177, %v1076, %v1215
      %v1248 = vsel %vm1178, %v1081, %v1216
      %v1249 = vsel %vm1179, %v1084, %v1217
      %v1250 = vsel %vm1180, %v1089, %v1218
      %v1251 = vsel %vm1181, %v1092, %v1219
      %v1252 = vsel %vm1182, %v1097, %v1220
      %v1253 = vsel %vm1183, %v1100, %v1221
      %v1254 = vsel %vm1184, %v1105, %v1222
      %v1255 = vsel %vm1185, %v1108, %v1223
      %v1256 = vsel %vm1186, %v1113, %v1224
      %v1257 = vsel %vm1187, %v1116, %v1225
      %v1258 = vsel %vm1188, %v1121, %v1226
      %v1259 = vsel %vm1189, %v1124, %v1227
      %v1260 = vsel %vm1190, %v1129, %v1228
      %v1261 = vsel %vm1191, %v1132, %v1229
      %v1262 = vsel %vm1192, %v1137, %v1230
      %v1263 = vsel %vm1193, %v1140, %v1231
      %v1264 = vsel %vm1194, %v1145, %v1232
      %v1265 = vsel %vm1195, %v1148, %v1233
      %v1266 = vsel %vm1196, %v1153, %v1234
      %v1267 = vsel %vm1197, %v1156, %v1235
      %v1268 = vsel %vm1198, %v1161, %v1236
      %v1269 = vsel %vm1199, %v1164, %v1237
      %1270 = vst [vmem:[%s202] sm:$0xff] %v1238
      %1271 = vst [vmem:[%s202 + $0x8] sm:$0xff] %v1239
      %1272 = vst [vmem:[%s202 + $0x10] sm:$0xff] %v1240
      %1273 = vst [vmem:[%s202 + $0x18] sm:$0xff] %v1241
      %1274 = vst [vmem:[%s202 + $0x20] sm:$0xff] %v1242
      %1275 = vst [vmem:[%s202 + $0x28] sm:$0xff] %v1243
      %1276 = vst [vmem:[%s202 + $0x30] sm:$0xff] %v1244
      %1277 = vst [vmem:[%s202 + $0x38] sm:$0xff] %v1245
      %1278 = vst [vmem:[%s202 + $0x40] sm:$0xff] %v1246
      %1279 = vst [vmem:[%s202 + $0x48] sm:$0xff] %v1247
      %1280 = vst [vmem:[%s202 + $0x50] sm:$0xff] %v1248
      %1281 = vst [vmem:[%s202 + $0x58] sm:$0xff] %v1249
      %1282 = vst [vmem:[%s202 + $0x60] sm:$0xff] %v1250
      %1283 = vst [vmem:[%s202 + $0x68] sm:$0xff] %v1251
      %1284 = vst [vmem:[%s202 + $0x70] sm:$0xff] %v1252
      %1285 = vst [vmem:[%s202 + $0x78] sm:$0xff] %v1253
      %1286 = vst [vmem:[%s202 + $0x80] sm:$0xff] %v1254
      %1287 = vst [vmem:[%s202 + $0x88] sm:$0xff] %v1255
      %1288 = vst [vmem:[%s202 + $0x90] sm:$0xff] %v1256
      %1289 = vst [vmem:[%s202 + $0x98] sm:$0xff] %v1257
      %1290 = vst [vmem:[%s202 + $0xa0] sm:$0xff] %v1258
      %1291 = vst [vmem:[%s202 + $0xa8] sm:$0xff] %v1259
      %1292 = vst [vmem:[%s202 + $0xb0] sm:$0xff] %v1260
      %1293 = vst [vmem:[%s202 + $0xb8] sm:$0xff] %v1261
      %1294 = vst [vmem:[%s202 + $0xc0] sm:$0xff] %v1262
      %1295 = vst [vmem:[%s202 + $0xc8] sm:$0xff] %v1263
      %1296 = vst [vmem:[%s202 + $0xd0] sm:$0xff] %v1264
      %1297 = vst [vmem:[%s202 + $0xd8] sm:$0xff] %v1265
      %1298 = vst [vmem:[%s202 + $0xe0] sm:$0xff] %v1266
      %1299 = vst [vmem:[%s202 + $0xe8] sm:$0xff] %v1267
      %1300 = vst [vmem:[%s202 + $0xf0] sm:$0xff] %v1268
      %1301 = vst [vmem:[%s202 + $0xf8] sm:$0xff] %v1269
      %s1302 = smul.u32 32, %s15
      %p1303 = scmp.lt.s32.totalorder %s1302, 63
      %s1304 = scalar_select %p1303, %s1302, 63
      %s1305 = smul.addr %s1304, 8
      %s1306 = scalar_lea.vmem %s4, %s1305
      // Predicated region
      $region37: #{if_block_forward.23} parent=35 // pred_check
        %p1307 = pneg %p122
      $region38: #{if_block_forward.23} parent=35 // pred_check_branch
        %1309 = sbr.rel (%p1307) target = $region40
      $region39: #{if_block_forward.23} parent=35 // pred_region
        %s1310 = smul.u32 32, %s15
      $region40: #{if_block_forward.23} parent=35 // pred_fallthru
        _
    $region36: #{if_block_forward.23} parent=5 // pred_fallthru
      _
    %p1311 = scmp.le.s32.totalorder 2, %s10
    // Predicated region
    $region41: #{if_block_forward.23} parent=5 // pred_check
      %p1312 = pneg %p1311
    $region42: #{if_block_forward.23} parent=5 // pred_check_branch
      %1314 = sbr.rel (%p1312) target = $region44
    $region43: #{if_block_forward.23} parent=5 // pred_region
      %s1315 = ssub.s32 %s10, 2
      // Predicated region
      $region45: #{if_block_forward.23} parent=43 // pred_check
        %p1316 = pneg %p128
      $region46: #{if_block_forward.23} parent=43 // pred_check_branch
        %1318 = sbr.rel (%p1316) target = $region48
      $region47: #{if_block_forward.23} parent=43 // pred_region
        %s1319 = smul.u32 32, %s16
        %p1320 = scmp.lt.s32.totalorder %s1319, 63
        %s1321 = scalar_select %p1320, %s1319, 63
        %s1322 = smul.addr %s1321, 8
        %s1323 = scalar_lea.vmem %s4, %s1322
      $region48: #{if_block_forward.23} parent=43 // pred_fallthru
        _
    $region44: #{if_block_forward.23} parent=5 // pred_fallthru
      _
  $region6: #{if_block_forward.23} parent=0 // loop_footer
    %s14 = sadd.s32 1, %s10
  $region7: #{if_block_forward.23} parent=0 // loop_footer_branch
    %9 = sbr.rel target = $region3
  $region8: #{if_block_forward.23} parent=0 // loop_exit
    _

</llo_original>
